<compile_context>
chip_gen: v6e
topology: v6e:2x2x1
jax: 0.10.0
libtpu: 0.0.40
codegen_flags: <defaults>
</compile_context>

<pallas_src>
import functools
import math

import jax
import jax.numpy as jnp
from jax.experimental import pallas as pl
from jax.experimental.pallas import tpu as pltpu


# ----------------------------- kernel ---------------------------------------

def _layernorm(x, gamma, beta, eps=1e-5):
    mu = jnp.mean(x, axis=-1, keepdims=True)
    var = jnp.mean((x - mu) ** 2, axis=-1, keepdims=True)
    return (x - mu) * jax.lax.rsqrt(var + eps) * gamma + beta


def taskformer_kernel(nodes_ref, task_ref, pos_ref, wn_ref, wt_ref,
                      wqkv_ref, bqkv_ref, wo_ref, w1_ref, b1_ref, w2_ref,
                      pack_ref, out_ref, *, matmul_dtype=jnp.float32):
    f32 = jnp.float32
    b_blk, n, d_in = nodes_ref.shape
    d_model = wn_ref.shape[1]
    m = b_blk * n

    def mm(a, b):
        # weights are already pre-cast in the wrapper; .astype on them is a no-op
        return jnp.dot(a.astype(matmul_dtype), b.astype(matmul_dtype),
                       preferred_element_type=f32)

    def bmm(eq, a, b):
        return jnp.einsum(eq, a.astype(matmul_dtype), b.astype(matmul_dtype),
                          preferred_element_type=f32)

    # ---- unpack the consolidated per-feature vectors: (9, d_model), f32 ----
    pack = pack_ref[...]
    bn, bo, b2 = pack[0:1], pack[1:2], pack[2:3]
    g1, be1, g2, be2 = pack[3:4], pack[4:5], pack[5:6], pack[6:7]
    wfc_row = pack[7:8]            # fc weight as a row, (1, d_model)
    bfc = pack[8:9, 0:1]           # fc bias as a (1, 1) scalar

    # ---- embeddings on a flattened 2-D slab (B_BLK*N, d) ----
    nodes2 = nodes_ref[...].reshape(m, d_in)
    nodes_e = mm(nodes2, wn_ref[...]) + bn                       # (M, d_model)
    task_e = mm(task_ref[...], wt_ref[...])                      # (B_BLK, d_model)

    x3 = (nodes_e.reshape(b_blk, n, d_model)
          + pos_ref[...][None, :, :]
          + task_e[:, None, :])                                  # (B_BLK, N, d_model)
    x2 = x3.reshape(m, d_model)

    # ---- single-head self-attention (fused QKV matmul + one bias add) ----
    qkv = mm(x2, wqkv_ref[...]) + bqkv_ref[...]                  # (M, 3*d_model)
    q = qkv[:, 0:d_model].reshape(b_blk, n, d_model)
    k = qkv[:, d_model:2 * d_model].reshape(b_blk, n, d_model)
    v = qkv[:, 2 * d_model:3 * d_model].reshape(b_blk, n, d_model)

    # Same contraction pattern as the flash-attention reference kernel: MXU
    # matmul with the rhs contracting on its last dim (no explicit transpose).
    scores = bmm('bnd,bmd->bnm', q, k) * (1.0 / math.sqrt(d_model))
    scores = scores - jnp.max(scores, axis=-1, keepdims=True)
    p = jnp.exp(scores)
    attn = p * pl.reciprocal(jnp.sum(p, axis=-1, keepdims=True), approx=True)

    ao = bmm('bnm,bmd->bnd', attn, v).reshape(m, d_model)
    ao = mm(ao, wo_ref[...]) + bo
    x2 = _layernorm(x2 + ao, g1, be1)

    # ---- position-wise feed forward ----
    h = jnp.maximum(mm(x2, w1_ref[...]) + b1_ref[...], 0.0)
    ff = mm(h, w2_ref[...]) + b2
    x2 = _layernorm(x2 + ff, g2, be2)

    # ---- final fc (d_model -> 1), emitted as one lane-dense (1, M) row ----
    out_ref[...] = jnp.sum(x2 * wfc_row, axis=-1) + bfc          # (m,)+(1,1)->(1,m)


# ----------------------------- chip introspection -----------------------------

def _tpu_generation_info():
    """Best-effort chip query: (vmem_capacity_bytes, num_tensorcores, is_v7)."""
    vmem_bytes = 128 * 1024 * 1024
    kind = ""
    try:
        kind = jax.devices()[0].device_kind.lower()
    except Exception:
        pass
    try:
        info = pltpu.get_tpu_info()
        vmem_bytes = int(getattr(info, "vmem_capacity_bytes", vmem_bytes))
    except Exception:
        pass
    is_v7 = ("v7" in kind) or ("7x" in kind) or (vmem_bytes <= 64 * 1024 * 1024)
    num_tc = 2 if is_v7 else 1
    return vmem_bytes, num_tc, is_v7


def _choose_b_blk(B, N, d_in, d_task, d_model, d_ff, act_budget_bytes, num_tc):
    # Rough live f32 activation footprint per batch element:
    #   slabs: x, qkv, q/k/v views, attn-out, ffn hidden ~ N*(7*d_model + d_ff)
    #   attention: scores + probs                         ~ 2*N*N
    #   double-buffered input/output blocks               ~ 2*(N*d_in + d_task + N)
    per_b = 4 * (N * (7 * d_model + d_ff) + 2 * N * N
                 + 2 * (N * d_in + d_task + N))
    b_blk = max(1, int(act_budget_bytes) // per_b)
    if num_tc > 1 and B >= num_tc:
        # v7x: keep >= num_tc grid steps so the "parallel" axis shards across
        # both TensorCores.  Single-TC chips take the largest block that fits.
        b_blk = min(b_blk, pl.cdiv(B, num_tc))
    b_blk = min(b_blk, B)
    # Keep the flattened slab height (b_blk*N) a multiple of 8 sublanes so the
    # (m, d) <-> (b, n, d) reshapes stay relayout-free.
    step = 8 // math.gcd(N, 8)
    if b_blk > step:
        b_blk = (b_blk // step) * step
    return max(1, b_blk)


# ----------------------------- wrapper ---------------------------------------

def taskformer_forward(nodes, task, params, *, b_blk=None, matmul_dtype=None):
    B, N, d_in = nodes.shape
    d_task = task.shape[-1]
    d_model = params["wn"].shape[1]
    d_ff = params["w1"].shape[1]

    vmem_bytes, num_tc, is_v7 = _tpu_generation_info()

    if matmul_dtype is None:
        # bf16 is MXU-native on v5e/v6e/v7x; accumulation stays f32.
        on_tpu = jax.devices()[0].platform == "tpu"
        matmul_dtype = jnp.bfloat16 if on_tpu else jnp.float32
    wdt = matmul_dtype

    # ---- consolidate weights: fused QKV + fused QKV bias + packed vector table
    wqkv = jnp.concatenate([params["wq"], params["wk"], params["wv"]], axis=1)
    bqkv = jnp.concatenate([params["bq"], params["bk"], params["bv"]],
                           axis=1).astype(jnp.float32)            # (1, 3*d_model)
    bfc_row = jnp.broadcast_to(params["bfc"].reshape(1, 1), (1, d_model))
    pack = jnp.concatenate([
        params["bn"], params["bo"], params["b2"],
        params["g1"], params["be1"], params["g2"], params["be2"],
        params["wfc"].reshape(1, d_model), bfc_row,
    ], axis=0).astype(jnp.float32)                                # (9, d_model)

    # Matmul operands pre-cast in the wrapper (halves weight DMA bytes for bf16);
    # everything added to f32 accumulators stays f32.
    weights = [params["pos"].astype(jnp.float32),
               params["wn"].astype(wdt), params["wt"].astype(wdt),
               wqkv.astype(wdt), bqkv,
               params["wo"].astype(wdt), params["w1"].astype(wdt),
               params["b1"].astype(jnp.float32), params["w2"].astype(wdt),
               pack]

    # ---- generation-aware VMEM budget / block size ----
    weight_bytes = sum(int(w.size) * w.dtype.itemsize for w in weights)
    vmem_limit = min(vmem_bytes, (48 << 20) if is_v7 else (100 << 20))
    act_budget = max(1 << 20, vmem_limit - 2 * weight_bytes - (2 << 20))

    if b_blk is None:
        b_blk = _choose_b_blk(B, N, d_in, d_task, d_model, d_ff,
                              act_budget, num_tc)
    b_blk = max(1, min(b_blk, B))

    num_blocks = pl.cdiv(B, b_blk)
    B_pad = num_blocks * b_blk
    if B_pad != B:
        nodes = jnp.pad(nodes, ((0, B_pad - B), (0, 0), (0, 0)))
        task = jnp.pad(task, ((0, B_pad - B), (0, 0)))

    m = b_blk * N
    kern = functools.partial(taskformer_kernel, matmul_dtype=matmul_dtype)

    def run(buffered_weights):
        def weight_spec(arr):
            nd = arr.ndim
            if buffered_weights:
                # constant index_map -> single-buffer the resident weights
                return pl.BlockSpec(arr.shape, lambda g, _nd=nd: (0,) * _nd,
                                    pipeline_mode=pl.Buffered(1))
            return pl.BlockSpec(arr.shape, lambda g, _nd=nd: (0,) * _nd)

        in_specs = [
            pl.BlockSpec((b_blk, N, d_in), lambda g: (g, 0, 0)),   # nodes block
            pl.BlockSpec((b_blk, d_task), lambda g: (g, 0)),       # task block
        ] + [weight_spec(w) for w in weights]

        # lane-dense output: one (1, b_blk*N) row per grid step
        out_spec = pl.BlockSpec((1, m), lambda g: (g, 0))

        out2d = pl.pallas_call(
            kern,
            out_shape=jax.ShapeDtypeStruct((num_blocks, m), jnp.float32),
            grid=(num_blocks,),
            in_specs=in_specs,
            out_specs=out_spec,
            compiler_params=pltpu.CompilerParams(
                dimension_semantics=("parallel",),
                vmem_limit_bytes=int(vmem_limit),
            ),
        )(nodes, task, *weights)
        return jax.block_until_ready(out2d)

    try:
        out2d = run(True)
    except Exception:
        # pl.Buffered(1) pipeline_mode not supported on this jax build
        out2d = run(False)

    return out2d.reshape(B_pad, N)[:B].reshape(B, N, 1)


# ----------------------------- reference (pure JAX) --------------------------

def taskformer_reference(nodes, task, p):
    def ln(x, g, b, eps=1e-5):
        mu = jnp.mean(x, -1, keepdims=True)
        var = jnp.mean((x - mu) ** 2, -1, keepdims=True)
        return (x - mu) / jnp.sqrt(var + eps) * g + b

    t = task @ p["wt"]                               # (B, d_model)
    n = nodes @ p["wn"] + p["bn"]                    # (B, N, d_model)
    x = n + p["pos"][None] + t[:, None, :]
    q = x @ p["wq"] + p["bq"]
    k = x @ p["wk"] + p["bk"]
    v = x @ p["wv"] + p["bv"]
    s = jnp.einsum("bnd,bmd->bnm", q, k) / math.sqrt(q.shape[-1])
    a = jax.nn.softmax(s, axis=-1)
    ao = jnp.einsum("bnm,bmd->bnd", a, v) @ p["wo"] + p["bo"]
    x = ln(x + ao, p["g1"], p["be1"])
    ff = jnp.maximum(x @ p["w1"] + p["b1"], 0.0) @ p["w2"] + p["b2"]
    x = ln(x + ff, p["g2"], p["be2"])
    return x @ p["wfc"] + p["bfc"]


# ----------------------------- main -------------------------------------------

if __name__ == "__main__":
    # small shapes consistent with the module (d_pos == N; n_heads=1, n_layers=1)
    B, N, d_in, d_task = 8, 8, 4, 6
    d_model, d_ff = 8, 8

    key = jax.random.PRNGKey(0)
    ks = iter(jax.random.split(key, 32))

    def w(shape, scale=0.1):
        return (scale * jax.random.normal(next(ks), shape)).astype(jnp.float32)

    params = {
        # embeddings
        "wn": w((d_in, d_model)), "bn": w((1, d_model)),
        "wt": w((d_task, d_model)),                     # no bias (bias=False)
        "pos": w((N, d_model)),                         # learned positional table
        # attention
        "wq": w((d_model, d_model)), "bq": w((1, d_model)),
        "wk": w((d_model, d_model)), "bk": w((1, d_model)),
        "wv": w((d_model, d_model)), "bv": w((1, d_model)),
        "wo": w((d_model, d_model)), "bo": w((1, d_model)),
        # layer norms
        "g1": jnp.ones((1, d_model), jnp.float32), "be1": jnp.zeros((1, d_model), jnp.float32),
        "g2": jnp.ones((1, d_model), jnp.float32), "be2": jnp.zeros((1, d_model), jnp.float32),
        # feed forward
        "w1": w((d_model, d_ff)), "b1": w((1, d_ff)),
        "w2": w((d_ff, d_model)), "b2": w((1, d_model)),
        # final fc
        "wfc": w((d_model, 1)), "bfc": w((1, 1)),
    }

    nodes = jax.random.normal(next(ks), (B, N, d_in), dtype=jnp.float32)
    task = jax.random.normal(next(ks), (B, d_task), dtype=jnp.float32)

    # default path: generation-aware tiling, bf16 MXU matmuls (f32 accumulation)
    out_fast = taskformer_forward(nodes, task, params)
    # exact-parity path for the tight correctness check
    out_f32 = taskformer_forward(nodes, task, params, matmul_dtype=jnp.float32)
    out_fast, out_f32 = jax.block_until_ready((out_fast, out_f32))

    ref = taskformer_reference(nodes, task, params)
    assert out_fast.shape == (B, N, 1) and out_f32.shape == (B, N, 1)
    # f32 path: tolerance only loosened for pl.reciprocal(approx=True) softmax
    assert jnp.allclose(out_f32, ref, atol=5e-3, rtol=5e-3), "f32 mismatch vs JAX reference"
    # bf16 path: inputs rounded to bf16 for the MXU, accumulation in f32
    assert jnp.allclose(out_fast, ref, atol=5e-2, rtol=5e-2), "bf16 mismatch vs JAX reference"

    print("KERNEL_OK")
</pallas_src>

<mosaic_0001>
module attributes {stable_mosaic.version = 11 : i64} {
  func.func @taskformer_kernel(%arg0: i32, %arg1: memref<8x8x4xf32, #tpu.memory_space<vmem>>, %arg2: memref<8x6xf32, #tpu.memory_space<vmem>>, %arg3: memref<8x8xf32, #tpu.memory_space<vmem>>, %arg4: memref<4x8xf32, #tpu.memory_space<vmem>>, %arg5: memref<6x8xf32, #tpu.memory_space<vmem>>, %arg6: memref<8x24xf32, #tpu.memory_space<vmem>>, %arg7: memref<1x24xf32, #tpu.memory_space<vmem>>, %arg8: memref<8x8xf32, #tpu.memory_space<vmem>>, %arg9: memref<8x8xf32, #tpu.memory_space<vmem>>, %arg10: memref<1x8xf32, #tpu.memory_space<vmem>>, %arg11: memref<8x8xf32, #tpu.memory_space<vmem>>, %arg12: memref<9x8xf32, #tpu.memory_space<vmem>>, %arg13: memref<1x64xf32, #tpu.memory_space<vmem>>) attributes {dimension_semantics = [#tpu.dimension_semantics<parallel>], iteration_bounds = array<i64: 1>, scalar_prefetch = 0 : i64, scratch_operands = 0 : i64, tpu.core_type = #tpu.core_type<tc>, window_params = [{transform_indices = @transform_0, window_bounds = array<i64: 8, 8, 4>}, {transform_indices = @transform_1, window_bounds = array<i64: 8, 6>}, {pipeline_mode = #tpu.pipeline_mode<synchronous>, transform_indices = @transform_2, window_bounds = array<i64: 8, 8>}, {pipeline_mode = #tpu.pipeline_mode<synchronous>, transform_indices = @transform_3, window_bounds = array<i64: 4, 8>}, {pipeline_mode = #tpu.pipeline_mode<synchronous>, transform_indices = @transform_4, window_bounds = array<i64: 6, 8>}, {pipeline_mode = #tpu.pipeline_mode<synchronous>, transform_indices = @transform_5, window_bounds = array<i64: 8, 24>}, {pipeline_mode = #tpu.pipeline_mode<synchronous>, transform_indices = @transform_6, window_bounds = array<i64: 1, 24>}, {pipeline_mode = #tpu.pipeline_mode<synchronous>, transform_indices = @transform_7, window_bounds = array<i64: 8, 8>}, {pipeline_mode = #tpu.pipeline_mode<synchronous>, transform_indices = @transform_8, window_bounds = array<i64: 8, 8>}, {pipeline_mode = #tpu.pipeline_mode<synchronous>, transform_indices = @transform_9, window_bounds = array<i64: 1, 8>}, {pipeline_mode = #tpu.pipeline_mode<synchronous>, transform_indices = @transform_10, window_bounds = array<i64: 8, 8>}, {pipeline_mode = #tpu.pipeline_mode<synchronous>, transform_indices = @transform_11, window_bounds = array<i64: 9, 8>}, {transform_indices = @transform_12, window_bounds = array<i64: 1, 64>}]} {
    %c0 = arith.constant 0 : index
    %c0_0 = arith.constant 0 : index
    %0 = vector.load %arg12[%c0, %c0_0] : memref<9x8xf32, #tpu.memory_space<vmem>>, vector<9x8xf32>
    %1 = vector.extract_strided_slice %0 {offsets = [0, 0], sizes = [1, 8], strides = [1, 1]} : vector<9x8xf32> to vector<1x8xf32>
    %2 = vector.extract_strided_slice %0 {offsets = [1, 0], sizes = [1, 8], strides = [1, 1]} : vector<9x8xf32> to vector<1x8xf32>
    %3 = vector.extract_strided_slice %0 {offsets = [2, 0], sizes = [1, 8], strides = [1, 1]} : vector<9x8xf32> to vector<1x8xf32>
    %4 = vector.extract_strided_slice %0 {offsets = [3, 0], sizes = [1, 8], strides = [1, 1]} : vector<9x8xf32> to vector<1x8xf32>
    %5 = vector.extract_strided_slice %0 {offsets = [4, 0], sizes = [1, 8], strides = [1, 1]} : vector<9x8xf32> to vector<1x8xf32>
    %6 = vector.extract_strided_slice %0 {offsets = [5, 0], sizes = [1, 8], strides = [1, 1]} : vector<9x8xf32> to vector<1x8xf32>
    %7 = vector.extract_strided_slice %0 {offsets = [6, 0], sizes = [1, 8], strides = [1, 1]} : vector<9x8xf32> to vector<1x8xf32>
    %8 = vector.extract_strided_slice %0 {offsets = [7, 0], sizes = [1, 8], strides = [1, 1]} : vector<9x8xf32> to vector<1x8xf32>
    %9 = vector.extract_strided_slice %0 {offsets = [8, 0], sizes = [1, 1], strides = [1, 1]} : vector<9x8xf32> to vector<1x1xf32>
    %c0_1 = arith.constant 0 : index
    %c0_2 = arith.constant 0 : index
    %c0_3 = arith.constant 0 : index
    %10 = vector.load %arg1[%c0_1, %c0_2, %c0_3] : memref<8x8x4xf32, #tpu.memory_space<vmem>>, vector<8x8x4xf32>
    %11 = vector.shape_cast %10 : vector<8x8x4xf32> to vector<64x4xf32>
    %c0_4 = arith.constant 0 : index
    %c0_5 = arith.constant 0 : index
    %12 = vector.load %arg4[%c0_4, %c0_5] : memref<4x8xf32, #tpu.memory_space<vmem>>, vector<4x8xf32>
    %cst = arith.constant dense<0.000000e+00> : vector<64x8xf32>
    %13 = tpu.matmul %11, %12, %cst {dimension_numbers = #tpu.dot_dimension_numbers<[1], [0], [0], [1], [0, 0, 1, 1], [], []>} : vector<64x4xf32>, vector<4x8xf32>, vector<64x8xf32> -> vector<64x8xf32>
    %14 = vector.broadcast %1 : vector<1x8xf32> to vector<64x8xf32>
    %15 = arith.addf %13, %14 : vector<64x8xf32>
    %c0_6 = arith.constant 0 : index
    %c0_7 = arith.constant 0 : index
    %16 = vector.load %arg2[%c0_6, %c0_7] : memref<8x6xf32, #tpu.memory_space<vmem>>, vector<8x6xf32>
    %c0_8 = arith.constant 0 : index
    %c0_9 = arith.constant 0 : index
    %17 = vector.load %arg5[%c0_8, %c0_9] : memref<6x8xf32, #tpu.memory_space<vmem>>, vector<6x8xf32>
    %cst_10 = arith.constant dense<0.000000e+00> : vector<8x8xf32>
    %18 = tpu.matmul %16, %17, %cst_10 {dimension_numbers = #tpu.dot_dimension_numbers<[1], [0], [0], [1], [0, 0, 1, 1], [], []>} : vector<8x6xf32>, vector<6x8xf32>, vector<8x8xf32> -> vector<8x8xf32>
    %19 = vector.shape_cast %15 : vector<64x8xf32> to vector<8x8x8xf32>
    %c0_11 = arith.constant 0 : index
    %c0_12 = arith.constant 0 : index
    %20 = vector.load %arg3[%c0_11, %c0_12] : memref<8x8xf32, #tpu.memory_space<vmem>>, vector<8x8xf32>
    %21 = vector.shape_cast %20 : vector<8x8xf32> to vector<1x8x8xf32>
    %22 = vector.broadcast %21 : vector<1x8x8xf32> to vector<8x8x8xf32>
    %23 = arith.addf %19, %22 : vector<8x8x8xf32>
    %24 = vector.shape_cast %18 : vector<8x8xf32> to vector<8x1x8xf32>
    %25 = vector.broadcast %24 : vector<8x1x8xf32> to vector<8x8x8xf32>
    %26 = arith.addf %23, %25 : vector<8x8x8xf32>
    %27 = vector.shape_cast %26 : vector<8x8x8xf32> to vector<64x8xf32>
    %c0_13 = arith.constant 0 : index
    %c0_14 = arith.constant 0 : index
    %28 = vector.load %arg6[%c0_13, %c0_14] : memref<8x24xf32, #tpu.memory_space<vmem>>, vector<8x24xf32>
    %cst_15 = arith.constant dense<0.000000e+00> : vector<64x24xf32>
    %29 = tpu.matmul %27, %28, %cst_15 {dimension_numbers = #tpu.dot_dimension_numbers<[1], [0], [0], [1], [0, 0, 1, 1], [], []>} : vector<64x8xf32>, vector<8x24xf32>, vector<64x24xf32> -> vector<64x24xf32>
    %c0_16 = arith.constant 0 : index
    %c0_17 = arith.constant 0 : index
    %30 = vector.load %arg7[%c0_16, %c0_17] : memref<1x24xf32, #tpu.memory_space<vmem>>, vector<1x24xf32>
    %31 = vector.broadcast %30 : vector<1x24xf32> to vector<64x24xf32>
    %32 = arith.addf %29, %31 : vector<64x24xf32>
    %33 = vector.extract_strided_slice %32 {offsets = [0, 0], sizes = [64, 8], strides = [1, 1]} : vector<64x24xf32> to vector<64x8xf32>
    %34 = vector.shape_cast %33 : vector<64x8xf32> to vector<8x8x8xf32>
    %35 = vector.extract_strided_slice %32 {offsets = [0, 8], sizes = [64, 8], strides = [1, 1]} : vector<64x24xf32> to vector<64x8xf32>
    %36 = vector.shape_cast %35 : vector<64x8xf32> to vector<8x8x8xf32>
    %37 = vector.extract_strided_slice %32 {offsets = [0, 16], sizes = [64, 8], strides = [1, 1]} : vector<64x24xf32> to vector<64x8xf32>
    %38 = vector.shape_cast %37 : vector<64x8xf32> to vector<8x8x8xf32>
    "tpu.trace_start"() <{level = 10 : i32, message = "bnd,bmd->bnm"}> : () -> ()
    %cst_18 = arith.constant dense<0.000000e+00> : vector<8x8x8xf32>
    %39 = tpu.matmul %34, %36, %cst_18 {dimension_numbers = #tpu.dot_dimension_numbers<[2], [2], [1], [1], [0, 0, 0, 1, 1, 1], [0], [0]>} : vector<8x8x8xf32>, vector<8x8x8xf32>, vector<8x8x8xf32> -> vector<8x8x8xf32>
    "tpu.trace_stop"() : () -> ()
    %cst_19 = arith.constant 0.353553385 : f32
    %40 = vector.broadcast %cst_19 : f32 to vector<8x8x8xf32>
    %41 = arith.mulf %39, %40 : vector<8x8x8xf32>
    %cst_20 = arith.constant dense<0xFF800000> : vector<8x8xf32>
    %42 = vector.multi_reduction <maximumf>, %41, %cst_20 [2] : vector<8x8x8xf32> to vector<8x8xf32>
    %43 = vector.shape_cast %42 : vector<8x8xf32> to vector<8x8x1xf32>
    %44 = vector.broadcast %43 : vector<8x8x1xf32> to vector<8x8x8xf32>
    %45 = arith.subf %41, %44 : vector<8x8x8xf32>
    %46 = math.exp %45 : vector<8x8x8xf32>
    %cst_21 = arith.constant dense<0.000000e+00> : vector<8x8xf32>
    %47 = vector.multi_reduction <add>, %46, %cst_21 [2] : vector<8x8x8xf32> to vector<8x8xf32>
    %48 = vector.shape_cast %47 : vector<8x8xf32> to vector<8x8x1xf32>
    %49 = tpu.reciprocal %48 {approx = true} : vector<8x8x1xf32> -> vector<8x8x1xf32>
    %50 = vector.broadcast %49 : vector<8x8x1xf32> to vector<8x8x8xf32>
    %51 = arith.mulf %46, %50 : vector<8x8x8xf32>
    "tpu.trace_start"() <{level = 10 : i32, message = "bnm,bmd->bnd"}> : () -> ()
    %cst_22 = arith.constant dense<0.000000e+00> : vector<8x8x8xf32>
    %52 = tpu.matmul %51, %38, %cst_22 {dimension_numbers = #tpu.dot_dimension_numbers<[2], [1], [1], [2], [0, 0, 0, 1, 1, 2], [0], [0]>} : vector<8x8x8xf32>, vector<8x8x8xf32>, vector<8x8x8xf32> -> vector<8x8x8xf32>
    "tpu.trace_stop"() : () -> ()
    %53 = vector.shape_cast %52 : vector<8x8x8xf32> to vector<64x8xf32>
    %c0_23 = arith.constant 0 : index
    %c0_24 = arith.constant 0 : index
    %54 = vector.load %arg8[%c0_23, %c0_24] : memref<8x8xf32, #tpu.memory_space<vmem>>, vector<8x8xf32>
    %cst_25 = arith.constant dense<0.000000e+00> : vector<64x8xf32>
    %55 = tpu.matmul %53, %54, %cst_25 {dimension_numbers = #tpu.dot_dimension_numbers<[1], [0], [0], [1], [0, 0, 1, 1], [], []>} : vector<64x8xf32>, vector<8x8xf32>, vector<64x8xf32> -> vector<64x8xf32>
    %56 = vector.broadcast %2 : vector<1x8xf32> to vector<64x8xf32>
    %57 = arith.addf %55, %56 : vector<64x8xf32>
    %58 = arith.addf %27, %57 : vector<64x8xf32>
    %cst_26 = arith.constant dense<0.000000e+00> : vector<64xf32>
    %59 = vector.multi_reduction <add>, %58, %cst_26 [1] : vector<64x8xf32> to vector<64xf32>
    %60 = vector.shape_cast %59 : vector<64xf32> to vector<64x1xf32>
    %cst_27 = arith.constant 8.000000e+00 : f32
    %61 = vector.broadcast %cst_27 : f32 to vector<64x1xf32>
    %62 = arith.divf %60, %61 : vector<64x1xf32>
    %63 = vector.broadcast %62 : vector<64x1xf32> to vector<64x8xf32>
    %64 = arith.subf %58, %63 : vector<64x8xf32>
    %65 = arith.mulf %64, %64 : vector<64x8xf32>
    %cst_28 = arith.constant dense<0.000000e+00> : vector<64xf32>
    %66 = vector.multi_reduction <add>, %65, %cst_28 [1] : vector<64x8xf32> to vector<64xf32>
    %67 = vector.shape_cast %66 : vector<64xf32> to vector<64x1xf32>
    %cst_29 = arith.constant 8.000000e+00 : f32
    %68 = vector.broadcast %cst_29 : f32 to vector<64x1xf32>
    %69 = arith.divf %67, %68 : vector<64x1xf32>
    %70 = vector.broadcast %62 : vector<64x1xf32> to vector<64x8xf32>
    %71 = arith.subf %58, %70 : vector<64x8xf32>
    %cst_30 = arith.constant 9.99999974E-6 : f32
    %72 = vector.broadcast %cst_30 : f32 to vector<64x1xf32>
    %73 = arith.addf %69, %72 : vector<64x1xf32>
    %74 = math.rsqrt %73 : vector<64x1xf32>
    %75 = vector.broadcast %74 : vector<64x1xf32> to vector<64x8xf32>
    %76 = arith.mulf %71, %75 : vector<64x8xf32>
    %77 = vector.broadcast %4 : vector<1x8xf32> to vector<64x8xf32>
    %78 = arith.mulf %76, %77 : vector<64x8xf32>
    %79 = vector.broadcast %5 : vector<1x8xf32> to vector<64x8xf32>
    %80 = arith.addf %78, %79 : vector<64x8xf32>
    %c0_31 = arith.constant 0 : index
    %c0_32 = arith.constant 0 : index
    %81 = vector.load %arg9[%c0_31, %c0_32] : memref<8x8xf32, #tpu.memory_space<vmem>>, vector<8x8xf32>
    %cst_33 = arith.constant dense<0.000000e+00> : vector<64x8xf32>
    %82 = tpu.matmul %80, %81, %cst_33 {dimension_numbers = #tpu.dot_dimension_numbers<[1], [0], [0], [1], [0, 0, 1, 1], [], []>} : vector<64x8xf32>, vector<8x8xf32>, vector<64x8xf32> -> vector<64x8xf32>
    %c0_34 = arith.constant 0 : index
    %c0_35 = arith.constant 0 : index
    %83 = vector.load %arg10[%c0_34, %c0_35] : memref<1x8xf32, #tpu.memory_space<vmem>>, vector<1x8xf32>
    %84 = vector.broadcast %83 : vector<1x8xf32> to vector<64x8xf32>
    %85 = arith.addf %82, %84 : vector<64x8xf32>
    %cst_36 = arith.constant 0.000000e+00 : f32
    %86 = vector.broadcast %cst_36 : f32 to vector<64x8xf32>
    %87 = arith.maximumf %85, %86 : vector<64x8xf32>
    %c0_37 = arith.constant 0 : index
    %c0_38 = arith.constant 0 : index
    %88 = vector.load %arg11[%c0_37, %c0_38] : memref<8x8xf32, #tpu.memory_space<vmem>>, vector<8x8xf32>
    %cst_39 = arith.constant dense<0.000000e+00> : vector<64x8xf32>
    %89 = tpu.matmul %87, %88, %cst_39 {dimension_numbers = #tpu.dot_dimension_numbers<[1], [0], [0], [1], [0, 0, 1, 1], [], []>} : vector<64x8xf32>, vector<8x8xf32>, vector<64x8xf32> -> vector<64x8xf32>
    %90 = vector.broadcast %3 : vector<1x8xf32> to vector<64x8xf32>
    %91 = arith.addf %89, %90 : vector<64x8xf32>
    %92 = arith.addf %80, %91 : vector<64x8xf32>
    %cst_40 = arith.constant dense<0.000000e+00> : vector<64xf32>
    %93 = vector.multi_reduction <add>, %92, %cst_40 [1] : vector<64x8xf32> to vector<64xf32>
    %94 = vector.shape_cast %93 : vector<64xf32> to vector<64x1xf32>
    %cst_41 = arith.constant 8.000000e+00 : f32
    %95 = vector.broadcast %cst_41 : f32 to vector<64x1xf32>
    %96 = arith.divf %94, %95 : vector<64x1xf32>
    %97 = vector.broadcast %96 : vector<64x1xf32> to vector<64x8xf32>
    %98 = arith.subf %92, %97 : vector<64x8xf32>
    %99 = arith.mulf %98, %98 : vector<64x8xf32>
    %cst_42 = arith.constant dense<0.000000e+00> : vector<64xf32>
    %100 = vector.multi_reduction <add>, %99, %cst_42 [1] : vector<64x8xf32> to vector<64xf32>
    %101 = vector.shape_cast %100 : vector<64xf32> to vector<64x1xf32>
    %cst_43 = arith.constant 8.000000e+00 : f32
    %102 = vector.broadcast %cst_43 : f32 to vector<64x1xf32>
    %103 = arith.divf %101, %102 : vector<64x1xf32>
    %104 = vector.broadcast %96 : vector<64x1xf32> to vector<64x8xf32>
    %105 = arith.subf %92, %104 : vector<64x8xf32>
    %cst_44 = arith.constant 9.99999974E-6 : f32
    %106 = vector.broadcast %cst_44 : f32 to vector<64x1xf32>
    %107 = arith.addf %103, %106 : vector<64x1xf32>
    %108 = math.rsqrt %107 : vector<64x1xf32>
    %109 = vector.broadcast %108 : vector<64x1xf32> to vector<64x8xf32>
    %110 = arith.mulf %105, %109 : vector<64x8xf32>
    %111 = vector.broadcast %6 : vector<1x8xf32> to vector<64x8xf32>
    %112 = arith.mulf %110, %111 : vector<64x8xf32>
    %113 = vector.broadcast %7 : vector<1x8xf32> to vector<64x8xf32>
    %114 = arith.addf %112, %113 : vector<64x8xf32>
    %115 = vector.broadcast %8 : vector<1x8xf32> to vector<64x8xf32>
    %116 = arith.mulf %114, %115 : vector<64x8xf32>
    %cst_45 = arith.constant dense<0.000000e+00> : vector<64xf32>
    %117 = vector.multi_reduction <add>, %116, %cst_45 [1] : vector<64x8xf32> to vector<64xf32>
    %118 = vector.shape_cast %117 : vector<64xf32> to vector<1x64xf32>
    %119 = vector.broadcast %9 : vector<1x1xf32> to vector<1x64xf32>
    %120 = arith.addf %118, %119 : vector<1x64xf32>
    %c0_46 = arith.constant 0 : index
    %c0_47 = arith.constant 0 : index
    %121 = vector.load %arg13[%c0_46, %c0_47] : memref<1x64xf32, #tpu.memory_space<vmem>>, vector<1x64xf32>
    tpu.vector_store %arg13[%c0_46, %c0_47], %120 {strides = array<i32>} : memref<1x64xf32, #tpu.memory_space<vmem>>, vector<1x64xf32>,
    return
  }
  func.func @transform_0(%arg0: i32) -> (i32, i32, i32) {
    %c0_i32 = arith.constant 0 : i32
    %c0_i32_0 = arith.constant 0 : i32
    %c0_i32_1 = arith.constant 0 : i32
    return %arg0, %c0_i32, %c0_i32_0 : i32, i32, i32
  }
  func.func @transform_1(%arg0: i32) -> (i32, i32) {
    %c0_i32 = arith.constant 0 : i32
    %c0_i32_0 = arith.constant 0 : i32
    return %arg0, %c0_i32 : i32, i32
  }
  func.func @transform_2(%arg0: i32) -> (i32, i32) {
    %c0_i32 = arith.constant 0 : i32
    %c0_i32_0 = arith.constant 0 : i32
    %c0_i32_1 = arith.constant 0 : i32
    return %c0_i32, %c0_i32_0 : i32, i32
  }
  func.func @transform_3(%arg0: i32) -> (i32, i32) {
    %c0_i32 = arith.constant 0 : i32
    %c0_i32_0 = arith.constant 0 : i32
    %c0_i32_1 = arith.constant 0 : i32
    return %c0_i32, %c0_i32_0 : i32, i32
  }
  func.func @transform_4(%arg0: i32) -> (i32, i32) {
    %c0_i32 = arith.constant 0 : i32
    %c0_i32_0 = arith.constant 0 : i32
    %c0_i32_1 = arith.constant 0 : i32
    return %c0_i32, %c0_i32_0 : i32, i32
  }
  func.func @transform_5(%arg0: i32) -> (i32, i32) {
    %c0_i32 = arith.constant 0 : i32
    %c0_i32_0 = arith.constant 0 : i32
    %c0_i32_1 = arith.constant 0 : i32
    return %c0_i32, %c0_i32_0 : i32, i32
  }
  func.func @transform_6(%arg0: i32) -> (i32, i32) {
    %c0_i32 = arith.constant 0 : i32
    %c0_i32_0 = arith.constant 0 : i32
    %c0_i32_1 = arith.constant 0 : i32
    return %c0_i32, %c0_i32_0 : i32, i32
  }
  func.func @transform_7(%arg0: i32) -> (i32, i32) {
    %c0_i32 = arith.constant 0 : i32
    %c0_i32_0 = arith.constant 0 : i32
    %c0_i32_1 = arith.constant 0 : i32
    return %c0_i32, %c0_i32_0 : i32, i32
  }
  func.func @transform_8(%arg0: i32) -> (i32, i32) {
    %c0_i32 = arith.constant 0 : i32
    %c0_i32_0 = arith.constant 0 : i32
    %c0_i32_1 = arith.constant 0 : i32
    return %c0_i32, %c0_i32_0 : i32, i32
  }
  func.func @transform_9(%arg0: i32) -> (i32, i32) {
    %c0_i32 = arith.constant 0 : i32
    %c0_i32_0 = arith.constant 0 : i32
    %c0_i32_1 = arith.constant 0 : i32
    return %c0_i32, %c0_i32_0 : i32, i32
  }
  func.func @transform_10(%arg0: i32) -> (i32, i32) {
    %c0_i32 = arith.constant 0 : i32
    %c0_i32_0 = arith.constant 0 : i32
    %c0_i32_1 = arith.constant 0 : i32
    return %c0_i32, %c0_i32_0 : i32, i32
  }
  func.func @transform_11(%arg0: i32) -> (i32, i32) {
    %c0_i32 = arith.constant 0 : i32
    %c0_i32_0 = arith.constant 0 : i32
    %c0_i32_1 = arith.constant 0 : i32
    return %c0_i32, %c0_i32_0 : i32, i32
  }
  func.func @transform_12(%arg0: i32) -> (i32, i32) {
    %c0_i32 = arith.constant 0 : i32
    %c0_i32_0 = arith.constant 0 : i32
    return %arg0, %c0_i32 : i32, i32
  }
}

module attributes {stable_mosaic.version = 11 : i64} {
  func.func @taskformer_kernel(%arg0: i32, %arg1: memref<8x8x4xf32, #tpu.memory_space<vmem>>, %arg2: memref<8x6xf32, #tpu.memory_space<vmem>>, %arg3: memref<8x8xf32, #tpu.memory_space<vmem>>, %arg4: memref<4x8xf32, #tpu.memory_space<vmem>>, %arg5: memref<6x8xf32, #tpu.memory_space<vmem>>, %arg6: memref<8x24xf32, #tpu.memory_space<vmem>>, %arg7: memref<1x24xf32, #tpu.memory_space<vmem>>, %arg8: memref<8x8xf32, #tpu.memory_space<vmem>>, %arg9: memref<8x8xf32, #tpu.memory_space<vmem>>, %arg10: memref<1x8xf32, #tpu.memory_space<vmem>>, %arg11: memref<8x8xf32, #tpu.memory_space<vmem>>, %arg12: memref<9x8xf32, #tpu.memory_space<vmem>>, %arg13: memref<1x64xf32, #tpu.memory_space<vmem>>) attributes {dimension_semantics = [#tpu.dimension_semantics<parallel>], iteration_bounds = array<i64: 1>, scalar_prefetch = 0 : i64, scratch_operands = 0 : i64, tpu.core_type = #tpu.core_type<tc>, window_params = [{transform_indices = @transform_0, window_bounds = array<i64: 8, 8, 4>}, {transform_indices = @transform_1, window_bounds = array<i64: 8, 6>}, {pipeline_mode = #tpu.pipeline_mode<synchronous>, transform_indices = @transform_2, window_bounds = array<i64: 8, 8>}, {pipeline_mode = #tpu.pipeline_mode<synchronous>, transform_indices = @transform_3, window_bounds = array<i64: 4, 8>}, {pipeline_mode = #tpu.pipeline_mode<synchronous>, transform_indices = @transform_4, window_bounds = array<i64: 6, 8>}, {pipeline_mode = #tpu.pipeline_mode<synchronous>, transform_indices = @transform_5, window_bounds = array<i64: 8, 24>}, {pipeline_mode = #tpu.pipeline_mode<synchronous>, transform_indices = @transform_6, window_bounds = array<i64: 1, 24>}, {pipeline_mode = #tpu.pipeline_mode<synchronous>, transform_indices = @transform_7, window_bounds = array<i64: 8, 8>}, {pipeline_mode = #tpu.pipeline_mode<synchronous>, transform_indices = @transform_8, window_bounds = array<i64: 8, 8>}, {pipeline_mode = #tpu.pipeline_mode<synchronous>, transform_indices = @transform_9, window_bounds = array<i64: 1, 8>}, {pipeline_mode = #tpu.pipeline_mode<synchronous>, transform_indices = @transform_10, window_bounds = array<i64: 8, 8>}, {pipeline_mode = #tpu.pipeline_mode<synchronous>, transform_indices = @transform_11, window_bounds = array<i64: 9, 8>}, {transform_indices = @transform_12, window_bounds = array<i64: 1, 64>}]} {
    %c0 = arith.constant 0 : index
    %c0_0 = arith.constant 0 : index
    %0 = vector.load %arg12[%c0, %c0_0] : memref<9x8xf32, #tpu.memory_space<vmem>>, vector<9x8xf32>
    %1 = vector.extract_strided_slice %0 {offsets = [0, 0], sizes = [1, 8], strides = [1, 1]} : vector<9x8xf32> to vector<1x8xf32>
    %2 = vector.extract_strided_slice %0 {offsets = [1, 0], sizes = [1, 8], strides = [1, 1]} : vector<9x8xf32> to vector<1x8xf32>
    %3 = vector.extract_strided_slice %0 {offsets = [2, 0], sizes = [1, 8], strides = [1, 1]} : vector<9x8xf32> to vector<1x8xf32>
    %4 = vector.extract_strided_slice %0 {offsets = [3, 0], sizes = [1, 8], strides = [1, 1]} : vector<9x8xf32> to vector<1x8xf32>
    %5 = vector.extract_strided_slice %0 {offsets = [4, 0], sizes = [1, 8], strides = [1, 1]} : vector<9x8xf32> to vector<1x8xf32>
    %6 = vector.extract_strided_slice %0 {offsets = [5, 0], sizes = [1, 8], strides = [1, 1]} : vector<9x8xf32> to vector<1x8xf32>
    %7 = vector.extract_strided_slice %0 {offsets = [6, 0], sizes = [1, 8], strides = [1, 1]} : vector<9x8xf32> to vector<1x8xf32>
    %8 = vector.extract_strided_slice %0 {offsets = [7, 0], sizes = [1, 8], strides = [1, 1]} : vector<9x8xf32> to vector<1x8xf32>
    %9 = vector.extract_strided_slice %0 {offsets = [8, 0], sizes = [1, 1], strides = [1, 1]} : vector<9x8xf32> to vector<1x1xf32>
    %c0_1 = arith.constant 0 : index
    %c0_2 = arith.constant 0 : index
    %c0_3 = arith.constant 0 : index
    %10 = vector.load %arg1[%c0_1, %c0_2, %c0_3] : memref<8x8x4xf32, #tpu.memory_space<vmem>>, vector<8x8x4xf32>
    %11 = vector.shape_cast %10 : vector<8x8x4xf32> to vector<64x4xf32>
    %c0_4 = arith.constant 0 : index
    %c0_5 = arith.constant 0 : index
    %12 = vector.load %arg4[%c0_4, %c0_5] : memref<4x8xf32, #tpu.memory_space<vmem>>, vector<4x8xf32>
    %cst = arith.constant dense<0.000000e+00> : vector<64x8xf32>
    %13 = tpu.matmul %11, %12, %cst {dimension_numbers = #tpu.dot_dimension_numbers<[1], [0], [0], [1], [0, 0, 1, 1], [], []>} : vector<64x4xf32>, vector<4x8xf32>, vector<64x8xf32> -> vector<64x8xf32>
    %14 = vector.broadcast %1 : vector<1x8xf32> to vector<64x8xf32>
    %15 = arith.addf %13, %14 : vector<64x8xf32>
    %c0_6 = arith.constant 0 : index
    %c0_7 = arith.constant 0 : index
    %16 = vector.load %arg2[%c0_6, %c0_7] : memref<8x6xf32, #tpu.memory_space<vmem>>, vector<8x6xf32>
    %c0_8 = arith.constant 0 : index
    %c0_9 = arith.constant 0 : index
    %17 = vector.load %arg5[%c0_8, %c0_9] : memref<6x8xf32, #tpu.memory_space<vmem>>, vector<6x8xf32>
    %cst_10 = arith.constant dense<0.000000e+00> : vector<8x8xf32>
    %18 = tpu.matmul %16, %17, %cst_10 {dimension_numbers = #tpu.dot_dimension_numbers<[1], [0], [0], [1], [0, 0, 1, 1], [], []>} : vector<8x6xf32>, vector<6x8xf32>, vector<8x8xf32> -> vector<8x8xf32>
    %19 = vector.shape_cast %15 : vector<64x8xf32> to vector<8x8x8xf32>
    %c0_11 = arith.constant 0 : index
    %c0_12 = arith.constant 0 : index
    %20 = vector.load %arg3[%c0_11, %c0_12] : memref<8x8xf32, #tpu.memory_space<vmem>>, vector<8x8xf32>
    %21 = vector.shape_cast %20 : vector<8x8xf32> to vector<1x8x8xf32>
    %22 = vector.broadcast %21 : vector<1x8x8xf32> to vector<8x8x8xf32>
    %23 = arith.addf %19, %22 : vector<8x8x8xf32>
    %24 = vector.shape_cast %18 : vector<8x8xf32> to vector<8x1x8xf32>
    %25 = vector.broadcast %24 : vector<8x1x8xf32> to vector<8x8x8xf32>
    %26 = arith.addf %23, %25 : vector<8x8x8xf32>
    %27 = vector.shape_cast %26 : vector<8x8x8xf32> to vector<64x8xf32>
    %c0_13 = arith.constant 0 : index
    %c0_14 = arith.constant 0 : index
    %28 = vector.load %arg6[%c0_13, %c0_14] : memref<8x24xf32, #tpu.memory_space<vmem>>, vector<8x24xf32>
    %cst_15 = arith.constant dense<0.000000e+00> : vector<64x24xf32>
    %29 = tpu.matmul %27, %28, %cst_15 {dimension_numbers = #tpu.dot_dimension_numbers<[1], [0], [0], [1], [0, 0, 1, 1], [], []>} : vector<64x8xf32>, vector<8x24xf32>, vector<64x24xf32> -> vector<64x24xf32>
    %c0_16 = arith.constant 0 : index
    %c0_17 = arith.constant 0 : index
    %30 = vector.load %arg7[%c0_16, %c0_17] : memref<1x24xf32, #tpu.memory_space<vmem>>, vector<1x24xf32>
    %31 = vector.broadcast %30 : vector<1x24xf32> to vector<64x24xf32>
    %32 = arith.addf %29, %31 : vector<64x24xf32>
    %33 = vector.extract_strided_slice %32 {offsets = [0, 0], sizes = [64, 8], strides = [1, 1]} : vector<64x24xf32> to vector<64x8xf32>
    %34 = vector.shape_cast %33 : vector<64x8xf32> to vector<8x8x8xf32>
    %35 = vector.extract_strided_slice %32 {offsets = [0, 8], sizes = [64, 8], strides = [1, 1]} : vector<64x24xf32> to vector<64x8xf32>
    %36 = vector.shape_cast %35 : vector<64x8xf32> to vector<8x8x8xf32>
    %37 = vector.extract_strided_slice %32 {offsets = [0, 16], sizes = [64, 8], strides = [1, 1]} : vector<64x24xf32> to vector<64x8xf32>
    %38 = vector.shape_cast %37 : vector<64x8xf32> to vector<8x8x8xf32>
    "tpu.trace_start"() <{level = 10 : i32, message = "bnd,bmd->bnm"}> : () -> ()
    %cst_18 = arith.constant dense<0.000000e+00> : vector<8x8x8xf32>
    %39 = tpu.matmul %34, %36, %cst_18 {dimension_numbers = #tpu.dot_dimension_numbers<[2], [2], [1], [1], [0, 0, 0, 1, 1, 1], [0], [0]>} : vector<8x8x8xf32>, vector<8x8x8xf32>, vector<8x8x8xf32> -> vector<8x8x8xf32>
    "tpu.trace_stop"() : () -> ()
    %cst_19 = arith.constant 0.353553385 : f32
    %40 = vector.broadcast %cst_19 : f32 to vector<8x8x8xf32>
    %41 = arith.mulf %39, %40 : vector<8x8x8xf32>
    %cst_20 = arith.constant dense<0xFF800000> : vector<8x8xf32>
    %42 = vector.multi_reduction <maximumf>, %41, %cst_20 [2] : vector<8x8x8xf32> to vector<8x8xf32>
    %43 = vector.shape_cast %42 : vector<8x8xf32> to vector<8x8x1xf32>
    %44 = vector.broadcast %43 : vector<8x8x1xf32> to vector<8x8x8xf32>
    %45 = arith.subf %41, %44 : vector<8x8x8xf32>
    %46 = math.exp %45 : vector<8x8x8xf32>
    %cst_21 = arith.constant dense<0.000000e+00> : vector<8x8xf32>
    %47 = vector.multi_reduction <add>, %46, %cst_21 [2] : vector<8x8x8xf32> to vector<8x8xf32>
    %48 = vector.shape_cast %47 : vector<8x8xf32> to vector<8x8x1xf32>
    %49 = tpu.reciprocal %48 {approx = true} : vector<8x8x1xf32> -> vector<8x8x1xf32>
    %50 = vector.broadcast %49 : vector<8x8x1xf32> to vector<8x8x8xf32>
    %51 = arith.mulf %46, %50 : vector<8x8x8xf32>
    "tpu.trace_start"() <{level = 10 : i32, message = "bnm,bmd->bnd"}> : () -> ()
    %cst_22 = arith.constant dense<0.000000e+00> : vector<8x8x8xf32>
    %52 = tpu.matmul %51, %38, %cst_22 {dimension_numbers = #tpu.dot_dimension_numbers<[2], [1], [1], [2], [0, 0, 0, 1, 1, 2], [0], [0]>} : vector<8x8x8xf32>, vector<8x8x8xf32>, vector<8x8x8xf32> -> vector<8x8x8xf32>
    "tpu.trace_stop"() : () -> ()
    %53 = vector.shape_cast %52 : vector<8x8x8xf32> to vector<64x8xf32>
    %c0_23 = arith.constant 0 : index
    %c0_24 = arith.constant 0 : index
    %54 = vector.load %arg8[%c0_23, %c0_24] : memref<8x8xf32, #tpu.memory_space<vmem>>, vector<8x8xf32>
    %cst_25 = arith.constant dense<0.000000e+00> : vector<64x8xf32>
    %55 = tpu.matmul %53, %54, %cst_25 {dimension_numbers = #tpu.dot_dimension_numbers<[1], [0], [0], [1], [0, 0, 1, 1], [], []>} : vector<64x8xf32>, vector<8x8xf32>, vector<64x8xf32> -> vector<64x8xf32>
    %56 = vector.broadcast %2 : vector<1x8xf32> to vector<64x8xf32>
    %57 = arith.addf %55, %56 : vector<64x8xf32>
    %58 = arith.addf %27, %57 : vector<64x8xf32>
    %cst_26 = arith.constant dense<0.000000e+00> : vector<64xf32>
    %59 = vector.multi_reduction <add>, %58, %cst_26 [1] : vector<64x8xf32> to vector<64xf32>
    %60 = vector.shape_cast %59 : vector<64xf32> to vector<64x1xf32>
    %cst_27 = arith.constant 8.000000e+00 : f32
    %61 = vector.broadcast %cst_27 : f32 to vector<64x1xf32>
    %62 = arith.divf %60, %61 : vector<64x1xf32>
    %63 = vector.broadcast %62 : vector<64x1xf32> to vector<64x8xf32>
    %64 = arith.subf %58, %63 : vector<64x8xf32>
    %65 = arith.mulf %64, %64 : vector<64x8xf32>
    %cst_28 = arith.constant dense<0.000000e+00> : vector<64xf32>
    %66 = vector.multi_reduction <add>, %65, %cst_28 [1] : vector<64x8xf32> to vector<64xf32>
    %67 = vector.shape_cast %66 : vector<64xf32> to vector<64x1xf32>
    %cst_29 = arith.constant 8.000000e+00 : f32
    %68 = vector.broadcast %cst_29 : f32 to vector<64x1xf32>
    %69 = arith.divf %67, %68 : vector<64x1xf32>
    %70 = vector.broadcast %62 : vector<64x1xf32> to vector<64x8xf32>
    %71 = arith.subf %58, %70 : vector<64x8xf32>
    %cst_30 = arith.constant 9.99999974E-6 : f32
    %72 = vector.broadcast %cst_30 : f32 to vector<64x1xf32>
    %73 = arith.addf %69, %72 : vector<64x1xf32>
    %74 = math.rsqrt %73 : vector<64x1xf32>
    %75 = vector.broadcast %74 : vector<64x1xf32> to vector<64x8xf32>
    %76 = arith.mulf %71, %75 : vector<64x8xf32>
    %77 = vector.broadcast %4 : vector<1x8xf32> to vector<64x8xf32>
    %78 = arith.mulf %76, %77 : vector<64x8xf32>
    %79 = vector.broadcast %5 : vector<1x8xf32> to vector<64x8xf32>
    %80 = arith.addf %78, %79 : vector<64x8xf32>
    %c0_31 = arith.constant 0 : index
    %c0_32 = arith.constant 0 : index
    %81 = vector.load %arg9[%c0_31, %c0_32] : memref<8x8xf32, #tpu.memory_space<vmem>>, vector<8x8xf32>
    %cst_33 = arith.constant dense<0.000000e+00> : vector<64x8xf32>
    %82 = tpu.matmul %80, %81, %cst_33 {dimension_numbers = #tpu.dot_dimension_numbers<[1], [0], [0], [1], [0, 0, 1, 1], [], []>} : vector<64x8xf32>, vector<8x8xf32>, vector<64x8xf32> -> vector<64x8xf32>
    %c0_34 = arith.constant 0 : index
    %c0_35 = arith.constant 0 : index
    %83 = vector.load %arg10[%c0_34, %c0_35] : memref<1x8xf32, #tpu.memory_space<vmem>>, vector<1x8xf32>
    %84 = vector.broadcast %83 : vector<1x8xf32> to vector<64x8xf32>
    %85 = arith.addf %82, %84 : vector<64x8xf32>
    %cst_36 = arith.constant 0.000000e+00 : f32
    %86 = vector.broadcast %cst_36 : f32 to vector<64x8xf32>
    %87 = arith.maximumf %85, %86 : vector<64x8xf32>
    %c0_37 = arith.constant 0 : index
    %c0_38 = arith.constant 0 : index
    %88 = vector.load %arg11[%c0_37, %c0_38] : memref<8x8xf32, #tpu.memory_space<vmem>>, vector<8x8xf32>
    %cst_39 = arith.constant dense<0.000000e+00> : vector<64x8xf32>
    %89 = tpu.matmul %87, %88, %cst_39 {dimension_numbers = #tpu.dot_dimension_numbers<[1], [0], [0], [1], [0, 0, 1, 1], [], []>} : vector<64x8xf32>, vector<8x8xf32>, vector<64x8xf32> -> vector<64x8xf32>
    %90 = vector.broadcast %3 : vector<1x8xf32> to vector<64x8xf32>
    %91 = arith.addf %89, %90 : vector<64x8xf32>
    %92 = arith.addf %80, %91 : vector<64x8xf32>
    %cst_40 = arith.constant dense<0.000000e+00> : vector<64xf32>
    %93 = vector.multi_reduction <add>, %92, %cst_40 [1] : vector<64x8xf32> to vector<64xf32>
    %94 = vector.shape_cast %93 : vector<64xf32> to vector<64x1xf32>
    %cst_41 = arith.constant 8.000000e+00 : f32
    %95 = vector.broadcast %cst_41 : f32 to vector<64x1xf32>
    %96 = arith.divf %94, %95 : vector<64x1xf32>
    %97 = vector.broadcast %96 : vector<64x1xf32> to vector<64x8xf32>
    %98 = arith.subf %92, %97 : vector<64x8xf32>
    %99 = arith.mulf %98, %98 : vector<64x8xf32>
    %cst_42 = arith.constant dense<0.000000e+00> : vector<64xf32>
    %100 = vector.multi_reduction <add>, %99, %cst_42 [1] : vector<64x8xf32> to vector<64xf32>
    %101 = vector.shape_cast %100 : vector<64xf32> to vector<64x1xf32>
    %cst_43 = arith.constant 8.000000e+00 : f32
    %102 = vector.broadcast %cst_43 : f32 to vector<64x1xf32>
    %103 = arith.divf %101, %102 : vector<64x1xf32>
    %104 = vector.broadcast %96 : vector<64x1xf32> to vector<64x8xf32>
    %105 = arith.subf %92, %104 : vector<64x8xf32>
    %cst_44 = arith.constant 9.99999974E-6 : f32
    %106 = vector.broadcast %cst_44 : f32 to vector<64x1xf32>
    %107 = arith.addf %103, %106 : vector<64x1xf32>
    %108 = math.rsqrt %107 : vector<64x1xf32>
    %109 = vector.broadcast %108 : vector<64x1xf32> to vector<64x8xf32>
    %110 = arith.mulf %105, %109 : vector<64x8xf32>
    %111 = vector.broadcast %6 : vector<1x8xf32> to vector<64x8xf32>
    %112 = arith.mulf %110, %111 : vector<64x8xf32>
    %113 = vector.broadcast %7 : vector<1x8xf32> to vector<64x8xf32>
    %114 = arith.addf %112, %113 : vector<64x8xf32>
    %115 = vector.broadcast %8 : vector<1x8xf32> to vector<64x8xf32>
    %116 = arith.mulf %114, %115 : vector<64x8xf32>
    %cst_45 = arith.constant dense<0.000000e+00> : vector<64xf32>
    %117 = vector.multi_reduction <add>, %116, %cst_45 [1] : vector<64x8xf32> to vector<64xf32>
    %118 = vector.shape_cast %117 : vector<64xf32> to vector<1x64xf32>
    %119 = vector.broadcast %9 : vector<1x1xf32> to vector<1x64xf32>
    %120 = arith.addf %118, %119 : vector<1x64xf32>
    %c0_46 = arith.constant 0 : index
    %c0_47 = arith.constant 0 : index
    %121 = vector.load %arg13[%c0_46, %c0_47] : memref<1x64xf32, #tpu.memory_space<vmem>>, vector<1x64xf32>
    tpu.vector_store %arg13[%c0_46, %c0_47], %120 {strides = array<i32>} : memref<1x64xf32, #tpu.memory_space<vmem>>, vector<1x64xf32>,
    return
  }
  func.func @transform_0(%arg0: i32) -> (i32, i32, i32) {
    %c0_i32 = arith.constant 0 : i32
    %c0_i32_0 = arith.constant 0 : i32
    %c0_i32_1 = arith.constant 0 : i32
    return %arg0, %c0_i32, %c0_i32_0 : i32, i32, i32
  }
  func.func @transform_1(%arg0: i32) -> (i32, i32) {
    %c0_i32 = arith.constant 0 : i32
    %c0_i32_0 = arith.constant 0 : i32
    return %arg0, %c0_i32 : i32, i32
  }
  func.func @transform_2(%arg0: i32) -> (i32, i32) {
    %c0_i32 = arith.constant 0 : i32
    %c0_i32_0 = arith.constant 0 : i32
    %c0_i32_1 = arith.constant 0 : i32
    return %c0_i32, %c0_i32_0 : i32, i32
  }
  func.func @transform_3(%arg0: i32) -> (i32, i32) {
    %c0_i32 = arith.constant 0 : i32
    %c0_i32_0 = arith.constant 0 : i32
    %c0_i32_1 = arith.constant 0 : i32
    return %c0_i32, %c0_i32_0 : i32, i32
  }
  func.func @transform_4(%arg0: i32) -> (i32, i32) {
    %c0_i32 = arith.constant 0 : i32
    %c0_i32_0 = arith.constant 0 : i32
    %c0_i32_1 = arith.constant 0 : i32
    return %c0_i32, %c0_i32_0 : i32, i32
  }
  func.func @transform_5(%arg0: i32) -> (i32, i32) {
    %c0_i32 = arith.constant 0 : i32
    %c0_i32_0 = arith.constant 0 : i32
    %c0_i32_1 = arith.constant 0 : i32
    return %c0_i32, %c0_i32_0 : i32, i32
  }
  func.func @transform_6(%arg0: i32) -> (i32, i32) {
    %c0_i32 = arith.constant 0 : i32
    %c0_i32_0 = arith.constant 0 : i32
    %c0_i32_1 = arith.constant 0 : i32
    return %c0_i32, %c0_i32_0 : i32, i32
  }
  func.func @transform_7(%arg0: i32) -> (i32, i32) {
    %c0_i32 = arith.constant 0 : i32
    %c0_i32_0 = arith.constant 0 : i32
    %c0_i32_1 = arith.constant 0 : i32
    return %c0_i32, %c0_i32_0 : i32, i32
  }
  func.func @transform_8(%arg0: i32) -> (i32, i32) {
    %c0_i32 = arith.constant 0 : i32
    %c0_i32_0 = arith.constant 0 : i32
    %c0_i32_1 = arith.constant 0 : i32
    return %c0_i32, %c0_i32_0 : i32, i32
  }
  func.func @transform_9(%arg0: i32) -> (i32, i32) {
    %c0_i32 = arith.constant 0 : i32
    %c0_i32_0 = arith.constant 0 : i32
    %c0_i32_1 = arith.constant 0 : i32
    return %c0_i32, %c0_i32_0 : i32, i32
  }
  func.func @transform_10(%arg0: i32) -> (i32, i32) {
    %c0_i32 = arith.constant 0 : i32
    %c0_i32_0 = arith.constant 0 : i32
    %c0_i32_1 = arith.constant 0 : i32
    return %c0_i32, %c0_i32_0 : i32, i32
  }
  func.func @transform_11(%arg0: i32) -> (i32, i32) {
    %c0_i32 = arith.constant 0 : i32
    %c0_i32_0 = arith.constant 0 : i32
    %c0_i32_1 = arith.constant 0 : i32
    return %c0_i32, %c0_i32_0 : i32, i32
  }
  func.func @transform_12(%arg0: i32) -> (i32, i32) {
    %c0_i32 = arith.constant 0 : i32
    %c0_i32_0 = arith.constant 0 : i32
    return %arg0, %c0_i32 : i32, i32
  }
}

</mosaic_0001>

<llo_original>
// kernel: tpu_custom_call.1
$region0: #{tpu_custom_call.1}
  #allocation0 [shape = 'u32[]', space=smem, size = 0x4, offset = 0x4, fixed_abs, tag = 'smem constant byte address 0x4 - core index']
  #allocation1 [shape = 'u32[144,128]{1,0:T(1,128)}', space=vmem, size = 0x12000, scoped, tag = 'internal scratch']
  %s0 = inlined_call_operand.vmem [shape: f32[8,8,4], index: 0, kind: input, shape index: {}]
  %s1 = inlined_call_operand.vmem [shape: f32[8,6], index: 1, kind: input, shape index: {}]
  %s2 = inlined_call_operand.vmem [shape: f32[8,8], index: 2, kind: input, shape index: {}]
  %s3 = inlined_call_operand.vmem [shape: f32[4,8], index: 3, kind: input, shape index: {}]
  %s4 = inlined_call_operand.vmem [shape: f32[6,8], index: 4, kind: input, shape index: {}]
  %s5 = inlined_call_operand.vmem [shape: f32[8,24], index: 5, kind: input, shape index: {}]
  %s6 = inlined_call_operand.vmem [shape: f32[1,24], index: 6, kind: input, shape index: {}]
  %s7 = inlined_call_operand.vmem [shape: f32[8,8], index: 7, kind: input, shape index: {}]
  %s8 = inlined_call_operand.vmem [shape: f32[8,8], index: 8, kind: input, shape index: {}]
  %s9 = inlined_call_operand.vmem [shape: f32[1,8], index: 9, kind: input, shape index: {}]
  %s10 = inlined_call_operand.vmem [shape: f32[8,8], index: 10, kind: input, shape index: {}]
  %s11 = inlined_call_operand.vmem [shape: f32[9,8], index: 11, kind: input, shape index: {}]
  %s12 = inlined_call_operand.hbm [shape: f32[1,64], index: 12, kind: output, shape index: {}]
  %s13 = sld [smem:[#allocation0]]
  $region58: #{tpu_custom_call.1} parent=0
    _
  %s15 = ssub.s32 1, %s13
  %s16 = scalar_select 0, %s15, %s13
  $region1: #{tpu_custom_call.1} parent=0
    #allocation2 [shape = 'u8[512]{0}', space=vmem, size = 0x400, scoped, tag = 'output window, operand 0, single buffered']
    #allocation3 [shape = 's32[1]{0}', space=sflag, size = 0x4, scoped, tag = 'scoped memory for tpu_custom_call.1']
    %17 = vsyncpa [#allocation3], 0
    // Predicated region
    $region2: #{tpu_custom_call.1} parent=1 // pred_check
      _
    $region3: #{tpu_custom_call.1} parent=1 // pred_check_branch
      %19 = sbr.rel (0) target = $region5
    $region4: #{tpu_custom_call.1} parent=1 // pred_region
      _
    $region5: #{tpu_custom_call.1} parent=1 // pred_fallthru
      _
    // Predicated region
    $region6: #{tpu_custom_call.1} parent=1 // pred_check
      _
    $region7: #{tpu_custom_call.1} parent=1 // pred_check_branch
      %21 = sbr.rel (0) target = $region9
    $region8: #{tpu_custom_call.1} parent=1 // pred_region
      _
    $region9: #{tpu_custom_call.1} parent=1 // pred_fallthru
      _
    // Predicated region
    $region10: #{tpu_custom_call.1} parent=1 // pred_check
      _
    $region11: #{tpu_custom_call.1} parent=1 // pred_check_branch
      %23 = sbr.rel (0) target = $region13
    $region12: #{tpu_custom_call.1} parent=1 // pred_region
      _
    $region13: #{tpu_custom_call.1} parent=1 // pred_fallthru
      _
    // Predicated region
    $region14: #{tpu_custom_call.1} parent=1 // pred_check
      _
    $region15: #{tpu_custom_call.1} parent=1 // pred_check_branch
      %25 = sbr.rel (0) target = $region17
    $region16: #{tpu_custom_call.1} parent=1 // pred_region
      _
    $region17: #{tpu_custom_call.1} parent=1 // pred_fallthru
      _
    // Predicated region
    $region18: #{tpu_custom_call.1} parent=1 // pred_check
      _
    $region19: #{tpu_custom_call.1} parent=1 // pred_check_branch
      %27 = sbr.rel (0) target = $region21
    $region20: #{tpu_custom_call.1} parent=1 // pred_region
      _
    $region21: #{tpu_custom_call.1} parent=1 // pred_fallthru
      _
    // Predicated region
    $region22: #{tpu_custom_call.1} parent=1 // pred_check
      _
    $region23: #{tpu_custom_call.1} parent=1 // pred_check_branch
      %29 = sbr.rel (0) target = $region25
    $region24: #{tpu_custom_call.1} parent=1 // pred_region
      _
    $region25: #{tpu_custom_call.1} parent=1 // pred_fallthru
      _
    // Predicated region
    $region26: #{tpu_custom_call.1} parent=1 // pred_check
      _
    $region27: #{tpu_custom_call.1} parent=1 // pred_check_branch
      %31 = sbr.rel (0) target = $region29
    $region28: #{tpu_custom_call.1} parent=1 // pred_region
      _
    $region29: #{tpu_custom_call.1} parent=1 // pred_fallthru
      _
    // Predicated region
    $region30: #{tpu_custom_call.1} parent=1 // pred_check
      _
    $region31: #{tpu_custom_call.1} parent=1 // pred_check_branch
      %33 = sbr.rel (0) target = $region33
    $region32: #{tpu_custom_call.1} parent=1 // pred_region
      _
    $region33: #{tpu_custom_call.1} parent=1 // pred_fallthru
      _
    // Predicated region
    $region34: #{tpu_custom_call.1} parent=1 // pred_check
      _
    $region35: #{tpu_custom_call.1} parent=1 // pred_check_branch
      %35 = sbr.rel (0) target = $region37
    $region36: #{tpu_custom_call.1} parent=1 // pred_region
      _
    $region37: #{tpu_custom_call.1} parent=1 // pred_fallthru
      _
    // Predicated region
    $region38: #{tpu_custom_call.1} parent=1 // pred_check
      _
    $region39: #{tpu_custom_call.1} parent=1 // pred_check_branch
      %37 = sbr.rel (0) target = $region41
    $region40: #{tpu_custom_call.1} parent=1 // pred_region
      _
    $region41: #{tpu_custom_call.1} parent=1 // pred_fallthru
      _
    // Predicated region
    $region42: #{tpu_custom_call.1} parent=1 // pred_check
      _
    $region43: #{tpu_custom_call.1} parent=1 // pred_check_branch
      %39 = sbr.rel (0) target = $region45
    $region44: #{tpu_custom_call.1} parent=1 // pred_region
      _
    $region45: #{tpu_custom_call.1} parent=1 // pred_fallthru
      _
    // Predicated region
    $region46: #{tpu_custom_call.1} parent=1 // pred_check
      _
    $region47: #{tpu_custom_call.1} parent=1 // pred_check_branch
      %41 = sbr.rel (0) target = $region49
    $region48: #{tpu_custom_call.1} parent=1 // pred_region
      _
    $region49: #{tpu_custom_call.1} parent=1 // pred_fallthru
      _
    %v42 = vld [vmem:[%s11] sm:$0xff]
    %v43 = vld [vmem:[%s11 + $0x8] sm:$0x1]
    %v44 = vld [vmem:[%s0] sm:$0xff]
    %v45 = vld [vmem:[%s0 + $0x8] sm:$0xff]
    %v46 = vld [vmem:[%s0 + $0x10] sm:$0xff]
    %v47 = vld [vmem:[%s0 + $0x18] sm:$0xff]
    %v48 = vld [vmem:[%s0 + $0x20] sm:$0xff]
    %v49 = vld [vmem:[%s0 + $0x28] sm:$0xff]
    %v50 = vld [vmem:[%s0 + $0x30] sm:$0xff]
    %v51 = vld [vmem:[%s0 + $0x38] sm:$0xff]
    %v52 = vld [vmem:[%s3] sm:$0xf]
    %v53 = vlaneseq
    %v54 = vshrl.u32 %v53, 7
    %v55 = vsub.s32 0, %v54
    %v56 = vrot.slane %v42, %v55
    %vm57 = vcmask 31744
    %v59 = vsel %vm57, %v44, 0
    %v62 = vsel %vm57, %v45, 0
    %v65 = vsel %vm57, %v46, 0
    %v68 = vsel %vm57, %v47, 0
    %v71 = vsel %vm57, %v48, 0
    %v74 = vsel %vm57, %v49, 0
    %v77 = vsel %vm57, %v50, 0
    %v80 = vsel %vm57, %v51, 0
    %vm82 = vcmask 1043456
    %v84 = vsel %vm82, %v52, 0
    %86 = vmatprep.subr.mxu0 0.0
    %87 = vmatpush1.msra.mxu0 0.0
    %88 = vmatprep.subr.mxu0 0.0
    %89 = vmatpush1.msra.mxu0 0.0
    %90 = vmatprep.subr.mxu0 0.0
    %91 = vmatpush1.msra.mxu0 0.0
    %92 = vmatprep.subr.mxu0 0.0
    %93 = vmatpush1.msra.mxu0 0.0
    %94 = vmatprep.subr.mxu0 0.0
    %95 = vmatpush1.msra.mxu0 0.0
    %96 = vmatprep.subr.mxu0 0.0
    %97 = vmatpush1.msra.mxu0 0.0
    %98 = vmatprep.subr.mxu0 0.0
    %99 = vmatpush1.msra.mxu0 0.0
    %100 = vmatprep.subr.mxu0 0.0
    %101 = vmatpush1.msra.mxu0 0.0
    %102 = vmatprep.subr.mxu0 0.0
    %103 = vmatpush1.msra.mxu0 0.0
    %104 = vmatprep.subr.mxu0 0.0
    %105 = vmatpush1.msra.mxu0 0.0
    %106 = vmatprep.subr.mxu0 0.0
    %107 = vmatpush1.msra.mxu0 0.0
    %108 = vmatprep.subr.mxu0 0.0
    %109 = vmatpush1.msra.mxu0 0.0
    %110 = vmatprep.subr.mxu0 0.0
    %111 = vmatpush1.msra.mxu0 0.0
    %112 = vmatprep.subr.mxu0 0.0
    %113 = vmatpush1.msra.mxu0 0.0
    %114 = vmatprep.subr.mxu0 0.0
    %115 = vmatpush1.msra.mxu0 0.0
    %116 = vmatprep.subr.mxu0 0.0
    %117 = vmatpush1.msra.mxu0 %v84
    %118 = vmatprep.subr.mxu0 0.0
    %119 = vmatpush2.msra.mxu0 0.0
    %120 = vmatprep.subr.mxu0 0.0
    %121 = vmatpush2.msra.mxu0 0.0
    %122 = vmatprep.subr.mxu0 0.0
    %123 = vmatpush2.msra.mxu0 0.0
    %124 = vmatprep.subr.mxu0 0.0
    %125 = vmatpush2.msra.mxu0 0.0
    %126 = vmatprep.subr.mxu0 0.0
    %127 = vmatpush2.msra.mxu0 0.0
    %128 = vmatprep.subr.mxu0 0.0
    %129 = vmatpush2.msra.mxu0 0.0
    %130 = vmatprep.subr.mxu0 0.0
    %131 = vmatpush2.msra.mxu0 0.0
    %132 = vmatprep.subr.mxu0 0.0
    %133 = vmatpush2.msra.mxu0 0.0
    %134 = vmatprep.subr.mxu0 0.0
    %135 = vmatpush2.msra.mxu0 0.0
    %136 = vmatprep.subr.mxu0 0.0
    %137 = vmatpush2.msra.mxu0 0.0
    %138 = vmatprep.subr.mxu0 0.0
    %139 = vmatpush2.msra.mxu0 0.0
    %140 = vmatprep.subr.mxu0 0.0
    %141 = vmatpush2.msra.mxu0 0.0
    %142 = vmatprep.subr.mxu0 0.0
    %143 = vmatpush2.msra.mxu0 0.0
    %144 = vmatprep.subr.mxu0 0.0
    %145 = vmatpush2.msra.mxu0 0.0
    %146 = vmatprep.subr.mxu0 0.0
    %147 = vmatpush2.msra.mxu0 0.0
    %148 = vmatprep.subr.mxu0 0.0
    %149 = vmatpush2.msra.mxu0 0.0
    %150 = vmatprep.mubr.f32.mxu0 0.0
    %151 = vmatmul.mubr.f32.gmra.mxu0 %v59
    %v152 = vpop.f32.mrf.mxu0
    %v153 = vadd.f32 %v56, %v152
    %v154 = vpop.f32.mrf.mxu0
    %155 = vmatprep.mubr.f32.mxu0 0.0
    %156 = vmatmul.mubr.f32.gmra.mxu0 %v62
    %v157 = vpop.f32.mrf.mxu0
    %v158 = vadd.f32 %v56, %v157
    %v159 = vpop.f32.mrf.mxu0
    %160 = vmatprep.mubr.f32.mxu0 0.0
    %161 = vmatmul.mubr.f32.gmra.mxu0 %v65
    %v162 = vpop.f32.mrf.mxu0
    %v163 = vadd.f32 %v56, %v162
    %v164 = vpop.f32.mrf.mxu0
    %165 = vmatprep.mubr.f32.mxu0 0.0
    %166 = vmatmul.mubr.f32.gmra.mxu0 %v68
    %v167 = vpop.f32.mrf.mxu0
    %v168 = vadd.f32 %v56, %v167
    %v169 = vpop.f32.mrf.mxu0
    %170 = vmatprep.mubr.f32.mxu0 0.0
    %171 = vmatmul.mubr.f32.gmra.mxu0 %v71
    %v172 = vpop.f32.mrf.mxu0
    %v173 = vadd.f32 %v56, %v172
    %v174 = vpop.f32.mrf.mxu0
    %175 = vmatprep.mubr.f32.mxu0 0.0
    %176 = vmatmul.mubr.f32.gmra.mxu0 %v74
    %v177 = vpop.f32.mrf.mxu0
    %v178 = vadd.f32 %v56, %v177
    %v179 = vpop.f32.mrf.mxu0
    %180 = vmatprep.mubr.f32.mxu0 0.0
    %181 = vmatmul.mubr.f32.gmra.mxu0 %v77
    %v182 = vpop.f32.mrf.mxu0
    %v183 = vadd.f32 %v56, %v182
    %v184 = vpop.f32.mrf.mxu0
    %185 = vmatprep.mubr.f32.mxu0 0.0
    %186 = vmatmul.mubr.f32.gmra.mxu0 %v80
    %v187 = vpop.f32.mrf.mxu0
    %v188 = vadd.f32 %v56, %v187
    %v189 = vpop.f32.mrf.mxu0
    %190 = vdwg.mxu0
    %v191 = vld [vmem:[%s1] sm:$0xff]
    %v192 = vld [vmem:[%s4] sm:$0x3f]
    %vm193 = vcmask 48128
    %v195 = vsel %vm193, %v191, 0
    %vm197 = vcmask 1045504
    %v199 = vsel %vm197, %v192, 0
    %201 = vmatprep.subr.mxu0 0.0
    %202 = vmatpush1.msra.mxu0 0.0
    %203 = vmatprep.subr.mxu0 0.0
    %204 = vmatpush1.msra.mxu0 0.0
    %205 = vmatprep.subr.mxu0 0.0
    %206 = vmatpush1.msra.mxu0 0.0
    %207 = vmatprep.subr.mxu0 0.0
    %208 = vmatpush1.msra.mxu0 0.0
    %209 = vmatprep.subr.mxu0 0.0
    %210 = vmatpush1.msra.mxu0 0.0
    %211 = vmatprep.subr.mxu0 0.0
    %212 = vmatpush1.msra.mxu0 0.0
    %213 = vmatprep.subr.mxu0 0.0
    %214 = vmatpush1.msra.mxu0 0.0
    %215 = vmatprep.subr.mxu0 0.0
    %216 = vmatpush1.msra.mxu0 0.0
    %217 = vmatprep.subr.mxu0 0.0
    %218 = vmatpush1.msra.mxu0 0.0
    %219 = vmatprep.subr.mxu0 0.0
    %220 = vmatpush1.msra.mxu0 0.0
    %221 = vmatprep.subr.mxu0 0.0
    %222 = vmatpush1.msra.mxu0 0.0
    %223 = vmatprep.subr.mxu0 0.0
    %224 = vmatpush1.msra.mxu0 0.0
    %225 = vmatprep.subr.mxu0 0.0
    %226 = vmatpush1.msra.mxu0 0.0
    %227 = vmatprep.subr.mxu0 0.0
    %228 = vmatpush1.msra.mxu0 0.0
    %229 = vmatprep.subr.mxu0 0.0
    %230 = vmatpush1.msra.mxu0 0.0
    %231 = vmatprep.subr.mxu0 0.0
    %232 = vmatpush1.msra.mxu0 %v199
    %233 = vmatprep.subr.mxu0 0.0
    %234 = vmatpush2.msra.mxu0 0.0
    %235 = vmatprep.subr.mxu0 0.0
    %236 = vmatpush2.msra.mxu0 0.0
    %237 = vmatprep.subr.mxu0 0.0
    %238 = vmatpush2.msra.mxu0 0.0
    %239 = vmatprep.subr.mxu0 0.0
    %240 = vmatpush2.msra.mxu0 0.0
    %241 = vmatprep.subr.mxu0 0.0
    %242 = vmatpush2.msra.mxu0 0.0
    %243 = vmatprep.subr.mxu0 0.0
    %244 = vmatpush2.msra.mxu0 0.0
    %245 = vmatprep.subr.mxu0 0.0
    %246 = vmatpush2.msra.mxu0 0.0
    %247 = vmatprep.subr.mxu0 0.0
    %248 = vmatpush2.msra.mxu0 0.0
    %249 = vmatprep.subr.mxu0 0.0
    %250 = vmatpush2.msra.mxu0 0.0
    %251 = vmatprep.subr.mxu0 0.0
    %252 = vmatpush2.msra.mxu0 0.0
    %253 = vmatprep.subr.mxu0 0.0
    %254 = vmatpush2.msra.mxu0 0.0
    %255 = vmatprep.subr.mxu0 0.0
    %256 = vmatpush2.msra.mxu0 0.0
    %257 = vmatprep.subr.mxu0 0.0
    %258 = vmatpush2.msra.mxu0 0.0
    %259 = vmatprep.subr.mxu0 0.0
    %260 = vmatpush2.msra.mxu0 0.0
    %261 = vmatprep.subr.mxu0 0.0
    %262 = vmatpush2.msra.mxu0 0.0
    %263 = vmatprep.subr.mxu0 0.0
    %264 = vmatpush2.msra.mxu0 0.0
    %265 = vmatprep.mubr.f32.mxu0 0.0
    %266 = vmatmul.mubr.f32.gmra.mxu0 %v195
    %v267 = vpop.f32.mrf.mxu0
    %v268 = vadd.f32 0.0, %v267
    %v269 = vpop.f32.mrf.mxu0
    %270 = vdwg.mxu0
    %v271 = vld [vmem:[%s2] sm:$0xff]
    %v272 = vadd.f32 %v153, %v271
    %v273 = vadd.f32 %v158, %v271
    %v274 = vadd.f32 %v163, %v271
    %v275 = vadd.f32 %v168, %v271
    %v276 = vadd.f32 %v173, %v271
    %v277 = vadd.f32 %v178, %v271
    %v278 = vadd.f32 %v183, %v271
    %v279 = vadd.f32 %v188, %v271
    %v281 = vcombine.high %v268, %v268
    %v283 = vunpack.c.l.s4 1966171168
    %v284 = vunpack.c.0.s8 %v283
    %v285 = vlaneseq
    %v286 = vshrl.u32 %v285, 7
    %v287 = vsub.s32 %v284, %v286
    %v288 = vrot.slane %v268, %v287
    %v290 = vunpack.c.l.s4 1966171168
    %v291 = vunpack.c.0.s8 %v290
    %v292 = vlaneseq
    %v293 = vshrl.u32 %v292, 7
    %v294 = vsub.s32 %v291, %v293
    %v295 = vrot.slane %v281, %v294
    %v296 = vcombine.high %v288, %v288
    %v297 = vcombine.high %v295, %v295
    %v299 = vunpack.c.l.s4 1966171168
    %v300 = vunpack.c.0.s8 %v299
    %v301 = vlaneseq
    %v302 = vshrl.u32 %v301, 7
    %v303 = vsub.s32 %v300, %v302
    %v304 = vrot.slane %v288, %v303
    %v306 = vunpack.c.l.s4 1966171168
    %v307 = vunpack.c.0.s8 %v306
    %v308 = vlaneseq
    %v309 = vshrl.u32 %v308, 7
    %v310 = vsub.s32 %v307, %v309
    %v311 = vrot.slane %v295, %v310
    %v313 = vunpack.c.l.s4 1966171168
    %v314 = vunpack.c.0.s8 %v313
    %v315 = vlaneseq
    %v316 = vshrl.u32 %v315, 7
    %v317 = vsub.s32 %v314, %v316
    %v318 = vrot.slane %v296, %v317
    %v320 = vunpack.c.l.s4 1966171168
    %v321 = vunpack.c.0.s8 %v320
    %v322 = vlaneseq
    %v323 = vshrl.u32 %v322, 7
    %v324 = vsub.s32 %v321, %v323
    %v325 = vrot.slane %v297, %v324
    %v326 = vcombine.high %v304, %v304
    %v327 = vcombine.high %v311, %v311
    %v328 = vcombine.high %v318, %v318
    %v329 = vcombine.high %v325, %v325
    %v330 = vlaneseq
    %v331 = vshrl.u32 %v330, 7
    %v332 = vsub.s32 0, %v331
    %v333 = vrot.slane %v304, %v332
    %v334 = vlaneseq
    %v335 = vshrl.u32 %v334, 7
    %v336 = vsub.s32 0, %v335
    %v337 = vrot.slane %v318, %v336
    %v338 = vlaneseq
    %v339 = vshrl.u32 %v338, 7
    %v340 = vsub.s32 0, %v339
    %v341 = vrot.slane %v326, %v340
    %v342 = vlaneseq
    %v343 = vshrl.u32 %v342, 7
    %v344 = vsub.s32 0, %v343
    %v345 = vrot.slane %v328, %v344
    %v346 = vlaneseq
    %v347 = vshrl.u32 %v346, 7
    %v348 = vsub.s32 0, %v347
    %v349 = vrot.slane %v311, %v348
    %v350 = vlaneseq
    %v351 = vshrl.u32 %v350, 7
    %v352 = vsub.s32 0, %v351
    %v353 = vrot.slane %v325, %v352
    %v354 = vlaneseq
    %v355 = vshrl.u32 %v354, 7
    %v356 = vsub.s32 0, %v355
    %v357 = vrot.slane %v327, %v356
    %v358 = vlaneseq
    %v359 = vshrl.u32 %v358, 7
    %v360 = vsub.s32 0, %v359
    %v361 = vrot.slane %v329, %v360
    %v370 = vadd.f32 %v272, %v333
    %v371 = vadd.f32 %v273, %v337
    %v372 = vadd.f32 %v274, %v341
    %v373 = vadd.f32 %v275, %v345
    %v374 = vadd.f32 %v276, %v349
    %v375 = vadd.f32 %v277, %v353
    %v376 = vadd.f32 %v278, %v357
    %v377 = vadd.f32 %v279, %v361
    %v378 = vld [vmem:[%s5] sm:$0xff]
    %v379 = vld [vmem:[%s6] sm:$0x1]
    %v381 = vlaneseq
    %v382 = vshrl.u32 %v381, 7
    %v383 = vsub.s32 0, %v382
    %v384 = vrot.slane %v379, %v383
    %vm386 = vcmask 64512
    %v388 = vsel %vm386, %v370, 0
    %v391 = vsel %vm386, %v371, 0
    %v394 = vsel %vm386, %v372, 0
    %v397 = vsel %vm386, %v373, 0
    %v400 = vsel %vm386, %v374, 0
    %v403 = vsel %vm386, %v375, 0
    %v406 = vsel %vm386, %v376, 0
    %v409 = vsel %vm386, %v377, 0
    %411 = vmatprep.subr.mxu0 0.0
    %412 = vmatpush1.msra.mxu0 0.0
    %413 = vmatprep.subr.mxu0 0.0
    %414 = vmatpush1.msra.mxu0 0.0
    %415 = vmatprep.subr.mxu0 0.0
    %416 = vmatpush1.msra.mxu0 0.0
    %417 = vmatprep.subr.mxu0 0.0
    %418 = vmatpush1.msra.mxu0 0.0
    %419 = vmatprep.subr.mxu0 0.0
    %420 = vmatpush1.msra.mxu0 0.0
    %421 = vmatprep.subr.mxu0 0.0
    %422 = vmatpush1.msra.mxu0 0.0
    %423 = vmatprep.subr.mxu0 0.0
    %424 = vmatpush1.msra.mxu0 0.0
    %425 = vmatprep.subr.mxu0 0.0
    %426 = vmatpush1.msra.mxu0 0.0
    %427 = vmatprep.subr.mxu0 0.0
    %428 = vmatpush1.msra.mxu0 0.0
    %429 = vmatprep.subr.mxu0 0.0
    %430 = vmatpush1.msra.mxu0 0.0
    %431 = vmatprep.subr.mxu0 0.0
    %432 = vmatpush1.msra.mxu0 0.0
    %433 = vmatprep.subr.mxu0 0.0
    %434 = vmatpush1.msra.mxu0 0.0
    %435 = vmatprep.subr.mxu0 0.0
    %436 = vmatpush1.msra.mxu0 0.0
    %437 = vmatprep.subr.mxu0 0.0
    %438 = vmatpush1.msra.mxu0 0.0
    %439 = vmatprep.subr.mxu0 0.0
    %440 = vmatpush1.msra.mxu0 0.0
    %441 = vmatprep.subr.mxu0 0.0
    %442 = vmatpush1.msra.mxu0 %v378
    %443 = vmatprep.subr.mxu0 0.0
    %444 = vmatpush2.msra.mxu0 0.0
    %445 = vmatprep.subr.mxu0 0.0
    %446 = vmatpush2.msra.mxu0 0.0
    %447 = vmatprep.subr.mxu0 0.0
    %448 = vmatpush2.msra.mxu0 0.0
    %449 = vmatprep.subr.mxu0 0.0
    %450 = vmatpush2.msra.mxu0 0.0
    %451 = vmatprep.subr.mxu0 0.0
    %452 = vmatpush2.msra.mxu0 0.0
    %453 = vmatprep.subr.mxu0 0.0
    %454 = vmatpush2.msra.mxu0 0.0
    %455 = vmatprep.subr.mxu0 0.0
    %456 = vmatpush2.msra.mxu0 0.0
    %457 = vmatprep.subr.mxu0 0.0
    %458 = vmatpush2.msra.mxu0 0.0
    %459 = vmatprep.subr.mxu0 0.0
    %460 = vmatpush2.msra.mxu0 0.0
    %461 = vmatprep.subr.mxu0 0.0
    %462 = vmatpush2.msra.mxu0 0.0
    %463 = vmatprep.subr.mxu0 0.0
    %464 = vmatpush2.msra.mxu0 0.0
    %465 = vmatprep.subr.mxu0 0.0
    %466 = vmatpush2.msra.mxu0 0.0
    %467 = vmatprep.subr.mxu0 0.0
    %468 = vmatpush2.msra.mxu0 0.0
    %469 = vmatprep.subr.mxu0 0.0
    %470 = vmatpush2.msra.mxu0 0.0
    %471 = vmatprep.subr.mxu0 0.0
    %472 = vmatpush2.msra.mxu0 0.0
    %473 = vmatprep.subr.mxu0 0.0
    %474 = vmatpush2.msra.mxu0 0.0
    %475 = vmatprep.mubr.f32.mxu0 0.0
    %476 = vmatmul.mubr.f32.gmra.mxu0 %v388
    %v477 = vpop.f32.mrf.mxu0
    %v478 = vadd.f32 %v384, %v477
    %v479 = vpop.f32.mrf.mxu0
    %480 = vmatprep.mubr.f32.mxu0 0.0
    %481 = vmatmul.mubr.f32.gmra.mxu0 %v391
    %v482 = vpop.f32.mrf.mxu0
    %v483 = vadd.f32 %v384, %v482
    %v484 = vpop.f32.mrf.mxu0
    %485 = vmatprep.mubr.f32.mxu0 0.0
    %486 = vmatmul.mubr.f32.gmra.mxu0 %v394
    %v487 = vpop.f32.mrf.mxu0
    %v488 = vadd.f32 %v384, %v487
    %v489 = vpop.f32.mrf.mxu0
    %490 = vmatprep.mubr.f32.mxu0 0.0
    %491 = vmatmul.mubr.f32.gmra.mxu0 %v397
    %v492 = vpop.f32.mrf.mxu0
    %v493 = vadd.f32 %v384, %v492
    %v494 = vpop.f32.mrf.mxu0
    %495 = vmatprep.mubr.f32.mxu0 0.0
    %496 = vmatmul.mubr.f32.gmra.mxu0 %v400
    %v497 = vpop.f32.mrf.mxu0
    %v498 = vadd.f32 %v384, %v497
    %v499 = vpop.f32.mrf.mxu0
    %500 = vmatprep.mubr.f32.mxu0 0.0
    %501 = vmatmul.mubr.f32.gmra.mxu0 %v403
    %v502 = vpop.f32.mrf.mxu0
    %v503 = vadd.f32 %v384, %v502
    %v504 = vpop.f32.mrf.mxu0
    %505 = vmatprep.mubr.f32.mxu0 0.0
    %506 = vmatmul.mubr.f32.gmra.mxu0 %v406
    %v507 = vpop.f32.mrf.mxu0
    %v508 = vadd.f32 %v384, %v507
    %v509 = vpop.f32.mrf.mxu0
    %510 = vmatprep.mubr.f32.mxu0 0.0
    %511 = vmatmul.mubr.f32.gmra.mxu0 %v409
    %v512 = vpop.f32.mrf.mxu0
    %v513 = vadd.f32 %v384, %v512
    %v514 = vpop.f32.mrf.mxu0
    %515 = vdwg.mxu0
    %517 = vrot.lane.b32.xlu0 %v478, 120
    %v518 = vpop.permute.xlu0 %517
    %v519 = vsel %vm386, %v478, 0
    %v521 = vsel %vm386, %v518, 0
    %523 = vmatprep.subr.mxu0 0.0
    %524 = vmatpush1.xpose.msra.mxu0 0.0
    %525 = vmatprep.subr.mxu0 0.0
    %526 = vmatpush1.xpose.msra.mxu0 0.0
    %527 = vmatprep.subr.mxu0 0.0
    %528 = vmatpush1.xpose.msra.mxu0 0.0
    %529 = vmatprep.subr.mxu0 0.0
    %530 = vmatpush1.xpose.msra.mxu0 0.0
    %531 = vmatprep.subr.mxu0 0.0
    %532 = vmatpush1.xpose.msra.mxu0 0.0
    %533 = vmatprep.subr.mxu0 0.0
    %534 = vmatpush1.xpose.msra.mxu0 0.0
    %535 = vmatprep.subr.mxu0 0.0
    %536 = vmatpush1.xpose.msra.mxu0 0.0
    %537 = vmatprep.subr.mxu0 0.0
    %538 = vmatpush1.xpose.msra.mxu0 0.0
    %539 = vmatprep.subr.mxu0 0.0
    %540 = vmatpush1.xpose.msra.mxu0 0.0
    %541 = vmatprep.subr.mxu0 0.0
    %542 = vmatpush1.xpose.msra.mxu0 0.0
    %543 = vmatprep.subr.mxu0 0.0
    %544 = vmatpush1.xpose.msra.mxu0 0.0
    %545 = vmatprep.subr.mxu0 0.0
    %546 = vmatpush1.xpose.msra.mxu0 0.0
    %547 = vmatprep.subr.mxu0 0.0
    %548 = vmatpush1.xpose.msra.mxu0 0.0
    %549 = vmatprep.subr.mxu0 0.0
    %550 = vmatpush1.xpose.msra.mxu0 0.0
    %551 = vmatprep.subr.mxu0 0.0
    %552 = vmatpush1.xpose.msra.mxu0 0.0
    %553 = vmatprep.subr.mxu0 0.0
    %554 = vmatpush1.xpose.msra.mxu0 %v521
    %555 = vmatprep.subr.mxu0 0.0
    %556 = vmatpush2.xpose.msra.mxu0 0.0
    %557 = vmatprep.subr.mxu0 0.0
    %558 = vmatpush2.xpose.msra.mxu0 0.0
    %559 = vmatprep.subr.mxu0 0.0
    %560 = vmatpush2.xpose.msra.mxu0 0.0
    %561 = vmatprep.subr.mxu0 0.0
    %562 = vmatpush2.xpose.msra.mxu0 0.0
    %563 = vmatprep.subr.mxu0 0.0
    %564 = vmatpush2.xpose.msra.mxu0 0.0
    %565 = vmatprep.subr.mxu0 0.0
    %566 = vmatpush2.xpose.msra.mxu0 0.0
    %567 = vmatprep.subr.mxu0 0.0
    %568 = vmatpush2.xpose.msra.mxu0 0.0
    %569 = vmatprep.subr.mxu0 0.0
    %570 = vmatpush2.xpose.msra.mxu0 0.0
    %571 = vmatprep.subr.mxu0 0.0
    %572 = vmatpush2.xpose.msra.mxu0 0.0
    %573 = vmatprep.subr.mxu0 0.0
    %574 = vmatpush2.xpose.msra.mxu0 0.0
    %575 = vmatprep.subr.mxu0 0.0
    %576 = vmatpush2.xpose.msra.mxu0 0.0
    %577 = vmatprep.subr.mxu0 0.0
    %578 = vmatpush2.xpose.msra.mxu0 0.0
    %579 = vmatprep.subr.mxu0 0.0
    %580 = vmatpush2.xpose.msra.mxu0 0.0
    %581 = vmatprep.subr.mxu0 0.0
    %582 = vmatpush2.xpose.msra.mxu0 0.0
    %583 = vmatprep.subr.mxu0 0.0
    %584 = vmatpush2.xpose.msra.mxu0 0.0
    %585 = vmatprep.subr.mxu0 0.0
    %586 = vmatpush2.xpose.msra.mxu0 0.0
    %587 = vmatprep.mubr.f32.mxu0 0.0
    %588 = vmatmul.mubr.f32.gmra.mxu0 %v519
    %v589 = vpop.f32.mrf.mxu0
    %v590 = vadd.f32 0.0, %v589
    %v591 = vpop.f32.mrf.mxu0
    %592 = vdwg.mxu0
    %594 = vrot.lane.b32.xlu0 %v483, 120
    %v595 = vpop.permute.xlu0 %594
    %v596 = vsel %vm386, %v483, 0
    %v598 = vsel %vm386, %v595, 0
    %600 = vmatprep.subr.mxu0 0.0
    %601 = vmatpush1.xpose.msra.mxu0 0.0
    %602 = vmatprep.subr.mxu0 0.0
    %603 = vmatpush1.xpose.msra.mxu0 0.0
    %604 = vmatprep.subr.mxu0 0.0
    %605 = vmatpush1.xpose.msra.mxu0 0.0
    %606 = vmatprep.subr.mxu0 0.0
    %607 = vmatpush1.xpose.msra.mxu0 0.0
    %608 = vmatprep.subr.mxu0 0.0
    %609 = vmatpush1.xpose.msra.mxu0 0.0
    %610 = vmatprep.subr.mxu0 0.0
    %611 = vmatpush1.xpose.msra.mxu0 0.0
    %612 = vmatprep.subr.mxu0 0.0
    %613 = vmatpush1.xpose.msra.mxu0 0.0
    %614 = vmatprep.subr.mxu0 0.0
    %615 = vmatpush1.xpose.msra.mxu0 0.0
    %616 = vmatprep.subr.mxu0 0.0
    %617 = vmatpush1.xpose.msra.mxu0 0.0
    %618 = vmatprep.subr.mxu0 0.0
    %619 = vmatpush1.xpose.msra.mxu0 0.0
    %620 = vmatprep.subr.mxu0 0.0
    %621 = vmatpush1.xpose.msra.mxu0 0.0
    %622 = vmatprep.subr.mxu0 0.0
    %623 = vmatpush1.xpose.msra.mxu0 0.0
    %624 = vmatprep.subr.mxu0 0.0
    %625 = vmatpush1.xpose.msra.mxu0 0.0
    %626 = vmatprep.subr.mxu0 0.0
    %627 = vmatpush1.xpose.msra.mxu0 0.0
    %628 = vmatprep.subr.mxu0 0.0
    %629 = vmatpush1.xpose.msra.mxu0 0.0
    %630 = vmatprep.subr.mxu0 0.0
    %631 = vmatpush1.xpose.msra.mxu0 %v598
    %632 = vmatprep.subr.mxu0 0.0
    %633 = vmatpush2.xpose.msra.mxu0 0.0
    %634 = vmatprep.subr.mxu0 0.0
    %635 = vmatpush2.xpose.msra.mxu0 0.0
    %636 = vmatprep.subr.mxu0 0.0
    %637 = vmatpush2.xpose.msra.mxu0 0.0
    %638 = vmatprep.subr.mxu0 0.0
    %639 = vmatpush2.xpose.msra.mxu0 0.0
    %640 = vmatprep.subr.mxu0 0.0
    %641 = vmatpush2.xpose.msra.mxu0 0.0
    %642 = vmatprep.subr.mxu0 0.0
    %643 = vmatpush2.xpose.msra.mxu0 0.0
    %644 = vmatprep.subr.mxu0 0.0
    %645 = vmatpush2.xpose.msra.mxu0 0.0
    %646 = vmatprep.subr.mxu0 0.0
    %647 = vmatpush2.xpose.msra.mxu0 0.0
    %648 = vmatprep.subr.mxu0 0.0
    %649 = vmatpush2.xpose.msra.mxu0 0.0
    %650 = vmatprep.subr.mxu0 0.0
    %651 = vmatpush2.xpose.msra.mxu0 0.0
    %652 = vmatprep.subr.mxu0 0.0
    %653 = vmatpush2.xpose.msra.mxu0 0.0
    %654 = vmatprep.subr.mxu0 0.0
    %655 = vmatpush2.xpose.msra.mxu0 0.0
    %656 = vmatprep.subr.mxu0 0.0
    %657 = vmatpush2.xpose.msra.mxu0 0.0
    %658 = vmatprep.subr.mxu0 0.0
    %659 = vmatpush2.xpose.msra.mxu0 0.0
    %660 = vmatprep.subr.mxu0 0.0
    %661 = vmatpush2.xpose.msra.mxu0 0.0
    %662 = vmatprep.subr.mxu0 0.0
    %663 = vmatpush2.xpose.msra.mxu0 0.0
    %664 = vmatprep.mubr.f32.mxu0 0.0
    %665 = vmatmul.mubr.f32.gmra.mxu0 %v596
    %v666 = vpop.f32.mrf.mxu0
    %v667 = vadd.f32 0.0, %v666
    %v668 = vpop.f32.mrf.mxu0
    %669 = vdwg.mxu0
    %671 = vrot.lane.b32.xlu0 %v488, 120
    %v672 = vpop.permute.xlu0 %671
    %v673 = vsel %vm386, %v488, 0
    %v675 = vsel %vm386, %v672, 0
    %677 = vmatprep.subr.mxu0 0.0
    %678 = vmatpush1.xpose.msra.mxu0 0.0
    %679 = vmatprep.subr.mxu0 0.0
    %680 = vmatpush1.xpose.msra.mxu0 0.0
    %681 = vmatprep.subr.mxu0 0.0
    %682 = vmatpush1.xpose.msra.mxu0 0.0
    %683 = vmatprep.subr.mxu0 0.0
    %684 = vmatpush1.xpose.msra.mxu0 0.0
    %685 = vmatprep.subr.mxu0 0.0
    %686 = vmatpush1.xpose.msra.mxu0 0.0
    %687 = vmatprep.subr.mxu0 0.0
    %688 = vmatpush1.xpose.msra.mxu0 0.0
    %689 = vmatprep.subr.mxu0 0.0
    %690 = vmatpush1.xpose.msra.mxu0 0.0
    %691 = vmatprep.subr.mxu0 0.0
    %692 = vmatpush1.xpose.msra.mxu0 0.0
    %693 = vmatprep.subr.mxu0 0.0
    %694 = vmatpush1.xpose.msra.mxu0 0.0
    %695 = vmatprep.subr.mxu0 0.0
    %696 = vmatpush1.xpose.msra.mxu0 0.0
    %697 = vmatprep.subr.mxu0 0.0
    %698 = vmatpush1.xpose.msra.mxu0 0.0
    %699 = vmatprep.subr.mxu0 0.0
    %700 = vmatpush1.xpose.msra.mxu0 0.0
    %701 = vmatprep.subr.mxu0 0.0
    %702 = vmatpush1.xpose.msra.mxu0 0.0
    %703 = vmatprep.subr.mxu0 0.0
    %704 = vmatpush1.xpose.msra.mxu0 0.0
    %705 = vmatprep.subr.mxu0 0.0
    %706 = vmatpush1.xpose.msra.mxu0 0.0
    %707 = vmatprep.subr.mxu0 0.0
    %708 = vmatpush1.xpose.msra.mxu0 %v675
    %709 = vmatprep.subr.mxu0 0.0
    %710 = vmatpush2.xpose.msra.mxu0 0.0
    %711 = vmatprep.subr.mxu0 0.0
    %712 = vmatpush2.xpose.msra.mxu0 0.0
    %713 = vmatprep.subr.mxu0 0.0
    %714 = vmatpush2.xpose.msra.mxu0 0.0
    %715 = vmatprep.subr.mxu0 0.0
    %716 = vmatpush2.xpose.msra.mxu0 0.0
    %717 = vmatprep.subr.mxu0 0.0
    %718 = vmatpush2.xpose.msra.mxu0 0.0
    %719 = vmatprep.subr.mxu0 0.0
    %720 = vmatpush2.xpose.msra.mxu0 0.0
    %721 = vmatprep.subr.mxu0 0.0
    %722 = vmatpush2.xpose.msra.mxu0 0.0
    %723 = vmatprep.subr.mxu0 0.0
    %724 = vmatpush2.xpose.msra.mxu0 0.0
    %725 = vmatprep.subr.mxu0 0.0
    %726 = vmatpush2.xpose.msra.mxu0 0.0
    %727 = vmatprep.subr.mxu0 0.0
    %728 = vmatpush2.xpose.msra.mxu0 0.0
    %729 = vmatprep.subr.mxu0 0.0
    %730 = vmatpush2.xpose.msra.mxu0 0.0
    %731 = vmatprep.subr.mxu0 0.0
    %732 = vmatpush2.xpose.msra.mxu0 0.0
    %733 = vmatprep.subr.mxu0 0.0
    %734 = vmatpush2.xpose.msra.mxu0 0.0
    %735 = vmatprep.subr.mxu0 0.0
    %736 = vmatpush2.xpose.msra.mxu0 0.0
    %737 = vmatprep.subr.mxu0 0.0
    %738 = vmatpush2.xpose.msra.mxu0 0.0
    %739 = vmatprep.subr.mxu0 0.0
    %740 = vmatpush2.xpose.msra.mxu0 0.0
    %741 = vmatprep.mubr.f32.mxu0 0.0
    %742 = vmatmul.mubr.f32.gmra.mxu0 %v673
    %v743 = vpop.f32.mrf.mxu0
    %v744 = vadd.f32 0.0, %v743
    %v745 = vpop.f32.mrf.mxu0
    %746 = vdwg.mxu0
    %748 = vrot.lane.b32.xlu0 %v493, 120
    %v749 = vpop.permute.xlu0 %748
    %v750 = vsel %vm386, %v493, 0
    %v752 = vsel %vm386, %v749, 0
    %754 = vmatprep.subr.mxu0 0.0
    %755 = vmatpush1.xpose.msra.mxu0 0.0
    %756 = vmatprep.subr.mxu0 0.0
    %757 = vmatpush1.xpose.msra.mxu0 0.0
    %758 = vmatprep.subr.mxu0 0.0
    %759 = vmatpush1.xpose.msra.mxu0 0.0
    %760 = vmatprep.subr.mxu0 0.0
    %761 = vmatpush1.xpose.msra.mxu0 0.0
    %762 = vmatprep.subr.mxu0 0.0
    %763 = vmatpush1.xpose.msra.mxu0 0.0
    %764 = vmatprep.subr.mxu0 0.0
    %765 = vmatpush1.xpose.msra.mxu0 0.0
    %766 = vmatprep.subr.mxu0 0.0
    %767 = vmatpush1.xpose.msra.mxu0 0.0
    %768 = vmatprep.subr.mxu0 0.0
    %769 = vmatpush1.xpose.msra.mxu0 0.0
    %770 = vmatprep.subr.mxu0 0.0
    %771 = vmatpush1.xpose.msra.mxu0 0.0
    %772 = vmatprep.subr.mxu0 0.0
    %773 = vmatpush1.xpose.msra.mxu0 0.0
    %774 = vmatprep.subr.mxu0 0.0
    %775 = vmatpush1.xpose.msra.mxu0 0.0
    %776 = vmatprep.subr.mxu0 0.0
    %777 = vmatpush1.xpose.msra.mxu0 0.0
    %778 = vmatprep.subr.mxu0 0.0
    %779 = vmatpush1.xpose.msra.mxu0 0.0
    %780 = vmatprep.subr.mxu0 0.0
    %781 = vmatpush1.xpose.msra.mxu0 0.0
    %782 = vmatprep.subr.mxu0 0.0
    %783 = vmatpush1.xpose.msra.mxu0 0.0
    %784 = vmatprep.subr.mxu0 0.0
    %785 = vmatpush1.xpose.msra.mxu0 %v752
    %786 = vmatprep.subr.mxu0 0.0
    %787 = vmatpush2.xpose.msra.mxu0 0.0
    %788 = vmatprep.subr.mxu0 0.0
    %789 = vmatpush2.xpose.msra.mxu0 0.0
    %790 = vmatprep.subr.mxu0 0.0
    %791 = vmatpush2.xpose.msra.mxu0 0.0
    %792 = vmatprep.subr.mxu0 0.0
    %793 = vmatpush2.xpose.msra.mxu0 0.0
    %794 = vmatprep.subr.mxu0 0.0
    %795 = vmatpush2.xpose.msra.mxu0 0.0
    %796 = vmatprep.subr.mxu0 0.0
    %797 = vmatpush2.xpose.msra.mxu0 0.0
    %798 = vmatprep.subr.mxu0 0.0
    %799 = vmatpush2.xpose.msra.mxu0 0.0
    %800 = vmatprep.subr.mxu0 0.0
    %801 = vmatpush2.xpose.msra.mxu0 0.0
    %802 = vmatprep.subr.mxu0 0.0
    %803 = vmatpush2.xpose.msra.mxu0 0.0
    %804 = vmatprep.subr.mxu0 0.0
    %805 = vmatpush2.xpose.msra.mxu0 0.0
    %806 = vmatprep.subr.mxu0 0.0
    %807 = vmatpush2.xpose.msra.mxu0 0.0
    %808 = vmatprep.subr.mxu0 0.0
    %809 = vmatpush2.xpose.msra.mxu0 0.0
    %810 = vmatprep.subr.mxu0 0.0
    %811 = vmatpush2.xpose.msra.mxu0 0.0
    %812 = vmatprep.subr.mxu0 0.0
    %813 = vmatpush2.xpose.msra.mxu0 0.0
    %814 = vmatprep.subr.mxu0 0.0
    %815 = vmatpush2.xpose.msra.mxu0 0.0
    %816 = vmatprep.subr.mxu0 0.0
    %817 = vmatpush2.xpose.msra.mxu0 0.0
    %818 = vmatprep.mubr.f32.mxu0 0.0
    %819 = vmatmul.mubr.f32.gmra.mxu0 %v750
    %v820 = vpop.f32.mrf.mxu0
    %v821 = vadd.f32 0.0, %v820
    %v822 = vpop.f32.mrf.mxu0
    %823 = vdwg.mxu0
    %825 = vrot.lane.b32.xlu0 %v498, 120
    %v826 = vpop.permute.xlu0 %825
    %v827 = vsel %vm386, %v498, 0
    %v829 = vsel %vm386, %v826, 0
    %831 = vmatprep.subr.mxu0 0.0
    %832 = vmatpush1.xpose.msra.mxu0 0.0
    %833 = vmatprep.subr.mxu0 0.0
    %834 = vmatpush1.xpose.msra.mxu0 0.0
    %835 = vmatprep.subr.mxu0 0.0
    %836 = vmatpush1.xpose.msra.mxu0 0.0
    %837 = vmatprep.subr.mxu0 0.0
    %838 = vmatpush1.xpose.msra.mxu0 0.0
    %839 = vmatprep.subr.mxu0 0.0
    %840 = vmatpush1.xpose.msra.mxu0 0.0
    %841 = vmatprep.subr.mxu0 0.0
    %842 = vmatpush1.xpose.msra.mxu0 0.0
    %843 = vmatprep.subr.mxu0 0.0
    %844 = vmatpush1.xpose.msra.mxu0 0.0
    %845 = vmatprep.subr.mxu0 0.0
    %846 = vmatpush1.xpose.msra.mxu0 0.0
    %847 = vmatprep.subr.mxu0 0.0
    %848 = vmatpush1.xpose.msra.mxu0 0.0
    %849 = vmatprep.subr.mxu0 0.0
    %850 = vmatpush1.xpose.msra.mxu0 0.0
    %851 = vmatprep.subr.mxu0 0.0
    %852 = vmatpush1.xpose.msra.mxu0 0.0
    %853 = vmatprep.subr.mxu0 0.0
    %854 = vmatpush1.xpose.msra.mxu0 0.0
    %855 = vmatprep.subr.mxu0 0.0
    %856 = vmatpush1.xpose.msra.mxu0 0.0
    %857 = vmatprep.subr.mxu0 0.0
    %858 = vmatpush1.xpose.msra.mxu0 0.0
    %859 = vmatprep.subr.mxu0 0.0
    %860 = vmatpush1.xpose.msra.mxu0 0.0
    %861 = vmatprep.subr.mxu0 0.0
    %862 = vmatpush1.xpose.msra.mxu0 %v829
    %863 = vmatprep.subr.mxu0 0.0
    %864 = vmatpush2.xpose.msra.mxu0 0.0
    %865 = vmatprep.subr.mxu0 0.0
    %866 = vmatpush2.xpose.msra.mxu0 0.0
    %867 = vmatprep.subr.mxu0 0.0
    %868 = vmatpush2.xpose.msra.mxu0 0.0
    %869 = vmatprep.subr.mxu0 0.0
    %870 = vmatpush2.xpose.msra.mxu0 0.0
    %871 = vmatprep.subr.mxu0 0.0
    %872 = vmatpush2.xpose.msra.mxu0 0.0
    %873 = vmatprep.subr.mxu0 0.0
    %874 = vmatpush2.xpose.msra.mxu0 0.0
    %875 = vmatprep.subr.mxu0 0.0
    %876 = vmatpush2.xpose.msra.mxu0 0.0
    %877 = vmatprep.subr.mxu0 0.0
    %878 = vmatpush2.xpose.msra.mxu0 0.0
    %879 = vmatprep.subr.mxu0 0.0
    %880 = vmatpush2.xpose.msra.mxu0 0.0
    %881 = vmatprep.subr.mxu0 0.0
    %882 = vmatpush2.xpose.msra.mxu0 0.0
    %883 = vmatprep.subr.mxu0 0.0
    %884 = vmatpush2.xpose.msra.mxu0 0.0
    %885 = vmatprep.subr.mxu0 0.0
    %886 = vmatpush2.xpose.msra.mxu0 0.0
    %887 = vmatprep.subr.mxu0 0.0
    %888 = vmatpush2.xpose.msra.mxu0 0.0
    %889 = vmatprep.subr.mxu0 0.0
    %890 = vmatpush2.xpose.msra.mxu0 0.0
    %891 = vmatprep.subr.mxu0 0.0
    %892 = vmatpush2.xpose.msra.mxu0 0.0
    %893 = vmatprep.subr.mxu0 0.0
    %894 = vmatpush2.xpose.msra.mxu0 0.0
    %895 = vmatprep.mubr.f32.mxu0 0.0
    %896 = vmatmul.mubr.f32.gmra.mxu0 %v827
    %v897 = vpop.f32.mrf.mxu0
    %v898 = vadd.f32 0.0, %v897
    %v899 = vpop.f32.mrf.mxu0
    %900 = vdwg.mxu0
    %902 = vrot.lane.b32.xlu0 %v503, 120
    %v903 = vpop.permute.xlu0 %902
    %v904 = vsel %vm386, %v503, 0
    %v906 = vsel %vm386, %v903, 0
    %908 = vmatprep.subr.mxu0 0.0
    %909 = vmatpush1.xpose.msra.mxu0 0.0
    %910 = vmatprep.subr.mxu0 0.0
    %911 = vmatpush1.xpose.msra.mxu0 0.0
    %912 = vmatprep.subr.mxu0 0.0
    %913 = vmatpush1.xpose.msra.mxu0 0.0
    %914 = vmatprep.subr.mxu0 0.0
    %915 = vmatpush1.xpose.msra.mxu0 0.0
    %916 = vmatprep.subr.mxu0 0.0
    %917 = vmatpush1.xpose.msra.mxu0 0.0
    %918 = vmatprep.subr.mxu0 0.0
    %919 = vmatpush1.xpose.msra.mxu0 0.0
    %920 = vmatprep.subr.mxu0 0.0
    %921 = vmatpush1.xpose.msra.mxu0 0.0
    %922 = vmatprep.subr.mxu0 0.0
    %923 = vmatpush1.xpose.msra.mxu0 0.0
    %924 = vmatprep.subr.mxu0 0.0
    %925 = vmatpush1.xpose.msra.mxu0 0.0
    %926 = vmatprep.subr.mxu0 0.0
    %927 = vmatpush1.xpose.msra.mxu0 0.0
    %928 = vmatprep.subr.mxu0 0.0
    %929 = vmatpush1.xpose.msra.mxu0 0.0
    %930 = vmatprep.subr.mxu0 0.0
    %931 = vmatpush1.xpose.msra.mxu0 0.0
    %932 = vmatprep.subr.mxu0 0.0
    %933 = vmatpush1.xpose.msra.mxu0 0.0
    %934 = vmatprep.subr.mxu0 0.0
    %935 = vmatpush1.xpose.msra.mxu0 0.0
    %936 = vmatprep.subr.mxu0 0.0
    %937 = vmatpush1.xpose.msra.mxu0 0.0
    %938 = vmatprep.subr.mxu0 0.0
    %939 = vmatpush1.xpose.msra.mxu0 %v906
    %940 = vmatprep.subr.mxu0 0.0
    %941 = vmatpush2.xpose.msra.mxu0 0.0
    %942 = vmatprep.subr.mxu0 0.0
    %943 = vmatpush2.xpose.msra.mxu0 0.0
    %944 = vmatprep.subr.mxu0 0.0
    %945 = vmatpush2.xpose.msra.mxu0 0.0
    %946 = vmatprep.subr.mxu0 0.0
    %947 = vmatpush2.xpose.msra.mxu0 0.0
    %948 = vmatprep.subr.mxu0 0.0
    %949 = vmatpush2.xpose.msra.mxu0 0.0
    %950 = vmatprep.subr.mxu0 0.0
    %951 = vmatpush2.xpose.msra.mxu0 0.0
    %952 = vmatprep.subr.mxu0 0.0
    %953 = vmatpush2.xpose.msra.mxu0 0.0
    %954 = vmatprep.subr.mxu0 0.0
    %955 = vmatpush2.xpose.msra.mxu0 0.0
    %956 = vmatprep.subr.mxu0 0.0
    %957 = vmatpush2.xpose.msra.mxu0 0.0
    %958 = vmatprep.subr.mxu0 0.0
    %959 = vmatpush2.xpose.msra.mxu0 0.0
    %960 = vmatprep.subr.mxu0 0.0
    %961 = vmatpush2.xpose.msra.mxu0 0.0
    %962 = vmatprep.subr.mxu0 0.0
    %963 = vmatpush2.xpose.msra.mxu0 0.0
    %964 = vmatprep.subr.mxu0 0.0
    %965 = vmatpush2.xpose.msra.mxu0 0.0
    %966 = vmatprep.subr.mxu0 0.0
    %967 = vmatpush2.xpose.msra.mxu0 0.0
    %968 = vmatprep.subr.mxu0 0.0
    %969 = vmatpush2.xpose.msra.mxu0 0.0
    %970 = vmatprep.subr.mxu0 0.0
    %971 = vmatpush2.xpose.msra.mxu0 0.0
    %972 = vmatprep.mubr.f32.mxu0 0.0
    %973 = vmatmul.mubr.f32.gmra.mxu0 %v904
    %v974 = vpop.f32.mrf.mxu0
    %v975 = vadd.f32 0.0, %v974
    %v976 = vpop.f32.mrf.mxu0
    %977 = vdwg.mxu0
    %979 = vrot.lane.b32.xlu0 %v508, 120
    %v980 = vpop.permute.xlu0 %979
    %v981 = vsel %vm386, %v508, 0
    %v983 = vsel %vm386, %v980, 0
    %985 = vmatprep.subr.mxu0 0.0
    %986 = vmatpush1.xpose.msra.mxu0 0.0
    %987 = vmatprep.subr.mxu0 0.0
    %988 = vmatpush1.xpose.msra.mxu0 0.0
    %989 = vmatprep.subr.mxu0 0.0
    %990 = vmatpush1.xpose.msra.mxu0 0.0
    %991 = vmatprep.subr.mxu0 0.0
    %992 = vmatpush1.xpose.msra.mxu0 0.0
    %993 = vmatprep.subr.mxu0 0.0
    %994 = vmatpush1.xpose.msra.mxu0 0.0
    %995 = vmatprep.subr.mxu0 0.0
    %996 = vmatpush1.xpose.msra.mxu0 0.0
    %997 = vmatprep.subr.mxu0 0.0
    %998 = vmatpush1.xpose.msra.mxu0 0.0
    %999 = vmatprep.subr.mxu0 0.0
    %1000 = vmatpush1.xpose.msra.mxu0 0.0
    %1001 = vmatprep.subr.mxu0 0.0
    %1002 = vmatpush1.xpose.msra.mxu0 0.0
    %1003 = vmatprep.subr.mxu0 0.0
    %1004 = vmatpush1.xpose.msra.mxu0 0.0
    %1005 = vmatprep.subr.mxu0 0.0
    %1006 = vmatpush1.xpose.msra.mxu0 0.0
    %1007 = vmatprep.subr.mxu0 0.0
    %1008 = vmatpush1.xpose.msra.mxu0 0.0
    %1009 = vmatprep.subr.mxu0 0.0
    %1010 = vmatpush1.xpose.msra.mxu0 0.0
    %1011 = vmatprep.subr.mxu0 0.0
    %1012 = vmatpush1.xpose.msra.mxu0 0.0
    %1013 = vmatprep.subr.mxu0 0.0
    %1014 = vmatpush1.xpose.msra.mxu0 0.0
    %1015 = vmatprep.subr.mxu0 0.0
    %1016 = vmatpush1.xpose.msra.mxu0 %v983
    %1017 = vmatprep.subr.mxu0 0.0
    %1018 = vmatpush2.xpose.msra.mxu0 0.0
    %1019 = vmatprep.subr.mxu0 0.0
    %1020 = vmatpush2.xpose.msra.mxu0 0.0
    %1021 = vmatprep.subr.mxu0 0.0
    %1022 = vmatpush2.xpose.msra.mxu0 0.0
    %1023 = vmatprep.subr.mxu0 0.0
    %1024 = vmatpush2.xpose.msra.mxu0 0.0
    %1025 = vmatprep.subr.mxu0 0.0
    %1026 = vmatpush2.xpose.msra.mxu0 0.0
    %1027 = vmatprep.subr.mxu0 0.0
    %1028 = vmatpush2.xpose.msra.mxu0 0.0
    %1029 = vmatprep.subr.mxu0 0.0
    %1030 = vmatpush2.xpose.msra.mxu0 0.0
    %1031 = vmatprep.subr.mxu0 0.0
    %1032 = vmatpush2.xpose.msra.mxu0 0.0
    %1033 = vmatprep.subr.mxu0 0.0
    %1034 = vmatpush2.xpose.msra.mxu0 0.0
    %1035 = vmatprep.subr.mxu0 0.0
    %1036 = vmatpush2.xpose.msra.mxu0 0.0
    %1037 = vmatprep.subr.mxu0 0.0
    %1038 = vmatpush2.xpose.msra.mxu0 0.0
    %1039 = vmatprep.subr.mxu0 0.0
    %1040 = vmatpush2.xpose.msra.mxu0 0.0
    %1041 = vmatprep.subr.mxu0 0.0
    %1042 = vmatpush2.xpose.msra.mxu0 0.0
    %1043 = vmatprep.subr.mxu0 0.0
    %1044 = vmatpush2.xpose.msra.mxu0 0.0
    %1045 = vmatprep.subr.mxu0 0.0
    %1046 = vmatpush2.xpose.msra.mxu0 0.0
    %1047 = vmatprep.subr.mxu0 0.0
    %1048 = vmatpush2.xpose.msra.mxu0 0.0
    %1049 = vmatprep.mubr.f32.mxu0 0.0
    %1050 = vmatmul.mubr.f32.gmra.mxu0 %v981
    %v1051 = vpop.f32.mrf.mxu0
    %v1052 = vadd.f32 0.0, %v1051
    %v1053 = vpop.f32.mrf.mxu0
    %1054 = vdwg.mxu0
    %1056 = vrot.lane.b32.xlu0 %v513, 120
    %v1057 = vpop.permute.xlu0 %1056
    %v1058 = vsel %vm386, %v513, 0
    %v1060 = vsel %vm386, %v1057, 0
    %1062 = vmatprep.subr.mxu0 0.0
    %1063 = vmatpush1.xpose.msra.mxu0 0.0
    %1064 = vmatprep.subr.mxu0 0.0
    %1065 = vmatpush1.xpose.msra.mxu0 0.0
    %1066 = vmatprep.subr.mxu0 0.0
    %1067 = vmatpush1.xpose.msra.mxu0 0.0
    %1068 = vmatprep.subr.mxu0 0.0
    %1069 = vmatpush1.xpose.msra.mxu0 0.0
    %1070 = vmatprep.subr.mxu0 0.0
    %1071 = vmatpush1.xpose.msra.mxu0 0.0
    %1072 = vmatprep.subr.mxu0 0.0
    %1073 = vmatpush1.xpose.msra.mxu0 0.0
    %1074 = vmatprep.subr.mxu0 0.0
    %1075 = vmatpush1.xpose.msra.mxu0 0.0
    %1076 = vmatprep.subr.mxu0 0.0
    %1077 = vmatpush1.xpose.msra.mxu0 0.0
    %1078 = vmatprep.subr.mxu0 0.0
    %1079 = vmatpush1.xpose.msra.mxu0 0.0
    %1080 = vmatprep.subr.mxu0 0.0
    %1081 = vmatpush1.xpose.msra.mxu0 0.0
    %1082 = vmatprep.subr.mxu0 0.0
    %1083 = vmatpush1.xpose.msra.mxu0 0.0
    %1084 = vmatprep.subr.mxu0 0.0
    %1085 = vmatpush1.xpose.msra.mxu0 0.0
    %1086 = vmatprep.subr.mxu0 0.0
    %1087 = vmatpush1.xpose.msra.mxu0 0.0
    %1088 = vmatprep.subr.mxu0 0.0
    %1089 = vmatpush1.xpose.msra.mxu0 0.0
    %1090 = vmatprep.subr.mxu0 0.0
    %1091 = vmatpush1.xpose.msra.mxu0 0.0
    %1092 = vmatprep.subr.mxu0 0.0
    %1093 = vmatpush1.xpose.msra.mxu0 %v1060
    %1094 = vmatprep.subr.mxu0 0.0
    %1095 = vmatpush2.xpose.msra.mxu0 0.0
    %1096 = vmatprep.subr.mxu0 0.0
    %1097 = vmatpush2.xpose.msra.mxu0 0.0
    %1098 = vmatprep.subr.mxu0 0.0
    %1099 = vmatpush2.xpose.msra.mxu0 0.0
    %1100 = vmatprep.subr.mxu0 0.0
    %1101 = vmatpush2.xpose.msra.mxu0 0.0
    %1102 = vmatprep.subr.mxu0 0.0
    %1103 = vmatpush2.xpose.msra.mxu0 0.0
    %1104 = vmatprep.subr.mxu0 0.0
    %1105 = vmatpush2.xpose.msra.mxu0 0.0
    %1106 = vmatprep.subr.mxu0 0.0
    %1107 = vmatpush2.xpose.msra.mxu0 0.0
    %1108 = vmatprep.subr.mxu0 0.0
    %1109 = vmatpush2.xpose.msra.mxu0 0.0
    %1110 = vmatprep.subr.mxu0 0.0
    %1111 = vmatpush2.xpose.msra.mxu0 0.0
    %1112 = vmatprep.subr.mxu0 0.0
    %1113 = vmatpush2.xpose.msra.mxu0 0.0
    %1114 = vmatprep.subr.mxu0 0.0
    %1115 = vmatpush2.xpose.msra.mxu0 0.0
    %1116 = vmatprep.subr.mxu0 0.0
    %1117 = vmatpush2.xpose.msra.mxu0 0.0
    %1118 = vmatprep.subr.mxu0 0.0
    %1119 = vmatpush2.xpose.msra.mxu0 0.0
    %1120 = vmatprep.subr.mxu0 0.0
    %1121 = vmatpush2.xpose.msra.mxu0 0.0
    %1122 = vmatprep.subr.mxu0 0.0
    %1123 = vmatpush2.xpose.msra.mxu0 0.0
    %1124 = vmatprep.subr.mxu0 0.0
    %1125 = vmatpush2.xpose.msra.mxu0 0.0
    %1126 = vmatprep.mubr.f32.mxu0 0.0
    %1127 = vmatmul.mubr.f32.gmra.mxu0 %v1058
    %v1128 = vpop.f32.mrf.mxu0
    %v1129 = vadd.f32 0.0, %v1128
    %v1130 = vpop.f32.mrf.mxu0
    %1131 = vdwg.mxu0
    %v1132 = vmul.f32 %v590, 0.35355338
    %v1133 = vmul.f32 %v667, 0.35355338
    %v1134 = vmul.f32 %v744, 0.35355338
    %v1135 = vmul.f32 %v821, 0.35355338
    %v1136 = vmul.f32 %v898, 0.35355338
    %v1137 = vmul.f32 %v975, 0.35355338
    %v1138 = vmul.f32 %v1052, 0.35355338
    %v1139 = vmul.f32 %v1129, 0.35355338
    %v1140 = vsel %vm386, %v1132, -inf
    %1141 = vmax.xlane.f32.xlu0 %v1140
    %v1142 = vpop.xlane.xlu0 %1141
    %v1143 = vsel %vm386, %v1133, -inf
    %1144 = vmax.xlane.f32.xlu0 %v1143
    %v1145 = vpop.xlane.xlu0 %1144
    %v1146 = vsel %vm386, %v1134, -inf
    %1147 = vmax.xlane.f32.xlu0 %v1146
    %v1148 = vpop.xlane.xlu0 %1147
    %v1149 = vsel %vm386, %v1135, -inf
    %1150 = vmax.xlane.f32.xlu0 %v1149
    %v1151 = vpop.xlane.xlu0 %1150
    %v1152 = vsel %vm386, %v1136, -inf
    %1153 = vmax.xlane.f32.xlu0 %v1152
    %v1154 = vpop.xlane.xlu0 %1153
    %v1155 = vsel %vm386, %v1137, -inf
    %1156 = vmax.xlane.f32.xlu0 %v1155
    %v1157 = vpop.xlane.xlu0 %1156
    %v1158 = vsel %vm386, %v1138, -inf
    %1159 = vmax.xlane.f32.xlu0 %v1158
    %v1160 = vpop.xlane.xlu0 %1159
    %v1161 = vsel %vm386, %v1139, -inf
    %1162 = vmax.xlane.f32.xlu0 %v1161
    %v1163 = vpop.xlane.xlu0 %1162
    %v1164 = vsub.f32 %v1132, %v1142
    %v1165 = vsub.f32 %v1133, %v1145
    %v1166 = vsub.f32 %v1134, %v1148
    %v1167 = vsub.f32 %v1135, %v1151
    %v1168 = vsub.f32 %v1136, %v1154
    %v1169 = vsub.f32 %v1137, %v1157
    %v1170 = vsub.f32 %v1138, %v1160
    %v1171 = vsub.f32 %v1139, %v1163
    %v1172 = vmul.f32 %v1164, 1.442695
    %v1173 = vpow.pop %v1172
    %v1174 = vmul.f32 %v1165, 1.442695
    %v1175 = vpow.pop %v1174
    %v1176 = vmul.f32 %v1166, 1.442695
    %v1177 = vpow.pop %v1176
    %v1178 = vmul.f32 %v1167, 1.442695
    %v1179 = vpow.pop %v1178
    %v1180 = vmul.f32 %v1168, 1.442695
    %v1181 = vpow.pop %v1180
    %v1182 = vmul.f32 %v1169, 1.442695
    %v1183 = vpow.pop %v1182
    %v1184 = vmul.f32 %v1170, 1.442695
    %v1185 = vpow.pop %v1184
    %v1186 = vmul.f32 %v1171, 1.442695
    %v1187 = vpow.pop %v1186
    %v1188 = vsel %vm386, %v1173, 0.0
    %1189 = vadd.xlane.f32.xlu0 %v1188
    %v1190 = vpop.xlane.xlu0 %1189
    %v1191 = vsel %vm386, %v1175, 0.0
    %1192 = vadd.xlane.f32.xlu0 %v1191
    %v1193 = vpop.xlane.xlu0 %1192
    %v1194 = vsel %vm386, %v1177, 0.0
    %1195 = vadd.xlane.f32.xlu0 %v1194
    %v1196 = vpop.xlane.xlu0 %1195
    %v1197 = vsel %vm386, %v1179, 0.0
    %1198 = vadd.xlane.f32.xlu0 %v1197
    %v1199 = vpop.xlane.xlu0 %1198
    %v1200 = vsel %vm386, %v1181, 0.0
    %1201 = vadd.xlane.f32.xlu0 %v1200
    %v1202 = vpop.xlane.xlu0 %1201
    %v1203 = vsel %vm386, %v1183, 0.0
    %1204 = vadd.xlane.f32.xlu0 %v1203
    %v1205 = vpop.xlane.xlu0 %1204
    %v1206 = vsel %vm386, %v1185, 0.0
    %1207 = vadd.xlane.f32.xlu0 %v1206
    %v1208 = vpop.xlane.xlu0 %1207
    %v1209 = vsel %vm386, %v1187, 0.0
    %1210 = vadd.xlane.f32.xlu0 %v1209
    %v1211 = vpop.xlane.xlu0 %1210
    %v1212 = vrcp.pop %v1190
    %v1213 = vrcp.pop %v1193
    %v1214 = vrcp.pop %v1196
    %v1215 = vrcp.pop %v1199
    %v1216 = vrcp.pop %v1202
    %v1217 = vrcp.pop %v1205
    %v1218 = vrcp.pop %v1208
    %v1219 = vrcp.pop %v1211
    %v1220 = vmul.f32 %v1173, %v1212
    %v1221 = vmul.f32 %v1175, %v1213
    %v1222 = vmul.f32 %v1177, %v1214
    %v1223 = vmul.f32 %v1179, %v1215
    %v1224 = vmul.f32 %v1181, %v1216
    %v1225 = vmul.f32 %v1183, %v1217
    %v1226 = vmul.f32 %v1185, %v1218
    %v1227 = vmul.f32 %v1187, %v1219
    %1228 = vrot.lane.b32.xlu0 %v478, 112
    %v1229 = vpop.permute.xlu0 %1228
    %v1232 = vsel %vm386, %v1220, 0
    %1234 = vmatprep.subr.mxu0 0.0
    %1235 = vmatpush1.msra.mxu0 0.0
    %1236 = vmatprep.subr.mxu0 0.0
    %1237 = vmatpush1.msra.mxu0 0.0
    %1238 = vmatprep.subr.mxu0 0.0
    %1239 = vmatpush1.msra.mxu0 0.0
    %1240 = vmatprep.subr.mxu0 0.0
    %1241 = vmatpush1.msra.mxu0 0.0
    %1242 = vmatprep.subr.mxu0 0.0
    %1243 = vmatpush1.msra.mxu0 0.0
    %1244 = vmatprep.subr.mxu0 0.0
    %1245 = vmatpush1.msra.mxu0 0.0
    %1246 = vmatprep.subr.mxu0 0.0
    %1247 = vmatpush1.msra.mxu0 0.0
    %1248 = vmatprep.subr.mxu0 0.0
    %1249 = vmatpush1.msra.mxu0 0.0
    %1250 = vmatprep.subr.mxu0 0.0
    %1251 = vmatpush1.msra.mxu0 0.0
    %1252 = vmatprep.subr.mxu0 0.0
    %1253 = vmatpush1.msra.mxu0 0.0
    %1254 = vmatprep.subr.mxu0 0.0
    %1255 = vmatpush1.msra.mxu0 0.0
    %1256 = vmatprep.subr.mxu0 0.0
    %1257 = vmatpush1.msra.mxu0 0.0
    %1258 = vmatprep.subr.mxu0 0.0
    %1259 = vmatpush1.msra.mxu0 0.0
    %1260 = vmatprep.subr.mxu0 0.0
    %1261 = vmatpush1.msra.mxu0 0.0
    %1262 = vmatprep.subr.mxu0 0.0
    %1263 = vmatpush1.msra.mxu0 0.0
    %1264 = vmatprep.subr.mxu0 0.0
    %1265 = vmatpush1.msra.mxu0 %v1229
    %1266 = vmatprep.subr.mxu0 0.0
    %1267 = vmatpush2.msra.mxu0 0.0
    %1268 = vmatprep.subr.mxu0 0.0
    %1269 = vmatpush2.msra.mxu0 0.0
    %1270 = vmatprep.subr.mxu0 0.0
    %1271 = vmatpush2.msra.mxu0 0.0
    %1272 = vmatprep.subr.mxu0 0.0
    %1273 = vmatpush2.msra.mxu0 0.0
    %1274 = vmatprep.subr.mxu0 0.0
    %1275 = vmatpush2.msra.mxu0 0.0
    %1276 = vmatprep.subr.mxu0 0.0
    %1277 = vmatpush2.msra.mxu0 0.0
    %1278 = vmatprep.subr.mxu0 0.0
    %1279 = vmatpush2.msra.mxu0 0.0
    %1280 = vmatprep.subr.mxu0 0.0
    %1281 = vmatpush2.msra.mxu0 0.0
    %1282 = vmatprep.subr.mxu0 0.0
    %1283 = vmatpush2.msra.mxu0 0.0
    %1284 = vmatprep.subr.mxu0 0.0
    %1285 = vmatpush2.msra.mxu0 0.0
    %1286 = vmatprep.subr.mxu0 0.0
    %1287 = vmatpush2.msra.mxu0 0.0
    %1288 = vmatprep.subr.mxu0 0.0
    %1289 = vmatpush2.msra.mxu0 0.0
    %1290 = vmatprep.subr.mxu0 0.0
    %1291 = vmatpush2.msra.mxu0 0.0
    %1292 = vmatprep.subr.mxu0 0.0
    %1293 = vmatpush2.msra.mxu0 0.0
    %1294 = vmatprep.subr.mxu0 0.0
    %1295 = vmatpush2.msra.mxu0 0.0
    %1296 = vmatprep.subr.mxu0 0.0
    %1297 = vmatpush2.msra.mxu0 0.0
    %1298 = vmatprep.mubr.f32.mxu0 0.0
    %1299 = vmatmul.mubr.f32.gmra.mxu0 %v1232
    %v1300 = vpop.f32.mrf.mxu0
    %v1301 = vadd.f32 0.0, %v1300
    %v1302 = vpop.f32.mrf.mxu0
    %1303 = vdwg.mxu0
    %1304 = vrot.lane.b32.xlu0 %v483, 112
    %v1305 = vpop.permute.xlu0 %1304
    %v1308 = vsel %vm386, %v1221, 0
    %1310 = vmatprep.subr.mxu0 0.0
    %1311 = vmatpush1.msra.mxu0 0.0
    %1312 = vmatprep.subr.mxu0 0.0
    %1313 = vmatpush1.msra.mxu0 0.0
    %1314 = vmatprep.subr.mxu0 0.0
    %1315 = vmatpush1.msra.mxu0 0.0
    %1316 = vmatprep.subr.mxu0 0.0
    %1317 = vmatpush1.msra.mxu0 0.0
    %1318 = vmatprep.subr.mxu0 0.0
    %1319 = vmatpush1.msra.mxu0 0.0
    %1320 = vmatprep.subr.mxu0 0.0
    %1321 = vmatpush1.msra.mxu0 0.0
    %1322 = vmatprep.subr.mxu0 0.0
    %1323 = vmatpush1.msra.mxu0 0.0
    %1324 = vmatprep.subr.mxu0 0.0
    %1325 = vmatpush1.msra.mxu0 0.0
    %1326 = vmatprep.subr.mxu0 0.0
    %1327 = vmatpush1.msra.mxu0 0.0
    %1328 = vmatprep.subr.mxu0 0.0
    %1329 = vmatpush1.msra.mxu0 0.0
    %1330 = vmatprep.subr.mxu0 0.0
    %1331 = vmatpush1.msra.mxu0 0.0
    %1332 = vmatprep.subr.mxu0 0.0
    %1333 = vmatpush1.msra.mxu0 0.0
    %1334 = vmatprep.subr.mxu0 0.0
    %1335 = vmatpush1.msra.mxu0 0.0
    %1336 = vmatprep.subr.mxu0 0.0
    %1337 = vmatpush1.msra.mxu0 0.0
    %1338 = vmatprep.subr.mxu0 0.0
    %1339 = vmatpush1.msra.mxu0 0.0
    %1340 = vmatprep.subr.mxu0 0.0
    %1341 = vmatpush1.msra.mxu0 %v1305
    %1342 = vmatprep.subr.mxu0 0.0
    %1343 = vmatpush2.msra.mxu0 0.0
    %1344 = vmatprep.subr.mxu0 0.0
    %1345 = vmatpush2.msra.mxu0 0.0
    %1346 = vmatprep.subr.mxu0 0.0
    %1347 = vmatpush2.msra.mxu0 0.0
    %1348 = vmatprep.subr.mxu0 0.0
    %1349 = vmatpush2.msra.mxu0 0.0
    %1350 = vmatprep.subr.mxu0 0.0
    %1351 = vmatpush2.msra.mxu0 0.0
    %1352 = vmatprep.subr.mxu0 0.0
    %1353 = vmatpush2.msra.mxu0 0.0
    %1354 = vmatprep.subr.mxu0 0.0
    %1355 = vmatpush2.msra.mxu0 0.0
    %1356 = vmatprep.subr.mxu0 0.0
    %1357 = vmatpush2.msra.mxu0 0.0
    %1358 = vmatprep.subr.mxu0 0.0
    %1359 = vmatpush2.msra.mxu0 0.0
    %1360 = vmatprep.subr.mxu0 0.0
    %1361 = vmatpush2.msra.mxu0 0.0
    %1362 = vmatprep.subr.mxu0 0.0
    %1363 = vmatpush2.msra.mxu0 0.0
    %1364 = vmatprep.subr.mxu0 0.0
    %1365 = vmatpush2.msra.mxu0 0.0
    %1366 = vmatprep.subr.mxu0 0.0
    %1367 = vmatpush2.msra.mxu0 0.0
    %1368 = vmatprep.subr.mxu0 0.0
    %1369 = vmatpush2.msra.mxu0 0.0
    %1370 = vmatprep.subr.mxu0 0.0
    %1371 = vmatpush2.msra.mxu0 0.0
    %1372 = vmatprep.subr.mxu0 0.0
    %1373 = vmatpush2.msra.mxu0 0.0
    %1374 = vmatprep.mubr.f32.mxu0 0.0
    %1375 = vmatmul.mubr.f32.gmra.mxu0 %v1308
    %v1376 = vpop.f32.mrf.mxu0
    %v1377 = vadd.f32 0.0, %v1376
    %v1378 = vpop.f32.mrf.mxu0
    %1379 = vdwg.mxu0
    %1380 = vrot.lane.b32.xlu0 %v488, 112
    %v1381 = vpop.permute.xlu0 %1380
    %v1384 = vsel %vm386, %v1222, 0
    %1386 = vmatprep.subr.mxu0 0.0
    %1387 = vmatpush1.msra.mxu0 0.0
    %1388 = vmatprep.subr.mxu0 0.0
    %1389 = vmatpush1.msra.mxu0 0.0
    %1390 = vmatprep.subr.mxu0 0.0
    %1391 = vmatpush1.msra.mxu0 0.0
    %1392 = vmatprep.subr.mxu0 0.0
    %1393 = vmatpush1.msra.mxu0 0.0
    %1394 = vmatprep.subr.mxu0 0.0
    %1395 = vmatpush1.msra.mxu0 0.0
    %1396 = vmatprep.subr.mxu0 0.0
    %1397 = vmatpush1.msra.mxu0 0.0
    %1398 = vmatprep.subr.mxu0 0.0
    %1399 = vmatpush1.msra.mxu0 0.0
    %1400 = vmatprep.subr.mxu0 0.0
    %1401 = vmatpush1.msra.mxu0 0.0
    %1402 = vmatprep.subr.mxu0 0.0
    %1403 = vmatpush1.msra.mxu0 0.0
    %1404 = vmatprep.subr.mxu0 0.0
    %1405 = vmatpush1.msra.mxu0 0.0
    %1406 = vmatprep.subr.mxu0 0.0
    %1407 = vmatpush1.msra.mxu0 0.0
    %1408 = vmatprep.subr.mxu0 0.0
    %1409 = vmatpush1.msra.mxu0 0.0
    %1410 = vmatprep.subr.mxu0 0.0
    %1411 = vmatpush1.msra.mxu0 0.0
    %1412 = vmatprep.subr.mxu0 0.0
    %1413 = vmatpush1.msra.mxu0 0.0
    %1414 = vmatprep.subr.mxu0 0.0
    %1415 = vmatpush1.msra.mxu0 0.0
    %1416 = vmatprep.subr.mxu0 0.0
    %1417 = vmatpush1.msra.mxu0 %v1381
    %1418 = vmatprep.subr.mxu0 0.0
    %1419 = vmatpush2.msra.mxu0 0.0
    %1420 = vmatprep.subr.mxu0 0.0
    %1421 = vmatpush2.msra.mxu0 0.0
    %1422 = vmatprep.subr.mxu0 0.0
    %1423 = vmatpush2.msra.mxu0 0.0
    %1424 = vmatprep.subr.mxu0 0.0
    %1425 = vmatpush2.msra.mxu0 0.0
    %1426 = vmatprep.subr.mxu0 0.0
    %1427 = vmatpush2.msra.mxu0 0.0
    %1428 = vmatprep.subr.mxu0 0.0
    %1429 = vmatpush2.msra.mxu0 0.0
    %1430 = vmatprep.subr.mxu0 0.0
    %1431 = vmatpush2.msra.mxu0 0.0
    %1432 = vmatprep.subr.mxu0 0.0
    %1433 = vmatpush2.msra.mxu0 0.0
    %1434 = vmatprep.subr.mxu0 0.0
    %1435 = vmatpush2.msra.mxu0 0.0
    %1436 = vmatprep.subr.mxu0 0.0
    %1437 = vmatpush2.msra.mxu0 0.0
    %1438 = vmatprep.subr.mxu0 0.0
    %1439 = vmatpush2.msra.mxu0 0.0
    %1440 = vmatprep.subr.mxu0 0.0
    %1441 = vmatpush2.msra.mxu0 0.0
    %1442 = vmatprep.subr.mxu0 0.0
    %1443 = vmatpush2.msra.mxu0 0.0
    %1444 = vmatprep.subr.mxu0 0.0
    %1445 = vmatpush2.msra.mxu0 0.0
    %1446 = vmatprep.subr.mxu0 0.0
    %1447 = vmatpush2.msra.mxu0 0.0
    %1448 = vmatprep.subr.mxu0 0.0
    %1449 = vmatpush2.msra.mxu0 0.0
    %1450 = vmatprep.mubr.f32.mxu0 0.0
    %1451 = vmatmul.mubr.f32.gmra.mxu0 %v1384
    %v1452 = vpop.f32.mrf.mxu0
    %v1453 = vadd.f32 0.0, %v1452
    %v1454 = vpop.f32.mrf.mxu0
    %1455 = vdwg.mxu0
    %1456 = vrot.lane.b32.xlu0 %v493, 112
    %v1457 = vpop.permute.xlu0 %1456
    %v1460 = vsel %vm386, %v1223, 0
    %1462 = vmatprep.subr.mxu0 0.0
    %1463 = vmatpush1.msra.mxu0 0.0
    %1464 = vmatprep.subr.mxu0 0.0
    %1465 = vmatpush1.msra.mxu0 0.0
    %1466 = vmatprep.subr.mxu0 0.0
    %1467 = vmatpush1.msra.mxu0 0.0
    %1468 = vmatprep.subr.mxu0 0.0
    %1469 = vmatpush1.msra.mxu0 0.0
    %1470 = vmatprep.subr.mxu0 0.0
    %1471 = vmatpush1.msra.mxu0 0.0
    %1472 = vmatprep.subr.mxu0 0.0
    %1473 = vmatpush1.msra.mxu0 0.0
    %1474 = vmatprep.subr.mxu0 0.0
    %1475 = vmatpush1.msra.mxu0 0.0
    %1476 = vmatprep.subr.mxu0 0.0
    %1477 = vmatpush1.msra.mxu0 0.0
    %1478 = vmatprep.subr.mxu0 0.0
    %1479 = vmatpush1.msra.mxu0 0.0
    %1480 = vmatprep.subr.mxu0 0.0
    %1481 = vmatpush1.msra.mxu0 0.0
    %1482 = vmatprep.subr.mxu0 0.0
    %1483 = vmatpush1.msra.mxu0 0.0
    %1484 = vmatprep.subr.mxu0 0.0
    %1485 = vmatpush1.msra.mxu0 0.0
    %1486 = vmatprep.subr.mxu0 0.0
    %1487 = vmatpush1.msra.mxu0 0.0
    %1488 = vmatprep.subr.mxu0 0.0
    %1489 = vmatpush1.msra.mxu0 0.0
    %1490 = vmatprep.subr.mxu0 0.0
    %1491 = vmatpush1.msra.mxu0 0.0
    %1492 = vmatprep.subr.mxu0 0.0
    %1493 = vmatpush1.msra.mxu0 %v1457
    %1494 = vmatprep.subr.mxu0 0.0
    %1495 = vmatpush2.msra.mxu0 0.0
    %1496 = vmatprep.subr.mxu0 0.0
    %1497 = vmatpush2.msra.mxu0 0.0
    %1498 = vmatprep.subr.mxu0 0.0
    %1499 = vmatpush2.msra.mxu0 0.0
    %1500 = vmatprep.subr.mxu0 0.0
    %1501 = vmatpush2.msra.mxu0 0.0
    %1502 = vmatprep.subr.mxu0 0.0
    %1503 = vmatpush2.msra.mxu0 0.0
    %1504 = vmatprep.subr.mxu0 0.0
    %1505 = vmatpush2.msra.mxu0 0.0
    %1506 = vmatprep.subr.mxu0 0.0
    %1507 = vmatpush2.msra.mxu0 0.0
    %1508 = vmatprep.subr.mxu0 0.0
    %1509 = vmatpush2.msra.mxu0 0.0
    %1510 = vmatprep.subr.mxu0 0.0
    %1511 = vmatpush2.msra.mxu0 0.0
    %1512 = vmatprep.subr.mxu0 0.0
    %1513 = vmatpush2.msra.mxu0 0.0
    %1514 = vmatprep.subr.mxu0 0.0
    %1515 = vmatpush2.msra.mxu0 0.0
    %1516 = vmatprep.subr.mxu0 0.0
    %1517 = vmatpush2.msra.mxu0 0.0
    %1518 = vmatprep.subr.mxu0 0.0
    %1519 = vmatpush2.msra.mxu0 0.0
    %1520 = vmatprep.subr.mxu0 0.0
    %1521 = vmatpush2.msra.mxu0 0.0
    %1522 = vmatprep.subr.mxu0 0.0
    %1523 = vmatpush2.msra.mxu0 0.0
    %1524 = vmatprep.subr.mxu0 0.0
    %1525 = vmatpush2.msra.mxu0 0.0
    %1526 = vmatprep.mubr.f32.mxu0 0.0
    %1527 = vmatmul.mubr.f32.gmra.mxu0 %v1460
    %v1528 = vpop.f32.mrf.mxu0
    %v1529 = vadd.f32 0.0, %v1528
    %v1530 = vpop.f32.mrf.mxu0
    %1531 = vdwg.mxu0
    %1532 = vrot.lane.b32.xlu0 %v498, 112
    %v1533 = vpop.permute.xlu0 %1532
    %v1536 = vsel %vm386, %v1224, 0
    %1538 = vmatprep.subr.mxu0 0.0
    %1539 = vmatpush1.msra.mxu0 0.0
    %1540 = vmatprep.subr.mxu0 0.0
    %1541 = vmatpush1.msra.mxu0 0.0
    %1542 = vmatprep.subr.mxu0 0.0
    %1543 = vmatpush1.msra.mxu0 0.0
    %1544 = vmatprep.subr.mxu0 0.0
    %1545 = vmatpush1.msra.mxu0 0.0
    %1546 = vmatprep.subr.mxu0 0.0
    %1547 = vmatpush1.msra.mxu0 0.0
    %1548 = vmatprep.subr.mxu0 0.0
    %1549 = vmatpush1.msra.mxu0 0.0
    %1550 = vmatprep.subr.mxu0 0.0
    %1551 = vmatpush1.msra.mxu0 0.0
    %1552 = vmatprep.subr.mxu0 0.0
    %1553 = vmatpush1.msra.mxu0 0.0
    %1554 = vmatprep.subr.mxu0 0.0
    %1555 = vmatpush1.msra.mxu0 0.0
    %1556 = vmatprep.subr.mxu0 0.0
    %1557 = vmatpush1.msra.mxu0 0.0
    %1558 = vmatprep.subr.mxu0 0.0
    %1559 = vmatpush1.msra.mxu0 0.0
    %1560 = vmatprep.subr.mxu0 0.0
    %1561 = vmatpush1.msra.mxu0 0.0
    %1562 = vmatprep.subr.mxu0 0.0
    %1563 = vmatpush1.msra.mxu0 0.0
    %1564 = vmatprep.subr.mxu0 0.0
    %1565 = vmatpush1.msra.mxu0 0.0
    %1566 = vmatprep.subr.mxu0 0.0
    %1567 = vmatpush1.msra.mxu0 0.0
    %1568 = vmatprep.subr.mxu0 0.0
    %1569 = vmatpush1.msra.mxu0 %v1533
    %1570 = vmatprep.subr.mxu0 0.0
    %1571 = vmatpush2.msra.mxu0 0.0
    %1572 = vmatprep.subr.mxu0 0.0
    %1573 = vmatpush2.msra.mxu0 0.0
    %1574 = vmatprep.subr.mxu0 0.0
    %1575 = vmatpush2.msra.mxu0 0.0
    %1576 = vmatprep.subr.mxu0 0.0
    %1577 = vmatpush2.msra.mxu0 0.0
    %1578 = vmatprep.subr.mxu0 0.0
    %1579 = vmatpush2.msra.mxu0 0.0
    %1580 = vmatprep.subr.mxu0 0.0
    %1581 = vmatpush2.msra.mxu0 0.0
    %1582 = vmatprep.subr.mxu0 0.0
    %1583 = vmatpush2.msra.mxu0 0.0
    %1584 = vmatprep.subr.mxu0 0.0
    %1585 = vmatpush2.msra.mxu0 0.0
    %1586 = vmatprep.subr.mxu0 0.0
    %1587 = vmatpush2.msra.mxu0 0.0
    %1588 = vmatprep.subr.mxu0 0.0
    %1589 = vmatpush2.msra.mxu0 0.0
    %1590 = vmatprep.subr.mxu0 0.0
    %1591 = vmatpush2.msra.mxu0 0.0
    %1592 = vmatprep.subr.mxu0 0.0
    %1593 = vmatpush2.msra.mxu0 0.0
    %1594 = vmatprep.subr.mxu0 0.0
    %1595 = vmatpush2.msra.mxu0 0.0
    %1596 = vmatprep.subr.mxu0 0.0
    %1597 = vmatpush2.msra.mxu0 0.0
    %1598 = vmatprep.subr.mxu0 0.0
    %1599 = vmatpush2.msra.mxu0 0.0
    %1600 = vmatprep.subr.mxu0 0.0
    %1601 = vmatpush2.msra.mxu0 0.0
    %1602 = vmatprep.mubr.f32.mxu0 0.0
    %1603 = vmatmul.mubr.f32.gmra.mxu0 %v1536
    %v1604 = vpop.f32.mrf.mxu0
    %v1605 = vadd.f32 0.0, %v1604
    %v1606 = vpop.f32.mrf.mxu0
    %1607 = vdwg.mxu0
    %1608 = vrot.lane.b32.xlu0 %v503, 112
    %v1609 = vpop.permute.xlu0 %1608
    %v1612 = vsel %vm386, %v1225, 0
    %1614 = vmatprep.subr.mxu0 0.0
    %1615 = vmatpush1.msra.mxu0 0.0
    %1616 = vmatprep.subr.mxu0 0.0
    %1617 = vmatpush1.msra.mxu0 0.0
    %1618 = vmatprep.subr.mxu0 0.0
    %1619 = vmatpush1.msra.mxu0 0.0
    %1620 = vmatprep.subr.mxu0 0.0
    %1621 = vmatpush1.msra.mxu0 0.0
    %1622 = vmatprep.subr.mxu0 0.0
    %1623 = vmatpush1.msra.mxu0 0.0
    %1624 = vmatprep.subr.mxu0 0.0
    %1625 = vmatpush1.msra.mxu0 0.0
    %1626 = vmatprep.subr.mxu0 0.0
    %1627 = vmatpush1.msra.mxu0 0.0
    %1628 = vmatprep.subr.mxu0 0.0
    %1629 = vmatpush1.msra.mxu0 0.0
    %1630 = vmatprep.subr.mxu0 0.0
    %1631 = vmatpush1.msra.mxu0 0.0
    %1632 = vmatprep.subr.mxu0 0.0
    %1633 = vmatpush1.msra.mxu0 0.0
    %1634 = vmatprep.subr.mxu0 0.0
    %1635 = vmatpush1.msra.mxu0 0.0
    %1636 = vmatprep.subr.mxu0 0.0
    %1637 = vmatpush1.msra.mxu0 0.0
    %1638 = vmatprep.subr.mxu0 0.0
    %1639 = vmatpush1.msra.mxu0 0.0
    %1640 = vmatprep.subr.mxu0 0.0
    %1641 = vmatpush1.msra.mxu0 0.0
    %1642 = vmatprep.subr.mxu0 0.0
    %1643 = vmatpush1.msra.mxu0 0.0
    %1644 = vmatprep.subr.mxu0 0.0
    %1645 = vmatpush1.msra.mxu0 %v1609
    %1646 = vmatprep.subr.mxu0 0.0
    %1647 = vmatpush2.msra.mxu0 0.0
    %1648 = vmatprep.subr.mxu0 0.0
    %1649 = vmatpush2.msra.mxu0 0.0
    %1650 = vmatprep.subr.mxu0 0.0
    %1651 = vmatpush2.msra.mxu0 0.0
    %1652 = vmatprep.subr.mxu0 0.0
    %1653 = vmatpush2.msra.mxu0 0.0
    %1654 = vmatprep.subr.mxu0 0.0
    %1655 = vmatpush2.msra.mxu0 0.0
    %1656 = vmatprep.subr.mxu0 0.0
    %1657 = vmatpush2.msra.mxu0 0.0
    %1658 = vmatprep.subr.mxu0 0.0
    %1659 = vmatpush2.msra.mxu0 0.0
    %1660 = vmatprep.subr.mxu0 0.0
    %1661 = vmatpush2.msra.mxu0 0.0
    %1662 = vmatprep.subr.mxu0 0.0
    %1663 = vmatpush2.msra.mxu0 0.0
    %1664 = vmatprep.subr.mxu0 0.0
    %1665 = vmatpush2.msra.mxu0 0.0
    %1666 = vmatprep.subr.mxu0 0.0
    %1667 = vmatpush2.msra.mxu0 0.0
    %1668 = vmatprep.subr.mxu0 0.0
    %1669 = vmatpush2.msra.mxu0 0.0
    %1670 = vmatprep.subr.mxu0 0.0
    %1671 = vmatpush2.msra.mxu0 0.0
    %1672 = vmatprep.subr.mxu0 0.0
    %1673 = vmatpush2.msra.mxu0 0.0
    %1674 = vmatprep.subr.mxu0 0.0
    %1675 = vmatpush2.msra.mxu0 0.0
    %1676 = vmatprep.subr.mxu0 0.0
    %1677 = vmatpush2.msra.mxu0 0.0
    %1678 = vmatprep.mubr.f32.mxu0 0.0
    %1679 = vmatmul.mubr.f32.gmra.mxu0 %v1612
    %v1680 = vpop.f32.mrf.mxu0
    %v1681 = vadd.f32 0.0, %v1680
    %v1682 = vpop.f32.mrf.mxu0
    %1683 = vdwg.mxu0
    %1684 = vrot.lane.b32.xlu0 %v508, 112
    %v1685 = vpop.permute.xlu0 %1684
    %v1688 = vsel %vm386, %v1226, 0
    %1690 = vmatprep.subr.mxu0 0.0
    %1691 = vmatpush1.msra.mxu0 0.0
    %1692 = vmatprep.subr.mxu0 0.0
    %1693 = vmatpush1.msra.mxu0 0.0
    %1694 = vmatprep.subr.mxu0 0.0
    %1695 = vmatpush1.msra.mxu0 0.0
    %1696 = vmatprep.subr.mxu0 0.0
    %1697 = vmatpush1.msra.mxu0 0.0
    %1698 = vmatprep.subr.mxu0 0.0
    %1699 = vmatpush1.msra.mxu0 0.0
    %1700 = vmatprep.subr.mxu0 0.0
    %1701 = vmatpush1.msra.mxu0 0.0
    %1702 = vmatprep.subr.mxu0 0.0
    %1703 = vmatpush1.msra.mxu0 0.0
    %1704 = vmatprep.subr.mxu0 0.0
    %1705 = vmatpush1.msra.mxu0 0.0
    %1706 = vmatprep.subr.mxu0 0.0
    %1707 = vmatpush1.msra.mxu0 0.0
    %1708 = vmatprep.subr.mxu0 0.0
    %1709 = vmatpush1.msra.mxu0 0.0
    %1710 = vmatprep.subr.mxu0 0.0
    %1711 = vmatpush1.msra.mxu0 0.0
    %1712 = vmatprep.subr.mxu0 0.0
    %1713 = vmatpush1.msra.mxu0 0.0
    %1714 = vmatprep.subr.mxu0 0.0
    %1715 = vmatpush1.msra.mxu0 0.0
    %1716 = vmatprep.subr.mxu0 0.0
    %1717 = vmatpush1.msra.mxu0 0.0
    %1718 = vmatprep.subr.mxu0 0.0
    %1719 = vmatpush1.msra.mxu0 0.0
    %1720 = vmatprep.subr.mxu0 0.0
    %1721 = vmatpush1.msra.mxu0 %v1685
    %1722 = vmatprep.subr.mxu0 0.0
    %1723 = vmatpush2.msra.mxu0 0.0
    %1724 = vmatprep.subr.mxu0 0.0
    %1725 = vmatpush2.msra.mxu0 0.0
    %1726 = vmatprep.subr.mxu0 0.0
    %1727 = vmatpush2.msra.mxu0 0.0
    %1728 = vmatprep.subr.mxu0 0.0
    %1729 = vmatpush2.msra.mxu0 0.0
    %1730 = vmatprep.subr.mxu0 0.0
    %1731 = vmatpush2.msra.mxu0 0.0
    %1732 = vmatprep.subr.mxu0 0.0
    %1733 = vmatpush2.msra.mxu0 0.0
    %1734 = vmatprep.subr.mxu0 0.0
    %1735 = vmatpush2.msra.mxu0 0.0
    %1736 = vmatprep.subr.mxu0 0.0
    %1737 = vmatpush2.msra.mxu0 0.0
    %1738 = vmatprep.subr.mxu0 0.0
    %1739 = vmatpush2.msra.mxu0 0.0
    %1740 = vmatprep.subr.mxu0 0.0
    %1741 = vmatpush2.msra.mxu0 0.0
    %1742 = vmatprep.subr.mxu0 0.0
    %1743 = vmatpush2.msra.mxu0 0.0
    %1744 = vmatprep.subr.mxu0 0.0
    %1745 = vmatpush2.msra.mxu0 0.0
    %1746 = vmatprep.subr.mxu0 0.0
    %1747 = vmatpush2.msra.mxu0 0.0
    %1748 = vmatprep.subr.mxu0 0.0
    %1749 = vmatpush2.msra.mxu0 0.0
    %1750 = vmatprep.subr.mxu0 0.0
    %1751 = vmatpush2.msra.mxu0 0.0
    %1752 = vmatprep.subr.mxu0 0.0
    %1753 = vmatpush2.msra.mxu0 0.0
    %1754 = vmatprep.mubr.f32.mxu0 0.0
    %1755 = vmatmul.mubr.f32.gmra.mxu0 %v1688
    %v1756 = vpop.f32.mrf.mxu0
    %v1757 = vadd.f32 0.0, %v1756
    %v1758 = vpop.f32.mrf.mxu0
    %1759 = vdwg.mxu0
    %1760 = vrot.lane.b32.xlu0 %v513, 112
    %v1761 = vpop.permute.xlu0 %1760
    %v1764 = vsel %vm386, %v1227, 0
    %1766 = vmatprep.subr.mxu0 0.0
    %1767 = vmatpush1.msra.mxu0 0.0
    %1768 = vmatprep.subr.mxu0 0.0
    %1769 = vmatpush1.msra.mxu0 0.0
    %1770 = vmatprep.subr.mxu0 0.0
    %1771 = vmatpush1.msra.mxu0 0.0
    %1772 = vmatprep.subr.mxu0 0.0
    %1773 = vmatpush1.msra.mxu0 0.0
    %1774 = vmatprep.subr.mxu0 0.0
    %1775 = vmatpush1.msra.mxu0 0.0
    %1776 = vmatprep.subr.mxu0 0.0
    %1777 = vmatpush1.msra.mxu0 0.0
    %1778 = vmatprep.subr.mxu0 0.0
    %1779 = vmatpush1.msra.mxu0 0.0
    %1780 = vmatprep.subr.mxu0 0.0
    %1781 = vmatpush1.msra.mxu0 0.0
    %1782 = vmatprep.subr.mxu0 0.0
    %1783 = vmatpush1.msra.mxu0 0.0
    %1784 = vmatprep.subr.mxu0 0.0
    %1785 = vmatpush1.msra.mxu0 0.0
    %1786 = vmatprep.subr.mxu0 0.0
    %1787 = vmatpush1.msra.mxu0 0.0
    %1788 = vmatprep.subr.mxu0 0.0
    %1789 = vmatpush1.msra.mxu0 0.0
    %1790 = vmatprep.subr.mxu0 0.0
    %1791 = vmatpush1.msra.mxu0 0.0
    %1792 = vmatprep.subr.mxu0 0.0
    %1793 = vmatpush1.msra.mxu0 0.0
    %1794 = vmatprep.subr.mxu0 0.0
    %1795 = vmatpush1.msra.mxu0 0.0
    %1796 = vmatprep.subr.mxu0 0.0
    %1797 = vmatpush1.msra.mxu0 %v1761
    %1798 = vmatprep.subr.mxu0 0.0
    %1799 = vmatpush2.msra.mxu0 0.0
    %1800 = vmatprep.subr.mxu0 0.0
    %1801 = vmatpush2.msra.mxu0 0.0
    %1802 = vmatprep.subr.mxu0 0.0
    %1803 = vmatpush2.msra.mxu0 0.0
    %1804 = vmatprep.subr.mxu0 0.0
    %1805 = vmatpush2.msra.mxu0 0.0
    %1806 = vmatprep.subr.mxu0 0.0
    %1807 = vmatpush2.msra.mxu0 0.0
    %1808 = vmatprep.subr.mxu0 0.0
    %1809 = vmatpush2.msra.mxu0 0.0
    %1810 = vmatprep.subr.mxu0 0.0
    %1811 = vmatpush2.msra.mxu0 0.0
    %1812 = vmatprep.subr.mxu0 0.0
    %1813 = vmatpush2.msra.mxu0 0.0
    %1814 = vmatprep.subr.mxu0 0.0
    %1815 = vmatpush2.msra.mxu0 0.0
    %1816 = vmatprep.subr.mxu0 0.0
    %1817 = vmatpush2.msra.mxu0 0.0
    %1818 = vmatprep.subr.mxu0 0.0
    %1819 = vmatpush2.msra.mxu0 0.0
    %1820 = vmatprep.subr.mxu0 0.0
    %1821 = vmatpush2.msra.mxu0 0.0
    %1822 = vmatprep.subr.mxu0 0.0
    %1823 = vmatpush2.msra.mxu0 0.0
    %1824 = vmatprep.subr.mxu0 0.0
    %1825 = vmatpush2.msra.mxu0 0.0
    %1826 = vmatprep.subr.mxu0 0.0
    %1827 = vmatpush2.msra.mxu0 0.0
    %1828 = vmatprep.subr.mxu0 0.0
    %1829 = vmatpush2.msra.mxu0 0.0
    %1830 = vmatprep.mubr.f32.mxu0 0.0
    %1831 = vmatmul.mubr.f32.gmra.mxu0 %v1764
    %v1832 = vpop.f32.mrf.mxu0
    %v1833 = vadd.f32 0.0, %v1832
    %v1834 = vpop.f32.mrf.mxu0
    %1835 = vdwg.mxu0
    %v1836 = vld [vmem:[%s7] sm:$0xff]
    %v1837 = vlaneseq
    %v1838 = vshrl.u32 %v1837, 7
    %v1839 = vsub.s32 1, %v1838
    %v1840 = vrot.slane %v42, %v1839
    %v1842 = vsel %vm386, %v1301, 0
    %v1845 = vsel %vm386, %v1377, 0
    %v1848 = vsel %vm386, %v1453, 0
    %v1851 = vsel %vm386, %v1529, 0
    %v1854 = vsel %vm386, %v1605, 0
    %v1857 = vsel %vm386, %v1681, 0
    %v1860 = vsel %vm386, %v1757, 0
    %v1863 = vsel %vm386, %v1833, 0
    %1865 = vmatprep.subr.mxu0 0.0
    %1866 = vmatpush1.msra.mxu0 0.0
    %1867 = vmatprep.subr.mxu0 0.0
    %1868 = vmatpush1.msra.mxu0 0.0
    %1869 = vmatprep.subr.mxu0 0.0
    %1870 = vmatpush1.msra.mxu0 0.0
    %1871 = vmatprep.subr.mxu0 0.0
    %1872 = vmatpush1.msra.mxu0 0.0
    %1873 = vmatprep.subr.mxu0 0.0
    %1874 = vmatpush1.msra.mxu0 0.0
    %1875 = vmatprep.subr.mxu0 0.0
    %1876 = vmatpush1.msra.mxu0 0.0
    %1877 = vmatprep.subr.mxu0 0.0
    %1878 = vmatpush1.msra.mxu0 0.0
    %1879 = vmatprep.subr.mxu0 0.0
    %1880 = vmatpush1.msra.mxu0 0.0
    %1881 = vmatprep.subr.mxu0 0.0
    %1882 = vmatpush1.msra.mxu0 0.0
    %1883 = vmatprep.subr.mxu0 0.0
    %1884 = vmatpush1.msra.mxu0 0.0
    %1885 = vmatprep.subr.mxu0 0.0
    %1886 = vmatpush1.msra.mxu0 0.0
    %1887 = vmatprep.subr.mxu0 0.0
    %1888 = vmatpush1.msra.mxu0 0.0
    %1889 = vmatprep.subr.mxu0 0.0
    %1890 = vmatpush1.msra.mxu0 0.0
    %1891 = vmatprep.subr.mxu0 0.0
    %1892 = vmatpush1.msra.mxu0 0.0
    %1893 = vmatprep.subr.mxu0 0.0
    %1894 = vmatpush1.msra.mxu0 0.0
    %1895 = vmatprep.subr.mxu0 0.0
    %1896 = vmatpush1.msra.mxu0 %v1836
    %1897 = vmatprep.subr.mxu0 0.0
    %1898 = vmatpush2.msra.mxu0 0.0
    %1899 = vmatprep.subr.mxu0 0.0
    %1900 = vmatpush2.msra.mxu0 0.0
    %1901 = vmatprep.subr.mxu0 0.0
    %1902 = vmatpush2.msra.mxu0 0.0
    %1903 = vmatprep.subr.mxu0 0.0
    %1904 = vmatpush2.msra.mxu0 0.0
    %1905 = vmatprep.subr.mxu0 0.0
    %1906 = vmatpush2.msra.mxu0 0.0
    %1907 = vmatprep.subr.mxu0 0.0
    %1908 = vmatpush2.msra.mxu0 0.0
    %1909 = vmatprep.subr.mxu0 0.0
    %1910 = vmatpush2.msra.mxu0 0.0
    %1911 = vmatprep.subr.mxu0 0.0
    %1912 = vmatpush2.msra.mxu0 0.0
    %1913 = vmatprep.subr.mxu0 0.0
    %1914 = vmatpush2.msra.mxu0 0.0
    %1915 = vmatprep.subr.mxu0 0.0
    %1916 = vmatpush2.msra.mxu0 0.0
    %1917 = vmatprep.subr.mxu0 0.0
    %1918 = vmatpush2.msra.mxu0 0.0
    %1919 = vmatprep.subr.mxu0 0.0
    %1920 = vmatpush2.msra.mxu0 0.0
    %1921 = vmatprep.subr.mxu0 0.0
    %1922 = vmatpush2.msra.mxu0 0.0
    %1923 = vmatprep.subr.mxu0 0.0
    %1924 = vmatpush2.msra.mxu0 0.0
    %1925 = vmatprep.subr.mxu0 0.0
    %1926 = vmatpush2.msra.mxu0 0.0
    %1927 = vmatprep.subr.mxu0 0.0
    %1928 = vmatpush2.msra.mxu0 0.0
    %1929 = vmatprep.mubr.f32.mxu0 0.0
    %1930 = vmatmul.mubr.f32.gmra.mxu0 %v1842
    %v1931 = vpop.f32.mrf.mxu0
    %v1932 = vadd.f32 %v1840, %v1931
    %v1933 = vpop.f32.mrf.mxu0
    %1934 = vmatprep.mubr.f32.mxu0 0.0
    %1935 = vmatmul.mubr.f32.gmra.mxu0 %v1845
    %v1936 = vpop.f32.mrf.mxu0
    %v1937 = vadd.f32 %v1840, %v1936
    %v1938 = vpop.f32.mrf.mxu0
    %1939 = vmatprep.mubr.f32.mxu0 0.0
    %1940 = vmatmul.mubr.f32.gmra.mxu0 %v1848
    %v1941 = vpop.f32.mrf.mxu0
    %v1942 = vadd.f32 %v1840, %v1941
    %v1943 = vpop.f32.mrf.mxu0
    %1944 = vmatprep.mubr.f32.mxu0 0.0
    %1945 = vmatmul.mubr.f32.gmra.mxu0 %v1851
    %v1946 = vpop.f32.mrf.mxu0
    %v1947 = vadd.f32 %v1840, %v1946
    %v1948 = vpop.f32.mrf.mxu0
    %1949 = vmatprep.mubr.f32.mxu0 0.0
    %1950 = vmatmul.mubr.f32.gmra.mxu0 %v1854
    %v1951 = vpop.f32.mrf.mxu0
    %v1952 = vadd.f32 %v1840, %v1951
    %v1953 = vpop.f32.mrf.mxu0
    %1954 = vmatprep.mubr.f32.mxu0 0.0
    %1955 = vmatmul.mubr.f32.gmra.mxu0 %v1857
    %v1956 = vpop.f32.mrf.mxu0
    %v1957 = vadd.f32 %v1840, %v1956
    %v1958 = vpop.f32.mrf.mxu0
    %1959 = vmatprep.mubr.f32.mxu0 0.0
    %1960 = vmatmul.mubr.f32.gmra.mxu0 %v1860
    %v1961 = vpop.f32.mrf.mxu0
    %v1962 = vadd.f32 %v1840, %v1961
    %v1963 = vpop.f32.mrf.mxu0
    %1964 = vmatprep.mubr.f32.mxu0 0.0
    %1965 = vmatmul.mubr.f32.gmra.mxu0 %v1863
    %v1966 = vpop.f32.mrf.mxu0
    %v1967 = vadd.f32 %v1840, %v1966
    %v1968 = vpop.f32.mrf.mxu0
    %1969 = vdwg.mxu0
    %v1970 = vadd.f32 %v370, %v1932
    %v1971 = vadd.f32 %v371, %v1937
    %v1972 = vadd.f32 %v372, %v1942
    %v1973 = vadd.f32 %v373, %v1947
    %v1974 = vadd.f32 %v374, %v1952
    %v1975 = vadd.f32 %v375, %v1957
    %v1976 = vadd.f32 %v376, %v1962
    %v1977 = vadd.f32 %v377, %v1967
    %v1978 = vsel %vm386, %v1970, 0.0
    %1979 = vadd.xlane.f32.xlu0 %v1978
    %v1980 = vpop.xlane.xlu0 %1979
    %v1981 = vsel %vm386, %v1971, 0.0
    %1982 = vadd.xlane.f32.xlu0 %v1981
    %v1983 = vpop.xlane.xlu0 %1982
    %v1984 = vsel %vm386, %v1972, 0.0
    %1985 = vadd.xlane.f32.xlu0 %v1984
    %v1986 = vpop.xlane.xlu0 %1985
    %v1987 = vsel %vm386, %v1973, 0.0
    %1988 = vadd.xlane.f32.xlu0 %v1987
    %v1989 = vpop.xlane.xlu0 %1988
    %v1990 = vsel %vm386, %v1974, 0.0
    %1991 = vadd.xlane.f32.xlu0 %v1990
    %v1992 = vpop.xlane.xlu0 %1991
    %v1993 = vsel %vm386, %v1975, 0.0
    %1994 = vadd.xlane.f32.xlu0 %v1993
    %v1995 = vpop.xlane.xlu0 %1994
    %v1996 = vsel %vm386, %v1976, 0.0
    %1997 = vadd.xlane.f32.xlu0 %v1996
    %v1998 = vpop.xlane.xlu0 %1997
    %v1999 = vsel %vm386, %v1977, 0.0
    %2000 = vadd.xlane.f32.xlu0 %v1999
    %v2001 = vpop.xlane.xlu0 %2000
    %v2002 = vrcp.pop 8.0
    %v2003 = vmul.f32 %v1980, %v2002
    %v2004 = vmul.f32 %v1983, %v2002
    %v2005 = vmul.f32 %v1986, %v2002
    %v2006 = vmul.f32 %v1989, %v2002
    %v2007 = vmul.f32 %v1992, %v2002
    %v2008 = vmul.f32 %v1995, %v2002
    %v2009 = vmul.f32 %v1998, %v2002
    %v2010 = vmul.f32 %v2001, %v2002
    %v2011 = vsub.f32 %v1970, %v2003
    %v2012 = vsub.f32 %v1971, %v2004
    %v2013 = vsub.f32 %v1972, %v2005
    %v2014 = vsub.f32 %v1973, %v2006
    %v2015 = vsub.f32 %v1974, %v2007
    %v2016 = vsub.f32 %v1975, %v2008
    %v2017 = vsub.f32 %v1976, %v2009
    %v2018 = vsub.f32 %v1977, %v2010
    %v2019 = vmul.f32 %v2011, %v2011
    %v2020 = vmul.f32 %v2012, %v2012
    %v2021 = vmul.f32 %v2013, %v2013
    %v2022 = vmul.f32 %v2014, %v2014
    %v2023 = vmul.f32 %v2015, %v2015
    %v2024 = vmul.f32 %v2016, %v2016
    %v2025 = vmul.f32 %v2017, %v2017
    %v2026 = vmul.f32 %v2018, %v2018
    %v2027 = vsel %vm386, %v2019, 0.0
    %2028 = vadd.xlane.f32.xlu0 %v2027
    %v2029 = vpop.xlane.xlu0 %2028
    %v2030 = vsel %vm386, %v2020, 0.0
    %2031 = vadd.xlane.f32.xlu0 %v2030
    %v2032 = vpop.xlane.xlu0 %2031
    %v2033 = vsel %vm386, %v2021, 0.0
    %2034 = vadd.xlane.f32.xlu0 %v2033
    %v2035 = vpop.xlane.xlu0 %2034
    %v2036 = vsel %vm386, %v2022, 0.0
    %2037 = vadd.xlane.f32.xlu0 %v2036
    %v2038 = vpop.xlane.xlu0 %2037
    %v2039 = vsel %vm386, %v2023, 0.0
    %2040 = vadd.xlane.f32.xlu0 %v2039
    %v2041 = vpop.xlane.xlu0 %2040
    %v2042 = vsel %vm386, %v2024, 0.0
    %2043 = vadd.xlane.f32.xlu0 %v2042
    %v2044 = vpop.xlane.xlu0 %2043
    %v2045 = vsel %vm386, %v2025, 0.0
    %2046 = vadd.xlane.f32.xlu0 %v2045
    %v2047 = vpop.xlane.xlu0 %2046
    %v2048 = vsel %vm386, %v2026, 0.0
    %2049 = vadd.xlane.f32.xlu0 %v2048
    %v2050 = vpop.xlane.xlu0 %2049
    %v2051 = vmul.f32 %v2029, %v2002
    %v2052 = vmul.f32 %v2032, %v2002
    %v2053 = vmul.f32 %v2035, %v2002
    %v2054 = vmul.f32 %v2038, %v2002
    %v2055 = vmul.f32 %v2041, %v2002
    %v2056 = vmul.f32 %v2044, %v2002
    %v2057 = vmul.f32 %v2047, %v2002
    %v2058 = vmul.f32 %v2050, %v2002
    %v2059 = vadd.f32 %v2051, 1e-05
    %v2060 = vadd.f32 %v2052, 1e-05
    %v2061 = vadd.f32 %v2053, 1e-05
    %v2062 = vadd.f32 %v2054, 1e-05
    %v2063 = vadd.f32 %v2055, 1e-05
    %v2064 = vadd.f32 %v2056, 1e-05
    %v2065 = vadd.f32 %v2057, 1e-05
    %v2066 = vadd.f32 %v2058, 1e-05
    %v2067 = vrsqrt.pop %v2059
    %v2068 = vrsqrt.pop %v2060
    %v2069 = vrsqrt.pop %v2061
    %v2070 = vrsqrt.pop %v2062
    %v2071 = vrsqrt.pop %v2063
    %v2072 = vrsqrt.pop %v2064
    %v2073 = vrsqrt.pop %v2065
    %v2074 = vrsqrt.pop %v2066
    %v2075 = vmul.f32 %v2011, %v2067
    %v2076 = vmul.f32 %v2012, %v2068
    %v2077 = vmul.f32 %v2013, %v2069
    %v2078 = vmul.f32 %v2014, %v2070
    %v2079 = vmul.f32 %v2015, %v2071
    %v2080 = vmul.f32 %v2016, %v2072
    %v2081 = vmul.f32 %v2017, %v2073
    %v2082 = vmul.f32 %v2018, %v2074
    %v2083 = vlaneseq
    %v2084 = vshrl.u32 %v2083, 7
    %v2085 = vsub.s32 3, %v2084
    %v2086 = vrot.slane %v42, %v2085
    %v2087 = vmul.f32 %v2075, %v2086
    %v2088 = vmul.f32 %v2076, %v2086
    %v2089 = vmul.f32 %v2077, %v2086
    %v2090 = vmul.f32 %v2078, %v2086
    %v2091 = vmul.f32 %v2079, %v2086
    %v2092 = vmul.f32 %v2080, %v2086
    %v2093 = vmul.f32 %v2081, %v2086
    %v2094 = vmul.f32 %v2082, %v2086
    %v2095 = vlaneseq
    %v2096 = vshrl.u32 %v2095, 7
    %v2097 = vsub.s32 4, %v2096
    %v2098 = vrot.slane %v42, %v2097
    %v2099 = vadd.f32 %v2087, %v2098
    %v2100 = vadd.f32 %v2088, %v2098
    %v2101 = vadd.f32 %v2089, %v2098
    %v2102 = vadd.f32 %v2090, %v2098
    %v2103 = vadd.f32 %v2091, %v2098
    %v2104 = vadd.f32 %v2092, %v2098
    %v2105 = vadd.f32 %v2093, %v2098
    %v2106 = vadd.f32 %v2094, %v2098
    %v2107 = vld [vmem:[%s8] sm:$0xff]
    %v2108 = vld [vmem:[%s9] sm:$0x1]
    %v2110 = vlaneseq
    %v2111 = vshrl.u32 %v2110, 7
    %v2112 = vsub.s32 0, %v2111
    %v2113 = vrot.slane %v2108, %v2112
    %v2116 = vsel %vm386, %v2099, 0
    %v2119 = vsel %vm386, %v2100, 0
    %v2122 = vsel %vm386, %v2101, 0
    %v2125 = vsel %vm386, %v2102, 0
    %v2128 = vsel %vm386, %v2103, 0
    %v2131 = vsel %vm386, %v2104, 0
    %v2134 = vsel %vm386, %v2105, 0
    %v2137 = vsel %vm386, %v2106, 0
    %2139 = vmatprep.subr.mxu0 0.0
    %2140 = vmatpush1.msra.mxu0 0.0
    %2141 = vmatprep.subr.mxu0 0.0
    %2142 = vmatpush1.msra.mxu0 0.0
    %2143 = vmatprep.subr.mxu0 0.0
    %2144 = vmatpush1.msra.mxu0 0.0
    %2145 = vmatprep.subr.mxu0 0.0
    %2146 = vmatpush1.msra.mxu0 0.0
    %2147 = vmatprep.subr.mxu0 0.0
    %2148 = vmatpush1.msra.mxu0 0.0
    %2149 = vmatprep.subr.mxu0 0.0
    %2150 = vmatpush1.msra.mxu0 0.0
    %2151 = vmatprep.subr.mxu0 0.0
    %2152 = vmatpush1.msra.mxu0 0.0
    %2153 = vmatprep.subr.mxu0 0.0
    %2154 = vmatpush1.msra.mxu0 0.0
    %2155 = vmatprep.subr.mxu0 0.0
    %2156 = vmatpush1.msra.mxu0 0.0
    %2157 = vmatprep.subr.mxu0 0.0
    %2158 = vmatpush1.msra.mxu0 0.0
    %2159 = vmatprep.subr.mxu0 0.0
    %2160 = vmatpush1.msra.mxu0 0.0
    %2161 = vmatprep.subr.mxu0 0.0
    %2162 = vmatpush1.msra.mxu0 0.0
    %2163 = vmatprep.subr.mxu0 0.0
    %2164 = vmatpush1.msra.mxu0 0.0
    %2165 = vmatprep.subr.mxu0 0.0
    %2166 = vmatpush1.msra.mxu0 0.0
    %2167 = vmatprep.subr.mxu0 0.0
    %2168 = vmatpush1.msra.mxu0 0.0
    %2169 = vmatprep.subr.mxu0 0.0
    %2170 = vmatpush1.msra.mxu0 %v2107
    %2171 = vmatprep.subr.mxu0 0.0
    %2172 = vmatpush2.msra.mxu0 0.0
    %2173 = vmatprep.subr.mxu0 0.0
    %2174 = vmatpush2.msra.mxu0 0.0
    %2175 = vmatprep.subr.mxu0 0.0
    %2176 = vmatpush2.msra.mxu0 0.0
    %2177 = vmatprep.subr.mxu0 0.0
    %2178 = vmatpush2.msra.mxu0 0.0
    %2179 = vmatprep.subr.mxu0 0.0
    %2180 = vmatpush2.msra.mxu0 0.0
    %2181 = vmatprep.subr.mxu0 0.0
    %2182 = vmatpush2.msra.mxu0 0.0
    %2183 = vmatprep.subr.mxu0 0.0
    %2184 = vmatpush2.msra.mxu0 0.0
    %2185 = vmatprep.subr.mxu0 0.0
    %2186 = vmatpush2.msra.mxu0 0.0
    %2187 = vmatprep.subr.mxu0 0.0
    %2188 = vmatpush2.msra.mxu0 0.0
    %2189 = vmatprep.subr.mxu0 0.0
    %2190 = vmatpush2.msra.mxu0 0.0
    %2191 = vmatprep.subr.mxu0 0.0
    %2192 = vmatpush2.msra.mxu0 0.0
    %2193 = vmatprep.subr.mxu0 0.0
    %2194 = vmatpush2.msra.mxu0 0.0
    %2195 = vmatprep.subr.mxu0 0.0
    %2196 = vmatpush2.msra.mxu0 0.0
    %2197 = vmatprep.subr.mxu0 0.0
    %2198 = vmatpush2.msra.mxu0 0.0
    %2199 = vmatprep.subr.mxu0 0.0
    %2200 = vmatpush2.msra.mxu0 0.0
    %2201 = vmatprep.subr.mxu0 0.0
    %2202 = vmatpush2.msra.mxu0 0.0
    %2203 = vmatprep.mubr.f32.mxu0 0.0
    %2204 = vmatmul.mubr.f32.gmra.mxu0 %v2116
    %v2205 = vpop.f32.mrf.mxu0
    %v2206 = vadd.f32 %v2113, %v2205
    %v2207 = vpop.f32.mrf.mxu0
    %2208 = vmatprep.mubr.f32.mxu0 0.0
    %2209 = vmatmul.mubr.f32.gmra.mxu0 %v2119
    %v2210 = vpop.f32.mrf.mxu0
    %v2211 = vadd.f32 %v2113, %v2210
    %v2212 = vpop.f32.mrf.mxu0
    %2213 = vmatprep.mubr.f32.mxu0 0.0
    %2214 = vmatmul.mubr.f32.gmra.mxu0 %v2122
    %v2215 = vpop.f32.mrf.mxu0
    %v2216 = vadd.f32 %v2113, %v2215
    %v2217 = vpop.f32.mrf.mxu0
    %2218 = vmatprep.mubr.f32.mxu0 0.0
    %2219 = vmatmul.mubr.f32.gmra.mxu0 %v2125
    %v2220 = vpop.f32.mrf.mxu0
    %v2221 = vadd.f32 %v2113, %v2220
    %v2222 = vpop.f32.mrf.mxu0
    %2223 = vmatprep.mubr.f32.mxu0 0.0
    %2224 = vmatmul.mubr.f32.gmra.mxu0 %v2128
    %v2225 = vpop.f32.mrf.mxu0
    %v2226 = vadd.f32 %v2113, %v2225
    %v2227 = vpop.f32.mrf.mxu0
    %2228 = vmatprep.mubr.f32.mxu0 0.0
    %2229 = vmatmul.mubr.f32.gmra.mxu0 %v2131
    %v2230 = vpop.f32.mrf.mxu0
    %v2231 = vadd.f32 %v2113, %v2230
    %v2232 = vpop.f32.mrf.mxu0
    %2233 = vmatprep.mubr.f32.mxu0 0.0
    %2234 = vmatmul.mubr.f32.gmra.mxu0 %v2134
    %v2235 = vpop.f32.mrf.mxu0
    %v2236 = vadd.f32 %v2113, %v2235
    %v2237 = vpop.f32.mrf.mxu0
    %2238 = vmatprep.mubr.f32.mxu0 0.0
    %2239 = vmatmul.mubr.f32.gmra.mxu0 %v2137
    %v2240 = vpop.f32.mrf.mxu0
    %v2241 = vadd.f32 %v2113, %v2240
    %v2242 = vpop.f32.mrf.mxu0
    %2243 = vdwg.mxu0
    %v2244 = vmax.f32 %v2206, 0.0
    %v2245 = vmax.f32 %v2211, 0.0
    %v2246 = vmax.f32 %v2216, 0.0
    %v2247 = vmax.f32 %v2221, 0.0
    %v2248 = vmax.f32 %v2226, 0.0
    %v2249 = vmax.f32 %v2231, 0.0
    %v2250 = vmax.f32 %v2236, 0.0
    %v2251 = vmax.f32 %v2241, 0.0
    %v2252 = vld [vmem:[%s10] sm:$0xff]
    %v2253 = vlaneseq
    %v2254 = vshrl.u32 %v2253, 7
    %v2255 = vsub.s32 2, %v2254
    %v2256 = vrot.slane %v42, %v2255
    %v2258 = vsel %vm386, %v2244, 0
    %v2261 = vsel %vm386, %v2245, 0
    %v2264 = vsel %vm386, %v2246, 0
    %v2267 = vsel %vm386, %v2247, 0
    %v2270 = vsel %vm386, %v2248, 0
    %v2273 = vsel %vm386, %v2249, 0
    %v2276 = vsel %vm386, %v2250, 0
    %v2279 = vsel %vm386, %v2251, 0
    %2281 = vmatprep.subr.mxu0 0.0
    %2282 = vmatpush1.msra.mxu0 0.0
    %2283 = vmatprep.subr.mxu0 0.0
    %2284 = vmatpush1.msra.mxu0 0.0
    %2285 = vmatprep.subr.mxu0 0.0
    %2286 = vmatpush1.msra.mxu0 0.0
    %2287 = vmatprep.subr.mxu0 0.0
    %2288 = vmatpush1.msra.mxu0 0.0
    %2289 = vmatprep.subr.mxu0 0.0
    %2290 = vmatpush1.msra.mxu0 0.0
    %2291 = vmatprep.subr.mxu0 0.0
    %2292 = vmatpush1.msra.mxu0 0.0
    %2293 = vmatprep.subr.mxu0 0.0
    %2294 = vmatpush1.msra.mxu0 0.0
    %2295 = vmatprep.subr.mxu0 0.0
    %2296 = vmatpush1.msra.mxu0 0.0
    %2297 = vmatprep.subr.mxu0 0.0
    %2298 = vmatpush1.msra.mxu0 0.0
    %2299 = vmatprep.subr.mxu0 0.0
    %2300 = vmatpush1.msra.mxu0 0.0
    %2301 = vmatprep.subr.mxu0 0.0
    %2302 = vmatpush1.msra.mxu0 0.0
    %2303 = vmatprep.subr.mxu0 0.0
    %2304 = vmatpush1.msra.mxu0 0.0
    %2305 = vmatprep.subr.mxu0 0.0
    %2306 = vmatpush1.msra.mxu0 0.0
    %2307 = vmatprep.subr.mxu0 0.0
    %2308 = vmatpush1.msra.mxu0 0.0
    %2309 = vmatprep.subr.mxu0 0.0
    %2310 = vmatpush1.msra.mxu0 0.0
    %2311 = vmatprep.subr.mxu0 0.0
    %2312 = vmatpush1.msra.mxu0 %v2252
    %2313 = vmatprep.subr.mxu0 0.0
    %2314 = vmatpush2.msra.mxu0 0.0
    %2315 = vmatprep.subr.mxu0 0.0
    %2316 = vmatpush2.msra.mxu0 0.0
    %2317 = vmatprep.subr.mxu0 0.0
    %2318 = vmatpush2.msra.mxu0 0.0
    %2319 = vmatprep.subr.mxu0 0.0
    %2320 = vmatpush2.msra.mxu0 0.0
    %2321 = vmatprep.subr.mxu0 0.0
    %2322 = vmatpush2.msra.mxu0 0.0
    %2323 = vmatprep.subr.mxu0 0.0
    %2324 = vmatpush2.msra.mxu0 0.0
    %2325 = vmatprep.subr.mxu0 0.0
    %2326 = vmatpush2.msra.mxu0 0.0
    %2327 = vmatprep.subr.mxu0 0.0
    %2328 = vmatpush2.msra.mxu0 0.0
    %2329 = vmatprep.subr.mxu0 0.0
    %2330 = vmatpush2.msra.mxu0 0.0
    %2331 = vmatprep.subr.mxu0 0.0
    %2332 = vmatpush2.msra.mxu0 0.0
    %2333 = vmatprep.subr.mxu0 0.0
    %2334 = vmatpush2.msra.mxu0 0.0
    %2335 = vmatprep.subr.mxu0 0.0
    %2336 = vmatpush2.msra.mxu0 0.0
    %2337 = vmatprep.subr.mxu0 0.0
    %2338 = vmatpush2.msra.mxu0 0.0
    %2339 = vmatprep.subr.mxu0 0.0
    %2340 = vmatpush2.msra.mxu0 0.0
    %2341 = vmatprep.subr.mxu0 0.0
    %2342 = vmatpush2.msra.mxu0 0.0
    %2343 = vmatprep.subr.mxu0 0.0
    %2344 = vmatpush2.msra.mxu0 0.0
    %2345 = vmatprep.mubr.f32.mxu0 0.0
    %2346 = vmatmul.mubr.f32.gmra.mxu0 %v2258
    %v2347 = vpop.f32.mrf.mxu0
    %v2348 = vadd.f32 %v2256, %v2347
    %v2349 = vpop.f32.mrf.mxu0
    %2350 = vmatprep.mubr.f32.mxu0 0.0
    %2351 = vmatmul.mubr.f32.gmra.mxu0 %v2261
    %v2352 = vpop.f32.mrf.mxu0
    %v2353 = vadd.f32 %v2256, %v2352
    %v2354 = vpop.f32.mrf.mxu0
    %2355 = vmatprep.mubr.f32.mxu0 0.0
    %2356 = vmatmul.mubr.f32.gmra.mxu0 %v2264
    %v2357 = vpop.f32.mrf.mxu0
    %v2358 = vadd.f32 %v2256, %v2357
    %v2359 = vpop.f32.mrf.mxu0
    %2360 = vmatprep.mubr.f32.mxu0 0.0
    %2361 = vmatmul.mubr.f32.gmra.mxu0 %v2267
    %v2362 = vpop.f32.mrf.mxu0
    %v2363 = vadd.f32 %v2256, %v2362
    %v2364 = vpop.f32.mrf.mxu0
    %2365 = vmatprep.mubr.f32.mxu0 0.0
    %2366 = vmatmul.mubr.f32.gmra.mxu0 %v2270
    %v2367 = vpop.f32.mrf.mxu0
    %v2368 = vadd.f32 %v2256, %v2367
    %v2369 = vpop.f32.mrf.mxu0
    %2370 = vmatprep.mubr.f32.mxu0 0.0
    %2371 = vmatmul.mubr.f32.gmra.mxu0 %v2273
    %v2372 = vpop.f32.mrf.mxu0
    %v2373 = vadd.f32 %v2256, %v2372
    %v2374 = vpop.f32.mrf.mxu0
    %2375 = vmatprep.mubr.f32.mxu0 0.0
    %2376 = vmatmul.mubr.f32.gmra.mxu0 %v2276
    %v2377 = vpop.f32.mrf.mxu0
    %v2378 = vadd.f32 %v2256, %v2377
    %v2379 = vpop.f32.mrf.mxu0
    %2380 = vmatprep.mubr.f32.mxu0 0.0
    %2381 = vmatmul.mubr.f32.gmra.mxu0 %v2279
    %v2382 = vpop.f32.mrf.mxu0
    %v2383 = vadd.f32 %v2256, %v2382
    %v2384 = vpop.f32.mrf.mxu0
    %2385 = vdwg.mxu0
    %v2386 = vadd.f32 %v2099, %v2348
    %v2387 = vadd.f32 %v2100, %v2353
    %v2388 = vadd.f32 %v2101, %v2358
    %v2389 = vadd.f32 %v2102, %v2363
    %v2390 = vadd.f32 %v2103, %v2368
    %v2391 = vadd.f32 %v2104, %v2373
    %v2392 = vadd.f32 %v2105, %v2378
    %v2393 = vadd.f32 %v2106, %v2383
    %v2394 = vsel %vm386, %v2386, 0.0
    %2395 = vadd.xlane.f32.xlu0 %v2394
    %v2396 = vpop.xlane.xlu0 %2395
    %v2397 = vsel %vm386, %v2387, 0.0
    %2398 = vadd.xlane.f32.xlu0 %v2397
    %v2399 = vpop.xlane.xlu0 %2398
    %v2400 = vsel %vm386, %v2388, 0.0
    %2401 = vadd.xlane.f32.xlu0 %v2400
    %v2402 = vpop.xlane.xlu0 %2401
    %v2403 = vsel %vm386, %v2389, 0.0
    %2404 = vadd.xlane.f32.xlu0 %v2403
    %v2405 = vpop.xlane.xlu0 %2404
    %v2406 = vsel %vm386, %v2390, 0.0
    %2407 = vadd.xlane.f32.xlu0 %v2406
    %v2408 = vpop.xlane.xlu0 %2407
    %v2409 = vsel %vm386, %v2391, 0.0
    %2410 = vadd.xlane.f32.xlu0 %v2409
    %v2411 = vpop.xlane.xlu0 %2410
    %v2412 = vsel %vm386, %v2392, 0.0
    %2413 = vadd.xlane.f32.xlu0 %v2412
    %v2414 = vpop.xlane.xlu0 %2413
    %v2415 = vsel %vm386, %v2393, 0.0
    %2416 = vadd.xlane.f32.xlu0 %v2415
    %v2417 = vpop.xlane.xlu0 %2416
    %v2418 = vmul.f32 %v2396, %v2002
    %v2419 = vmul.f32 %v2399, %v2002
    %v2420 = vmul.f32 %v2402, %v2002
    %v2421 = vmul.f32 %v2405, %v2002
    %v2422 = vmul.f32 %v2408, %v2002
    %v2423 = vmul.f32 %v2411, %v2002
    %v2424 = vmul.f32 %v2414, %v2002
    %v2425 = vmul.f32 %v2417, %v2002
    %v2426 = vsub.f32 %v2386, %v2418
    %v2427 = vsub.f32 %v2387, %v2419
    %v2428 = vsub.f32 %v2388, %v2420
    %v2429 = vsub.f32 %v2389, %v2421
    %v2430 = vsub.f32 %v2390, %v2422
    %v2431 = vsub.f32 %v2391, %v2423
    %v2432 = vsub.f32 %v2392, %v2424
    %v2433 = vsub.f32 %v2393, %v2425
    %v2434 = vmul.f32 %v2426, %v2426
    %v2435 = vmul.f32 %v2427, %v2427
    %v2436 = vmul.f32 %v2428, %v2428
    %v2437 = vmul.f32 %v2429, %v2429
    %v2438 = vmul.f32 %v2430, %v2430
    %v2439 = vmul.f32 %v2431, %v2431
    %v2440 = vmul.f32 %v2432, %v2432
    %v2441 = vmul.f32 %v2433, %v2433
    %v2442 = vsel %vm386, %v2434, 0.0
    %2443 = vadd.xlane.f32.xlu0 %v2442
    %v2444 = vpop.xlane.xlu0 %2443
    %v2445 = vsel %vm386, %v2435, 0.0
    %2446 = vadd.xlane.f32.xlu0 %v2445
    %v2447 = vpop.xlane.xlu0 %2446
    %v2448 = vsel %vm386, %v2436, 0.0
    %2449 = vadd.xlane.f32.xlu0 %v2448
    %v2450 = vpop.xlane.xlu0 %2449
    %v2451 = vsel %vm386, %v2437, 0.0
    %2452 = vadd.xlane.f32.xlu0 %v2451
    %v2453 = vpop.xlane.xlu0 %2452
    %v2454 = vsel %vm386, %v2438, 0.0
    %2455 = vadd.xlane.f32.xlu0 %v2454
    %v2456 = vpop.xlane.xlu0 %2455
    %v2457 = vsel %vm386, %v2439, 0.0
    %2458 = vadd.xlane.f32.xlu0 %v2457
    %v2459 = vpop.xlane.xlu0 %2458
    %v2460 = vsel %vm386, %v2440, 0.0
    %2461 = vadd.xlane.f32.xlu0 %v2460
    %v2462 = vpop.xlane.xlu0 %2461
    %v2463 = vsel %vm386, %v2441, 0.0
    %2464 = vadd.xlane.f32.xlu0 %v2463
    %v2465 = vpop.xlane.xlu0 %2464
    %v2466 = vmul.f32 %v2444, %v2002
    %v2467 = vmul.f32 %v2447, %v2002
    %v2468 = vmul.f32 %v2450, %v2002
    %v2469 = vmul.f32 %v2453, %v2002
    %v2470 = vmul.f32 %v2456, %v2002
    %v2471 = vmul.f32 %v2459, %v2002
    %v2472 = vmul.f32 %v2462, %v2002
    %v2473 = vmul.f32 %v2465, %v2002
    %v2474 = vadd.f32 %v2466, 1e-05
    %v2475 = vadd.f32 %v2467, 1e-05
    %v2476 = vadd.f32 %v2468, 1e-05
    %v2477 = vadd.f32 %v2469, 1e-05
    %v2478 = vadd.f32 %v2470, 1e-05
    %v2479 = vadd.f32 %v2471, 1e-05
    %v2480 = vadd.f32 %v2472, 1e-05
    %v2481 = vadd.f32 %v2473, 1e-05
    %v2482 = vrsqrt.pop %v2474
    %v2483 = vrsqrt.pop %v2475
    %v2484 = vrsqrt.pop %v2476
    %v2485 = vrsqrt.pop %v2477
    %v2486 = vrsqrt.pop %v2478
    %v2487 = vrsqrt.pop %v2479
    %v2488 = vrsqrt.pop %v2480
    %v2489 = vrsqrt.pop %v2481
    %v2490 = vmul.f32 %v2426, %v2482
    %v2491 = vmul.f32 %v2427, %v2483
    %v2492 = vmul.f32 %v2428, %v2484
    %v2493 = vmul.f32 %v2429, %v2485
    %v2494 = vmul.f32 %v2430, %v2486
    %v2495 = vmul.f32 %v2431, %v2487
    %v2496 = vmul.f32 %v2432, %v2488
    %v2497 = vmul.f32 %v2433, %v2489
    %v2498 = vlaneseq
    %v2499 = vshrl.u32 %v2498, 7
    %v2500 = vsub.s32 5, %v2499
    %v2501 = vrot.slane %v42, %v2500
    %v2502 = vmul.f32 %v2490, %v2501
    %v2503 = vmul.f32 %v2491, %v2501
    %v2504 = vmul.f32 %v2492, %v2501
    %v2505 = vmul.f32 %v2493, %v2501
    %v2506 = vmul.f32 %v2494, %v2501
    %v2507 = vmul.f32 %v2495, %v2501
    %v2508 = vmul.f32 %v2496, %v2501
    %v2509 = vmul.f32 %v2497, %v2501
    %v2510 = vlaneseq
    %v2511 = vshrl.u32 %v2510, 7
    %v2512 = vsub.s32 6, %v2511
    %v2513 = vrot.slane %v42, %v2512
    %v2514 = vadd.f32 %v2502, %v2513
    %v2515 = vadd.f32 %v2503, %v2513
    %v2516 = vadd.f32 %v2504, %v2513
    %v2517 = vadd.f32 %v2505, %v2513
    %v2518 = vadd.f32 %v2506, %v2513
    %v2519 = vadd.f32 %v2507, %v2513
    %v2520 = vadd.f32 %v2508, %v2513
    %v2521 = vadd.f32 %v2509, %v2513
    %v2522 = vlaneseq
    %v2523 = vshrl.u32 %v2522, 7
    %v2524 = vsub.s32 7, %v2523
    %v2525 = vrot.slane %v42, %v2524
    %v2526 = vmul.f32 %v2514, %v2525
    %v2527 = vmul.f32 %v2515, %v2525
    %v2528 = vmul.f32 %v2516, %v2525
    %v2529 = vmul.f32 %v2517, %v2525
    %v2530 = vmul.f32 %v2518, %v2525
    %v2531 = vmul.f32 %v2519, %v2525
    %v2532 = vmul.f32 %v2520, %v2525
    %v2533 = vmul.f32 %v2521, %v2525
    %v2534 = vsel %vm386, %v2526, 0.0
    %2535 = vadd.xlane.f32.xlu0 %v2534
    %v2536 = vpop.xlane.xlu0 %2535
    %v2537 = vsel %vm386, %v2527, 0.0
    %2538 = vadd.xlane.f32.xlu0 %v2537
    %v2539 = vpop.xlane.xlu0 %2538
    %v2540 = vsel %vm386, %v2528, 0.0
    %2541 = vadd.xlane.f32.xlu0 %v2540
    %v2542 = vpop.xlane.xlu0 %2541
    %v2543 = vsel %vm386, %v2529, 0.0
    %2544 = vadd.xlane.f32.xlu0 %v2543
    %v2545 = vpop.xlane.xlu0 %2544
    %v2546 = vsel %vm386, %v2530, 0.0
    %2547 = vadd.xlane.f32.xlu0 %v2546
    %v2548 = vpop.xlane.xlu0 %2547
    %v2549 = vsel %vm386, %v2531, 0.0
    %2550 = vadd.xlane.f32.xlu0 %v2549
    %v2551 = vpop.xlane.xlu0 %2550
    %v2552 = vsel %vm386, %v2532, 0.0
    %2553 = vadd.xlane.f32.xlu0 %v2552
    %v2554 = vpop.xlane.xlu0 %2553
    %v2555 = vsel %vm386, %v2533, 0.0
    %2556 = vadd.xlane.f32.xlu0 %v2555
    %v2557 = vpop.xlane.xlu0 %2556
    %2559 = vset.pattern.permute.xlu0 0
    %2560 = vperm.xlu0 %2559, %v43
    %v2561 = vpop.permute.xlu0 %2560
    %v2562 = vlaneseq
    %v2563 = vshrl.u32 %v2562, 7
    %v2564 = vsub.s32 0, %v2563
    %v2565 = vrot.slane %v2561, %v2564
    %v2567 = vadd.f32 %v2536, %v2565
    %v2568 = vadd.f32 %v2539, %v2565
    %v2569 = vadd.f32 %v2542, %v2565
    %v2570 = vadd.f32 %v2545, %v2565
    %v2571 = vadd.f32 %v2548, %v2565
    %v2572 = vadd.f32 %v2551, %v2565
    %v2573 = vadd.f32 %v2554, %v2565
    %v2574 = vadd.f32 %v2557, %v2565
    %2583 = vset.pattern.permute.xlu0 0
    %2584 = vperm.xlu0 %2583, %v2567
    %v2585 = vpop.permute.xlu0 %2584
    %2586 = vset.pattern.permute.xlu0 0
    %2587 = vperm.xlu0 %2586, %v2568
    %v2588 = vpop.permute.xlu0 %2587
    %2589 = vset.pattern.permute.xlu0 0
    %2590 = vperm.xlu0 %2589, %v2569
    %v2591 = vpop.permute.xlu0 %2590
    %2592 = vset.pattern.permute.xlu0 0
    %2593 = vperm.xlu0 %2592, %v2570
    %v2594 = vpop.permute.xlu0 %2593
    %2595 = vset.pattern.permute.xlu0 0
    %2596 = vperm.xlu0 %2595, %v2571
    %v2597 = vpop.permute.xlu0 %2596
    %2598 = vset.pattern.permute.xlu0 0
    %2599 = vperm.xlu0 %2598, %v2572
    %v2600 = vpop.permute.xlu0 %2599
    %2601 = vset.pattern.permute.xlu0 0
    %2602 = vperm.xlu0 %2601, %v2573
    %v2603 = vpop.permute.xlu0 %2602
    %2604 = vset.pattern.permute.xlu0 0
    %2605 = vperm.xlu0 %2604, %v2574
    %v2606 = vpop.permute.xlu0 %2605
    %v2607 = vlaneseq
    %v2608 = vand.u32 %v2607, 127
    %v2609 = vlaneseq
    %v2610 = vshrl.u32 %v2609, 7
    %v2611 = vsub.s32 %v2608, %v2610
    %v2612 = vrot.slane %v2585, %v2611
    %v2613 = vadd.s32 %v2608, 4294967288
    %v2614 = vlaneseq
    %v2615 = vshrl.u32 %v2614, 7
    %v2616 = vsub.s32 %v2613, %v2615
    %v2617 = vrot.slane %v2588, %v2616
    %vm2618 = vcmask 130112
    %v2619 = vsel %vm2618, %v2617, %v2612
    %v2620 = vadd.s32 %v2608, 4294967280
    %v2621 = vlaneseq
    %v2622 = vshrl.u32 %v2621, 7
    %v2623 = vsub.s32 %v2620, %v2622
    %v2624 = vrot.slane %v2591, %v2623
    %vm2625 = vcmask 195712
    %v2626 = vsel %vm2625, %v2624, %v2619
    %v2627 = vadd.s32 %v2608, 4294967272
    %v2628 = vlaneseq
    %v2629 = vshrl.u32 %v2628, 7
    %v2630 = vsub.s32 %v2627, %v2629
    %v2631 = vrot.slane %v2594, %v2630
    %vm2632 = vcmask 261312
    %v2633 = vsel %vm2632, %v2631, %v2626
    %v2634 = vadd.s32 %v2608, 4294967264
    %v2635 = vlaneseq
    %v2636 = vshrl.u32 %v2635, 7
    %v2637 = vsub.s32 %v2634, %v2636
    %v2638 = vrot.slane %v2597, %v2637
    %vm2639 = vcmask 326912
    %v2640 = vsel %vm2639, %v2638, %v2633
    %v2641 = vadd.s32 %v2608, 4294967256
    %v2642 = vlaneseq
    %v2643 = vshrl.u32 %v2642, 7
    %v2644 = vsub.s32 %v2641, %v2643
    %v2645 = vrot.slane %v2600, %v2644
    %vm2646 = vcmask 392512
    %v2647 = vsel %vm2646, %v2645, %v2640
    %v2648 = vadd.s32 %v2608, 4294967248
    %v2649 = vlaneseq
    %v2650 = vshrl.u32 %v2649, 7
    %v2651 = vsub.s32 %v2648, %v2650
    %v2652 = vrot.slane %v2603, %v2651
    %vm2653 = vcmask 458112
    %v2654 = vsel %vm2653, %v2652, %v2647
    %v2655 = vadd.s32 %v2608, 4294967240
    %v2656 = vlaneseq
    %v2657 = vshrl.u32 %v2656, 7
    %v2658 = vsub.s32 %v2655, %v2657
    %v2659 = vrot.slane %v2606, %v2658
    %vm2660 = vcmask 523712
    %v2661 = vsel %vm2660, %v2659, %v2654
    %vm2663 = vcmask 516096
    %2664 = vst.msk [vmem:[#allocation2] sm:$0x1] %vm2663, %v2661
    // Predicated region
    $region50: #{tpu_custom_call.1} parent=1 // pred_check
      _
    $region51: #{tpu_custom_call.1} parent=1 // pred_check_branch
      %2666 = sbr.rel (0) target = $region53
    $region52: #{tpu_custom_call.1} parent=1 // pred_region
      %s2668 = ssub.s32 16, 16
      %2669 = vsyncadd [#allocation3], %s2668
      %s2671 = sshll.u32 [#allocation2], 4
      %s2672 = int_to_ptr.vmem [resolvable:$true] %s2671
      %2674 = dma.vmem_to_hbm [thread:$0]  %s2672, 16, %s12, [#allocation3]
    $region53: #{tpu_custom_call.1} parent=1 // pred_fallthru
      _
    // Predicated region
    $region54: #{tpu_custom_call.1} parent=1 // pred_check
      _
    $region55: #{tpu_custom_call.1} parent=1 // pred_check_branch
      %2676 = sbr.rel (0) target = $region57
    $region56: #{tpu_custom_call.1} parent=1 // pred_region
      %2677 = dma.done [#allocation3], 16
    $region57: #{tpu_custom_call.1} parent=1 // pred_fallthru
      _
    %2678 = vsyncpa [#allocation3], 1

// kernel: tpu_custom_call.1
$region0: #{tpu_custom_call.1}
  #allocation0 [shape = 'u32[]', space=smem, size = 0x4, offset = 0x4, fixed_abs, tag = 'smem constant byte address 0x4 - core index']
  #allocation1 [shape = 'u32[144,128]{1,0:T(1,128)}', space=vmem, size = 0x12000, scoped, tag = 'internal scratch']
  %s0 = inlined_call_operand.vmem [shape: f32[8,8,4], index: 0, kind: input, shape index: {}]
  %s1 = inlined_call_operand.vmem [shape: f32[8,6], index: 1, kind: input, shape index: {}]
  %s2 = inlined_call_operand.vmem [shape: f32[8,8], index: 2, kind: input, shape index: {}]
  %s3 = inlined_call_operand.vmem [shape: f32[4,8], index: 3, kind: input, shape index: {}]
  %s4 = inlined_call_operand.vmem [shape: f32[6,8], index: 4, kind: input, shape index: {}]
  %s5 = inlined_call_operand.vmem [shape: f32[8,24], index: 5, kind: input, shape index: {}]
  %s6 = inlined_call_operand.vmem [shape: f32[1,24], index: 6, kind: input, shape index: {}]
  %s7 = inlined_call_operand.vmem [shape: f32[8,8], index: 7, kind: input, shape index: {}]
  %s8 = inlined_call_operand.vmem [shape: f32[8,8], index: 8, kind: input, shape index: {}]
  %s9 = inlined_call_operand.vmem [shape: f32[1,8], index: 9, kind: input, shape index: {}]
  %s10 = inlined_call_operand.vmem [shape: f32[8,8], index: 10, kind: input, shape index: {}]
  %s11 = inlined_call_operand.vmem [shape: f32[9,8], index: 11, kind: input, shape index: {}]
  %s12 = inlined_call_operand.hbm [shape: f32[1,64], index: 12, kind: output, shape index: {}]
  %s13 = sld [smem:[#allocation0]]
  $region58: #{tpu_custom_call.1} parent=0
    _
  %s15 = ssub.s32 1, %s13
  %s16 = scalar_select 0, %s15, %s13
  $region1: #{tpu_custom_call.1} parent=0
    #allocation2 [shape = 'u8[512]{0}', space=vmem, size = 0x400, scoped, tag = 'output window, operand 0, single buffered']
    #allocation3 [shape = 's32[1]{0}', space=sflag, size = 0x4, scoped, tag = 'scoped memory for tpu_custom_call.1']
    %17 = vsyncpa [#allocation3], 0
    // Predicated region
    $region2: #{tpu_custom_call.1} parent=1 // pred_check
      _
    $region3: #{tpu_custom_call.1} parent=1 // pred_check_branch
      %19 = sbr.rel (0) target = $region5
    $region4: #{tpu_custom_call.1} parent=1 // pred_region
      _
    $region5: #{tpu_custom_call.1} parent=1 // pred_fallthru
      _
    // Predicated region
    $region6: #{tpu_custom_call.1} parent=1 // pred_check
      _
    $region7: #{tpu_custom_call.1} parent=1 // pred_check_branch
      %21 = sbr.rel (0) target = $region9
    $region8: #{tpu_custom_call.1} parent=1 // pred_region
      _
    $region9: #{tpu_custom_call.1} parent=1 // pred_fallthru
      _
    // Predicated region
    $region10: #{tpu_custom_call.1} parent=1 // pred_check
      _
    $region11: #{tpu_custom_call.1} parent=1 // pred_check_branch
      %23 = sbr.rel (0) target = $region13
    $region12: #{tpu_custom_call.1} parent=1 // pred_region
      _
    $region13: #{tpu_custom_call.1} parent=1 // pred_fallthru
      _
    // Predicated region
    $region14: #{tpu_custom_call.1} parent=1 // pred_check
      _
    $region15: #{tpu_custom_call.1} parent=1 // pred_check_branch
      %25 = sbr.rel (0) target = $region17
    $region16: #{tpu_custom_call.1} parent=1 // pred_region
      _
    $region17: #{tpu_custom_call.1} parent=1 // pred_fallthru
      _
    // Predicated region
    $region18: #{tpu_custom_call.1} parent=1 // pred_check
      _
    $region19: #{tpu_custom_call.1} parent=1 // pred_check_branch
      %27 = sbr.rel (0) target = $region21
    $region20: #{tpu_custom_call.1} parent=1 // pred_region
      _
    $region21: #{tpu_custom_call.1} parent=1 // pred_fallthru
      _
    // Predicated region
    $region22: #{tpu_custom_call.1} parent=1 // pred_check
      _
    $region23: #{tpu_custom_call.1} parent=1 // pred_check_branch
      %29 = sbr.rel (0) target = $region25
    $region24: #{tpu_custom_call.1} parent=1 // pred_region
      _
    $region25: #{tpu_custom_call.1} parent=1 // pred_fallthru
      _
    // Predicated region
    $region26: #{tpu_custom_call.1} parent=1 // pred_check
      _
    $region27: #{tpu_custom_call.1} parent=1 // pred_check_branch
      %31 = sbr.rel (0) target = $region29
    $region28: #{tpu_custom_call.1} parent=1 // pred_region
      _
    $region29: #{tpu_custom_call.1} parent=1 // pred_fallthru
      _
    // Predicated region
    $region30: #{tpu_custom_call.1} parent=1 // pred_check
      _
    $region31: #{tpu_custom_call.1} parent=1 // pred_check_branch
      %33 = sbr.rel (0) target = $region33
    $region32: #{tpu_custom_call.1} parent=1 // pred_region
      _
    $region33: #{tpu_custom_call.1} parent=1 // pred_fallthru
      _
    // Predicated region
    $region34: #{tpu_custom_call.1} parent=1 // pred_check
      _
    $region35: #{tpu_custom_call.1} parent=1 // pred_check_branch
      %35 = sbr.rel (0) target = $region37
    $region36: #{tpu_custom_call.1} parent=1 // pred_region
      _
    $region37: #{tpu_custom_call.1} parent=1 // pred_fallthru
      _
    // Predicated region
    $region38: #{tpu_custom_call.1} parent=1 // pred_check
      _
    $region39: #{tpu_custom_call.1} parent=1 // pred_check_branch
      %37 = sbr.rel (0) target = $region41
    $region40: #{tpu_custom_call.1} parent=1 // pred_region
      _
    $region41: #{tpu_custom_call.1} parent=1 // pred_fallthru
      _
    // Predicated region
    $region42: #{tpu_custom_call.1} parent=1 // pred_check
      _
    $region43: #{tpu_custom_call.1} parent=1 // pred_check_branch
      %39 = sbr.rel (0) target = $region45
    $region44: #{tpu_custom_call.1} parent=1 // pred_region
      _
    $region45: #{tpu_custom_call.1} parent=1 // pred_fallthru
      _
    // Predicated region
    $region46: #{tpu_custom_call.1} parent=1 // pred_check
      _
    $region47: #{tpu_custom_call.1} parent=1 // pred_check_branch
      %41 = sbr.rel (0) target = $region49
    $region48: #{tpu_custom_call.1} parent=1 // pred_region
      _
    $region49: #{tpu_custom_call.1} parent=1 // pred_fallthru
      _
    %v42 = vld [vmem:[%s11] sm:$0xff]
    %v43 = vld [vmem:[%s11 + $0x8] sm:$0x1]
    %v44 = vld [vmem:[%s0] sm:$0xff]
    %v45 = vld [vmem:[%s0 + $0x8] sm:$0xff]
    %v46 = vld [vmem:[%s0 + $0x10] sm:$0xff]
    %v47 = vld [vmem:[%s0 + $0x18] sm:$0xff]
    %v48 = vld [vmem:[%s0 + $0x20] sm:$0xff]
    %v49 = vld [vmem:[%s0 + $0x28] sm:$0xff]
    %v50 = vld [vmem:[%s0 + $0x30] sm:$0xff]
    %v51 = vld [vmem:[%s0 + $0x38] sm:$0xff]
    %v52 = vld [vmem:[%s3] sm:$0xf]
    %v53 = vlaneseq
    %v54 = vshrl.u32 %v53, 7
    %v55 = vsub.s32 0, %v54
    %v56 = vrot.slane %v42, %v55
    %vm57 = vcmask 31744
    %v59 = vsel %vm57, %v44, 0
    %v62 = vsel %vm57, %v45, 0
    %v65 = vsel %vm57, %v46, 0
    %v68 = vsel %vm57, %v47, 0
    %v71 = vsel %vm57, %v48, 0
    %v74 = vsel %vm57, %v49, 0
    %v77 = vsel %vm57, %v50, 0
    %v80 = vsel %vm57, %v51, 0
    %vm82 = vcmask 1043456
    %v84 = vsel %vm82, %v52, 0
    %86 = vmatprep.subr.mxu0 0.0
    %87 = vmatpush1.msra.mxu0 0.0
    %88 = vmatprep.subr.mxu0 0.0
    %89 = vmatpush1.msra.mxu0 0.0
    %90 = vmatprep.subr.mxu0 0.0
    %91 = vmatpush1.msra.mxu0 0.0
    %92 = vmatprep.subr.mxu0 0.0
    %93 = vmatpush1.msra.mxu0 0.0
    %94 = vmatprep.subr.mxu0 0.0
    %95 = vmatpush1.msra.mxu0 0.0
    %96 = vmatprep.subr.mxu0 0.0
    %97 = vmatpush1.msra.mxu0 0.0
    %98 = vmatprep.subr.mxu0 0.0
    %99 = vmatpush1.msra.mxu0 0.0
    %100 = vmatprep.subr.mxu0 0.0
    %101 = vmatpush1.msra.mxu0 0.0
    %102 = vmatprep.subr.mxu0 0.0
    %103 = vmatpush1.msra.mxu0 0.0
    %104 = vmatprep.subr.mxu0 0.0
    %105 = vmatpush1.msra.mxu0 0.0
    %106 = vmatprep.subr.mxu0 0.0
    %107 = vmatpush1.msra.mxu0 0.0
    %108 = vmatprep.subr.mxu0 0.0
    %109 = vmatpush1.msra.mxu0 0.0
    %110 = vmatprep.subr.mxu0 0.0
    %111 = vmatpush1.msra.mxu0 0.0
    %112 = vmatprep.subr.mxu0 0.0
    %113 = vmatpush1.msra.mxu0 0.0
    %114 = vmatprep.subr.mxu0 0.0
    %115 = vmatpush1.msra.mxu0 0.0
    %116 = vmatprep.subr.mxu0 0.0
    %117 = vmatpush1.msra.mxu0 %v84
    %118 = vmatprep.subr.mxu0 0.0
    %119 = vmatpush2.msra.mxu0 0.0
    %120 = vmatprep.subr.mxu0 0.0
    %121 = vmatpush2.msra.mxu0 0.0
    %122 = vmatprep.subr.mxu0 0.0
    %123 = vmatpush2.msra.mxu0 0.0
    %124 = vmatprep.subr.mxu0 0.0
    %125 = vmatpush2.msra.mxu0 0.0
    %126 = vmatprep.subr.mxu0 0.0
    %127 = vmatpush2.msra.mxu0 0.0
    %128 = vmatprep.subr.mxu0 0.0
    %129 = vmatpush2.msra.mxu0 0.0
    %130 = vmatprep.subr.mxu0 0.0
    %131 = vmatpush2.msra.mxu0 0.0
    %132 = vmatprep.subr.mxu0 0.0
    %133 = vmatpush2.msra.mxu0 0.0
    %134 = vmatprep.subr.mxu0 0.0
    %135 = vmatpush2.msra.mxu0 0.0
    %136 = vmatprep.subr.mxu0 0.0
    %137 = vmatpush2.msra.mxu0 0.0
    %138 = vmatprep.subr.mxu0 0.0
    %139 = vmatpush2.msra.mxu0 0.0
    %140 = vmatprep.subr.mxu0 0.0
    %141 = vmatpush2.msra.mxu0 0.0
    %142 = vmatprep.subr.mxu0 0.0
    %143 = vmatpush2.msra.mxu0 0.0
    %144 = vmatprep.subr.mxu0 0.0
    %145 = vmatpush2.msra.mxu0 0.0
    %146 = vmatprep.subr.mxu0 0.0
    %147 = vmatpush2.msra.mxu0 0.0
    %148 = vmatprep.subr.mxu0 0.0
    %149 = vmatpush2.msra.mxu0 0.0
    %150 = vmatprep.mubr.f32.mxu0 0.0
    %151 = vmatmul.mubr.f32.gmra.mxu0 %v59
    %v152 = vpop.f32.mrf.mxu0
    %v153 = vadd.f32 %v56, %v152
    %v154 = vpop.f32.mrf.mxu0
    %155 = vmatprep.mubr.f32.mxu0 0.0
    %156 = vmatmul.mubr.f32.gmra.mxu0 %v62
    %v157 = vpop.f32.mrf.mxu0
    %v158 = vadd.f32 %v56, %v157
    %v159 = vpop.f32.mrf.mxu0
    %160 = vmatprep.mubr.f32.mxu0 0.0
    %161 = vmatmul.mubr.f32.gmra.mxu0 %v65
    %v162 = vpop.f32.mrf.mxu0
    %v163 = vadd.f32 %v56, %v162
    %v164 = vpop.f32.mrf.mxu0
    %165 = vmatprep.mubr.f32.mxu0 0.0
    %166 = vmatmul.mubr.f32.gmra.mxu0 %v68
    %v167 = vpop.f32.mrf.mxu0
    %v168 = vadd.f32 %v56, %v167
    %v169 = vpop.f32.mrf.mxu0
    %170 = vmatprep.mubr.f32.mxu0 0.0
    %171 = vmatmul.mubr.f32.gmra.mxu0 %v71
    %v172 = vpop.f32.mrf.mxu0
    %v173 = vadd.f32 %v56, %v172
    %v174 = vpop.f32.mrf.mxu0
    %175 = vmatprep.mubr.f32.mxu0 0.0
    %176 = vmatmul.mubr.f32.gmra.mxu0 %v74
    %v177 = vpop.f32.mrf.mxu0
    %v178 = vadd.f32 %v56, %v177
    %v179 = vpop.f32.mrf.mxu0
    %180 = vmatprep.mubr.f32.mxu0 0.0
    %181 = vmatmul.mubr.f32.gmra.mxu0 %v77
    %v182 = vpop.f32.mrf.mxu0
    %v183 = vadd.f32 %v56, %v182
    %v184 = vpop.f32.mrf.mxu0
    %185 = vmatprep.mubr.f32.mxu0 0.0
    %186 = vmatmul.mubr.f32.gmra.mxu0 %v80
    %v187 = vpop.f32.mrf.mxu0
    %v188 = vadd.f32 %v56, %v187
    %v189 = vpop.f32.mrf.mxu0
    %190 = vdwg.mxu0
    %v191 = vld [vmem:[%s1] sm:$0xff]
    %v192 = vld [vmem:[%s4] sm:$0x3f]
    %vm193 = vcmask 48128
    %v195 = vsel %vm193, %v191, 0
    %vm197 = vcmask 1045504
    %v199 = vsel %vm197, %v192, 0
    %201 = vmatprep.subr.mxu0 0.0
    %202 = vmatpush1.msra.mxu0 0.0
    %203 = vmatprep.subr.mxu0 0.0
    %204 = vmatpush1.msra.mxu0 0.0
    %205 = vmatprep.subr.mxu0 0.0
    %206 = vmatpush1.msra.mxu0 0.0
    %207 = vmatprep.subr.mxu0 0.0
    %208 = vmatpush1.msra.mxu0 0.0
    %209 = vmatprep.subr.mxu0 0.0
    %210 = vmatpush1.msra.mxu0 0.0
    %211 = vmatprep.subr.mxu0 0.0
    %212 = vmatpush1.msra.mxu0 0.0
    %213 = vmatprep.subr.mxu0 0.0
    %214 = vmatpush1.msra.mxu0 0.0
    %215 = vmatprep.subr.mxu0 0.0
    %216 = vmatpush1.msra.mxu0 0.0
    %217 = vmatprep.subr.mxu0 0.0
    %218 = vmatpush1.msra.mxu0 0.0
    %219 = vmatprep.subr.mxu0 0.0
    %220 = vmatpush1.msra.mxu0 0.0
    %221 = vmatprep.subr.mxu0 0.0
    %222 = vmatpush1.msra.mxu0 0.0
    %223 = vmatprep.subr.mxu0 0.0
    %224 = vmatpush1.msra.mxu0 0.0
    %225 = vmatprep.subr.mxu0 0.0
    %226 = vmatpush1.msra.mxu0 0.0
    %227 = vmatprep.subr.mxu0 0.0
    %228 = vmatpush1.msra.mxu0 0.0
    %229 = vmatprep.subr.mxu0 0.0
    %230 = vmatpush1.msra.mxu0 0.0
    %231 = vmatprep.subr.mxu0 0.0
    %232 = vmatpush1.msra.mxu0 %v199
    %233 = vmatprep.subr.mxu0 0.0
    %234 = vmatpush2.msra.mxu0 0.0
    %235 = vmatprep.subr.mxu0 0.0
    %236 = vmatpush2.msra.mxu0 0.0
    %237 = vmatprep.subr.mxu0 0.0
    %238 = vmatpush2.msra.mxu0 0.0
    %239 = vmatprep.subr.mxu0 0.0
    %240 = vmatpush2.msra.mxu0 0.0
    %241 = vmatprep.subr.mxu0 0.0
    %242 = vmatpush2.msra.mxu0 0.0
    %243 = vmatprep.subr.mxu0 0.0
    %244 = vmatpush2.msra.mxu0 0.0
    %245 = vmatprep.subr.mxu0 0.0
    %246 = vmatpush2.msra.mxu0 0.0
    %247 = vmatprep.subr.mxu0 0.0
    %248 = vmatpush2.msra.mxu0 0.0
    %249 = vmatprep.subr.mxu0 0.0
    %250 = vmatpush2.msra.mxu0 0.0
    %251 = vmatprep.subr.mxu0 0.0
    %252 = vmatpush2.msra.mxu0 0.0
    %253 = vmatprep.subr.mxu0 0.0
    %254 = vmatpush2.msra.mxu0 0.0
    %255 = vmatprep.subr.mxu0 0.0
    %256 = vmatpush2.msra.mxu0 0.0
    %257 = vmatprep.subr.mxu0 0.0
    %258 = vmatpush2.msra.mxu0 0.0
    %259 = vmatprep.subr.mxu0 0.0
    %260 = vmatpush2.msra.mxu0 0.0
    %261 = vmatprep.subr.mxu0 0.0
    %262 = vmatpush2.msra.mxu0 0.0
    %263 = vmatprep.subr.mxu0 0.0
    %264 = vmatpush2.msra.mxu0 0.0
    %265 = vmatprep.mubr.f32.mxu0 0.0
    %266 = vmatmul.mubr.f32.gmra.mxu0 %v195
    %v267 = vpop.f32.mrf.mxu0
    %v268 = vadd.f32 0.0, %v267
    %v269 = vpop.f32.mrf.mxu0
    %270 = vdwg.mxu0
    %v271 = vld [vmem:[%s2] sm:$0xff]
    %v272 = vadd.f32 %v153, %v271
    %v273 = vadd.f32 %v158, %v271
    %v274 = vadd.f32 %v163, %v271
    %v275 = vadd.f32 %v168, %v271
    %v276 = vadd.f32 %v173, %v271
    %v277 = vadd.f32 %v178, %v271
    %v278 = vadd.f32 %v183, %v271
    %v279 = vadd.f32 %v188, %v271
    %v281 = vcombine.high %v268, %v268
    %v283 = vunpack.c.l.s4 1966171168
    %v284 = vunpack.c.0.s8 %v283
    %v285 = vlaneseq
    %v286 = vshrl.u32 %v285, 7
    %v287 = vsub.s32 %v284, %v286
    %v288 = vrot.slane %v268, %v287
    %v290 = vunpack.c.l.s4 1966171168
    %v291 = vunpack.c.0.s8 %v290
    %v292 = vlaneseq
    %v293 = vshrl.u32 %v292, 7
    %v294 = vsub.s32 %v291, %v293
    %v295 = vrot.slane %v281, %v294
    %v296 = vcombine.high %v288, %v288
    %v297 = vcombine.high %v295, %v295
    %v299 = vunpack.c.l.s4 1966171168
    %v300 = vunpack.c.0.s8 %v299
    %v301 = vlaneseq
    %v302 = vshrl.u32 %v301, 7
    %v303 = vsub.s32 %v300, %v302
    %v304 = vrot.slane %v288, %v303
    %v306 = vunpack.c.l.s4 1966171168
    %v307 = vunpack.c.0.s8 %v306
    %v308 = vlaneseq
    %v309 = vshrl.u32 %v308, 7
    %v310 = vsub.s32 %v307, %v309
    %v311 = vrot.slane %v295, %v310
    %v313 = vunpack.c.l.s4 1966171168
    %v314 = vunpack.c.0.s8 %v313
    %v315 = vlaneseq
    %v316 = vshrl.u32 %v315, 7
    %v317 = vsub.s32 %v314, %v316
    %v318 = vrot.slane %v296, %v317
    %v320 = vunpack.c.l.s4 1966171168
    %v321 = vunpack.c.0.s8 %v320
    %v322 = vlaneseq
    %v323 = vshrl.u32 %v322, 7
    %v324 = vsub.s32 %v321, %v323
    %v325 = vrot.slane %v297, %v324
    %v326 = vcombine.high %v304, %v304
    %v327 = vcombine.high %v311, %v311
    %v328 = vcombine.high %v318, %v318
    %v329 = vcombine.high %v325, %v325
    %v330 = vlaneseq
    %v331 = vshrl.u32 %v330, 7
    %v332 = vsub.s32 0, %v331
    %v333 = vrot.slane %v304, %v332
    %v334 = vlaneseq
    %v335 = vshrl.u32 %v334, 7
    %v336 = vsub.s32 0, %v335
    %v337 = vrot.slane %v318, %v336
    %v338 = vlaneseq
    %v339 = vshrl.u32 %v338, 7
    %v340 = vsub.s32 0, %v339
    %v341 = vrot.slane %v326, %v340
    %v342 = vlaneseq
    %v343 = vshrl.u32 %v342, 7
    %v344 = vsub.s32 0, %v343
    %v345 = vrot.slane %v328, %v344
    %v346 = vlaneseq
    %v347 = vshrl.u32 %v346, 7
    %v348 = vsub.s32 0, %v347
    %v349 = vrot.slane %v311, %v348
    %v350 = vlaneseq
    %v351 = vshrl.u32 %v350, 7
    %v352 = vsub.s32 0, %v351
    %v353 = vrot.slane %v325, %v352
    %v354 = vlaneseq
    %v355 = vshrl.u32 %v354, 7
    %v356 = vsub.s32 0, %v355
    %v357 = vrot.slane %v327, %v356
    %v358 = vlaneseq
    %v359 = vshrl.u32 %v358, 7
    %v360 = vsub.s32 0, %v359
    %v361 = vrot.slane %v329, %v360
    %v370 = vadd.f32 %v272, %v333
    %v371 = vadd.f32 %v273, %v337
    %v372 = vadd.f32 %v274, %v341
    %v373 = vadd.f32 %v275, %v345
    %v374 = vadd.f32 %v276, %v349
    %v375 = vadd.f32 %v277, %v353
    %v376 = vadd.f32 %v278, %v357
    %v377 = vadd.f32 %v279, %v361
    %v378 = vld [vmem:[%s5] sm:$0xff]
    %v379 = vld [vmem:[%s6] sm:$0x1]
    %v381 = vlaneseq
    %v382 = vshrl.u32 %v381, 7
    %v383 = vsub.s32 0, %v382
    %v384 = vrot.slane %v379, %v383
    %vm386 = vcmask 64512
    %v388 = vsel %vm386, %v370, 0
    %v391 = vsel %vm386, %v371, 0
    %v394 = vsel %vm386, %v372, 0
    %v397 = vsel %vm386, %v373, 0
    %v400 = vsel %vm386, %v374, 0
    %v403 = vsel %vm386, %v375, 0
    %v406 = vsel %vm386, %v376, 0
    %v409 = vsel %vm386, %v377, 0
    %411 = vmatprep.subr.mxu0 0.0
    %412 = vmatpush1.msra.mxu0 0.0
    %413 = vmatprep.subr.mxu0 0.0
    %414 = vmatpush1.msra.mxu0 0.0
    %415 = vmatprep.subr.mxu0 0.0
    %416 = vmatpush1.msra.mxu0 0.0
    %417 = vmatprep.subr.mxu0 0.0
    %418 = vmatpush1.msra.mxu0 0.0
    %419 = vmatprep.subr.mxu0 0.0
    %420 = vmatpush1.msra.mxu0 0.0
    %421 = vmatprep.subr.mxu0 0.0
    %422 = vmatpush1.msra.mxu0 0.0
    %423 = vmatprep.subr.mxu0 0.0
    %424 = vmatpush1.msra.mxu0 0.0
    %425 = vmatprep.subr.mxu0 0.0
    %426 = vmatpush1.msra.mxu0 0.0
    %427 = vmatprep.subr.mxu0 0.0
    %428 = vmatpush1.msra.mxu0 0.0
    %429 = vmatprep.subr.mxu0 0.0
    %430 = vmatpush1.msra.mxu0 0.0
    %431 = vmatprep.subr.mxu0 0.0
    %432 = vmatpush1.msra.mxu0 0.0
    %433 = vmatprep.subr.mxu0 0.0
    %434 = vmatpush1.msra.mxu0 0.0
    %435 = vmatprep.subr.mxu0 0.0
    %436 = vmatpush1.msra.mxu0 0.0
    %437 = vmatprep.subr.mxu0 0.0
    %438 = vmatpush1.msra.mxu0 0.0
    %439 = vmatprep.subr.mxu0 0.0
    %440 = vmatpush1.msra.mxu0 0.0
    %441 = vmatprep.subr.mxu0 0.0
    %442 = vmatpush1.msra.mxu0 %v378
    %443 = vmatprep.subr.mxu0 0.0
    %444 = vmatpush2.msra.mxu0 0.0
    %445 = vmatprep.subr.mxu0 0.0
    %446 = vmatpush2.msra.mxu0 0.0
    %447 = vmatprep.subr.mxu0 0.0
    %448 = vmatpush2.msra.mxu0 0.0
    %449 = vmatprep.subr.mxu0 0.0
    %450 = vmatpush2.msra.mxu0 0.0
    %451 = vmatprep.subr.mxu0 0.0
    %452 = vmatpush2.msra.mxu0 0.0
    %453 = vmatprep.subr.mxu0 0.0
    %454 = vmatpush2.msra.mxu0 0.0
    %455 = vmatprep.subr.mxu0 0.0
    %456 = vmatpush2.msra.mxu0 0.0
    %457 = vmatprep.subr.mxu0 0.0
    %458 = vmatpush2.msra.mxu0 0.0
    %459 = vmatprep.subr.mxu0 0.0
    %460 = vmatpush2.msra.mxu0 0.0
    %461 = vmatprep.subr.mxu0 0.0
    %462 = vmatpush2.msra.mxu0 0.0
    %463 = vmatprep.subr.mxu0 0.0
    %464 = vmatpush2.msra.mxu0 0.0
    %465 = vmatprep.subr.mxu0 0.0
    %466 = vmatpush2.msra.mxu0 0.0
    %467 = vmatprep.subr.mxu0 0.0
    %468 = vmatpush2.msra.mxu0 0.0
    %469 = vmatprep.subr.mxu0 0.0
    %470 = vmatpush2.msra.mxu0 0.0
    %471 = vmatprep.subr.mxu0 0.0
    %472 = vmatpush2.msra.mxu0 0.0
    %473 = vmatprep.subr.mxu0 0.0
    %474 = vmatpush2.msra.mxu0 0.0
    %475 = vmatprep.mubr.f32.mxu0 0.0
    %476 = vmatmul.mubr.f32.gmra.mxu0 %v388
    %v477 = vpop.f32.mrf.mxu0
    %v478 = vadd.f32 %v384, %v477
    %v479 = vpop.f32.mrf.mxu0
    %480 = vmatprep.mubr.f32.mxu0 0.0
    %481 = vmatmul.mubr.f32.gmra.mxu0 %v391
    %v482 = vpop.f32.mrf.mxu0
    %v483 = vadd.f32 %v384, %v482
    %v484 = vpop.f32.mrf.mxu0
    %485 = vmatprep.mubr.f32.mxu0 0.0
    %486 = vmatmul.mubr.f32.gmra.mxu0 %v394
    %v487 = vpop.f32.mrf.mxu0
    %v488 = vadd.f32 %v384, %v487
    %v489 = vpop.f32.mrf.mxu0
    %490 = vmatprep.mubr.f32.mxu0 0.0
    %491 = vmatmul.mubr.f32.gmra.mxu0 %v397
    %v492 = vpop.f32.mrf.mxu0
    %v493 = vadd.f32 %v384, %v492
    %v494 = vpop.f32.mrf.mxu0
    %495 = vmatprep.mubr.f32.mxu0 0.0
    %496 = vmatmul.mubr.f32.gmra.mxu0 %v400
    %v497 = vpop.f32.mrf.mxu0
    %v498 = vadd.f32 %v384, %v497
    %v499 = vpop.f32.mrf.mxu0
    %500 = vmatprep.mubr.f32.mxu0 0.0
    %501 = vmatmul.mubr.f32.gmra.mxu0 %v403
    %v502 = vpop.f32.mrf.mxu0
    %v503 = vadd.f32 %v384, %v502
    %v504 = vpop.f32.mrf.mxu0
    %505 = vmatprep.mubr.f32.mxu0 0.0
    %506 = vmatmul.mubr.f32.gmra.mxu0 %v406
    %v507 = vpop.f32.mrf.mxu0
    %v508 = vadd.f32 %v384, %v507
    %v509 = vpop.f32.mrf.mxu0
    %510 = vmatprep.mubr.f32.mxu0 0.0
    %511 = vmatmul.mubr.f32.gmra.mxu0 %v409
    %v512 = vpop.f32.mrf.mxu0
    %v513 = vadd.f32 %v384, %v512
    %v514 = vpop.f32.mrf.mxu0
    %515 = vdwg.mxu0
    %517 = vrot.lane.b32.xlu0 %v478, 120
    %v518 = vpop.permute.xlu0 %517
    %v519 = vsel %vm386, %v478, 0
    %v521 = vsel %vm386, %v518, 0
    %523 = vmatprep.subr.mxu0 0.0
    %524 = vmatpush1.xpose.msra.mxu0 0.0
    %525 = vmatprep.subr.mxu0 0.0
    %526 = vmatpush1.xpose.msra.mxu0 0.0
    %527 = vmatprep.subr.mxu0 0.0
    %528 = vmatpush1.xpose.msra.mxu0 0.0
    %529 = vmatprep.subr.mxu0 0.0
    %530 = vmatpush1.xpose.msra.mxu0 0.0
    %531 = vmatprep.subr.mxu0 0.0
    %532 = vmatpush1.xpose.msra.mxu0 0.0
    %533 = vmatprep.subr.mxu0 0.0
    %534 = vmatpush1.xpose.msra.mxu0 0.0
    %535 = vmatprep.subr.mxu0 0.0
    %536 = vmatpush1.xpose.msra.mxu0 0.0
    %537 = vmatprep.subr.mxu0 0.0
    %538 = vmatpush1.xpose.msra.mxu0 0.0
    %539 = vmatprep.subr.mxu0 0.0
    %540 = vmatpush1.xpose.msra.mxu0 0.0
    %541 = vmatprep.subr.mxu0 0.0
    %542 = vmatpush1.xpose.msra.mxu0 0.0
    %543 = vmatprep.subr.mxu0 0.0
    %544 = vmatpush1.xpose.msra.mxu0 0.0
    %545 = vmatprep.subr.mxu0 0.0
    %546 = vmatpush1.xpose.msra.mxu0 0.0
    %547 = vmatprep.subr.mxu0 0.0
    %548 = vmatpush1.xpose.msra.mxu0 0.0
    %549 = vmatprep.subr.mxu0 0.0
    %550 = vmatpush1.xpose.msra.mxu0 0.0
    %551 = vmatprep.subr.mxu0 0.0
    %552 = vmatpush1.xpose.msra.mxu0 0.0
    %553 = vmatprep.subr.mxu0 0.0
    %554 = vmatpush1.xpose.msra.mxu0 %v521
    %555 = vmatprep.subr.mxu0 0.0
    %556 = vmatpush2.xpose.msra.mxu0 0.0
    %557 = vmatprep.subr.mxu0 0.0
    %558 = vmatpush2.xpose.msra.mxu0 0.0
    %559 = vmatprep.subr.mxu0 0.0
    %560 = vmatpush2.xpose.msra.mxu0 0.0
    %561 = vmatprep.subr.mxu0 0.0
    %562 = vmatpush2.xpose.msra.mxu0 0.0
    %563 = vmatprep.subr.mxu0 0.0
    %564 = vmatpush2.xpose.msra.mxu0 0.0
    %565 = vmatprep.subr.mxu0 0.0
    %566 = vmatpush2.xpose.msra.mxu0 0.0
    %567 = vmatprep.subr.mxu0 0.0
    %568 = vmatpush2.xpose.msra.mxu0 0.0
    %569 = vmatprep.subr.mxu0 0.0
    %570 = vmatpush2.xpose.msra.mxu0 0.0
    %571 = vmatprep.subr.mxu0 0.0
    %572 = vmatpush2.xpose.msra.mxu0 0.0
    %573 = vmatprep.subr.mxu0 0.0
    %574 = vmatpush2.xpose.msra.mxu0 0.0
    %575 = vmatprep.subr.mxu0 0.0
    %576 = vmatpush2.xpose.msra.mxu0 0.0
    %577 = vmatprep.subr.mxu0 0.0
    %578 = vmatpush2.xpose.msra.mxu0 0.0
    %579 = vmatprep.subr.mxu0 0.0
    %580 = vmatpush2.xpose.msra.mxu0 0.0
    %581 = vmatprep.subr.mxu0 0.0
    %582 = vmatpush2.xpose.msra.mxu0 0.0
    %583 = vmatprep.subr.mxu0 0.0
    %584 = vmatpush2.xpose.msra.mxu0 0.0
    %585 = vmatprep.subr.mxu0 0.0
    %586 = vmatpush2.xpose.msra.mxu0 0.0
    %587 = vmatprep.mubr.f32.mxu0 0.0
    %588 = vmatmul.mubr.f32.gmra.mxu0 %v519
    %v589 = vpop.f32.mrf.mxu0
    %v590 = vadd.f32 0.0, %v589
    %v591 = vpop.f32.mrf.mxu0
    %592 = vdwg.mxu0
    %594 = vrot.lane.b32.xlu0 %v483, 120
    %v595 = vpop.permute.xlu0 %594
    %v596 = vsel %vm386, %v483, 0
    %v598 = vsel %vm386, %v595, 0
    %600 = vmatprep.subr.mxu0 0.0
    %601 = vmatpush1.xpose.msra.mxu0 0.0
    %602 = vmatprep.subr.mxu0 0.0
    %603 = vmatpush1.xpose.msra.mxu0 0.0
    %604 = vmatprep.subr.mxu0 0.0
    %605 = vmatpush1.xpose.msra.mxu0 0.0
    %606 = vmatprep.subr.mxu0 0.0
    %607 = vmatpush1.xpose.msra.mxu0 0.0
    %608 = vmatprep.subr.mxu0 0.0
    %609 = vmatpush1.xpose.msra.mxu0 0.0
    %610 = vmatprep.subr.mxu0 0.0
    %611 = vmatpush1.xpose.msra.mxu0 0.0
    %612 = vmatprep.subr.mxu0 0.0
    %613 = vmatpush1.xpose.msra.mxu0 0.0
    %614 = vmatprep.subr.mxu0 0.0
    %615 = vmatpush1.xpose.msra.mxu0 0.0
    %616 = vmatprep.subr.mxu0 0.0
    %617 = vmatpush1.xpose.msra.mxu0 0.0
    %618 = vmatprep.subr.mxu0 0.0
    %619 = vmatpush1.xpose.msra.mxu0 0.0
    %620 = vmatprep.subr.mxu0 0.0
    %621 = vmatpush1.xpose.msra.mxu0 0.0
    %622 = vmatprep.subr.mxu0 0.0
    %623 = vmatpush1.xpose.msra.mxu0 0.0
    %624 = vmatprep.subr.mxu0 0.0
    %625 = vmatpush1.xpose.msra.mxu0 0.0
    %626 = vmatprep.subr.mxu0 0.0
    %627 = vmatpush1.xpose.msra.mxu0 0.0
    %628 = vmatprep.subr.mxu0 0.0
    %629 = vmatpush1.xpose.msra.mxu0 0.0
    %630 = vmatprep.subr.mxu0 0.0
    %631 = vmatpush1.xpose.msra.mxu0 %v598
    %632 = vmatprep.subr.mxu0 0.0
    %633 = vmatpush2.xpose.msra.mxu0 0.0
    %634 = vmatprep.subr.mxu0 0.0
    %635 = vmatpush2.xpose.msra.mxu0 0.0
    %636 = vmatprep.subr.mxu0 0.0
    %637 = vmatpush2.xpose.msra.mxu0 0.0
    %638 = vmatprep.subr.mxu0 0.0
    %639 = vmatpush2.xpose.msra.mxu0 0.0
    %640 = vmatprep.subr.mxu0 0.0
    %641 = vmatpush2.xpose.msra.mxu0 0.0
    %642 = vmatprep.subr.mxu0 0.0
    %643 = vmatpush2.xpose.msra.mxu0 0.0
    %644 = vmatprep.subr.mxu0 0.0
    %645 = vmatpush2.xpose.msra.mxu0 0.0
    %646 = vmatprep.subr.mxu0 0.0
    %647 = vmatpush2.xpose.msra.mxu0 0.0
    %648 = vmatprep.subr.mxu0 0.0
    %649 = vmatpush2.xpose.msra.mxu0 0.0
    %650 = vmatprep.subr.mxu0 0.0
    %651 = vmatpush2.xpose.msra.mxu0 0.0
    %652 = vmatprep.subr.mxu0 0.0
    %653 = vmatpush2.xpose.msra.mxu0 0.0
    %654 = vmatprep.subr.mxu0 0.0
    %655 = vmatpush2.xpose.msra.mxu0 0.0
    %656 = vmatprep.subr.mxu0 0.0
    %657 = vmatpush2.xpose.msra.mxu0 0.0
    %658 = vmatprep.subr.mxu0 0.0
    %659 = vmatpush2.xpose.msra.mxu0 0.0
    %660 = vmatprep.subr.mxu0 0.0
    %661 = vmatpush2.xpose.msra.mxu0 0.0
    %662 = vmatprep.subr.mxu0 0.0
    %663 = vmatpush2.xpose.msra.mxu0 0.0
    %664 = vmatprep.mubr.f32.mxu0 0.0
    %665 = vmatmul.mubr.f32.gmra.mxu0 %v596
    %v666 = vpop.f32.mrf.mxu0
    %v667 = vadd.f32 0.0, %v666
    %v668 = vpop.f32.mrf.mxu0
    %669 = vdwg.mxu0
    %671 = vrot.lane.b32.xlu0 %v488, 120
    %v672 = vpop.permute.xlu0 %671
    %v673 = vsel %vm386, %v488, 0
    %v675 = vsel %vm386, %v672, 0
    %677 = vmatprep.subr.mxu0 0.0
    %678 = vmatpush1.xpose.msra.mxu0 0.0
    %679 = vmatprep.subr.mxu0 0.0
    %680 = vmatpush1.xpose.msra.mxu0 0.0
    %681 = vmatprep.subr.mxu0 0.0
    %682 = vmatpush1.xpose.msra.mxu0 0.0
    %683 = vmatprep.subr.mxu0 0.0
    %684 = vmatpush1.xpose.msra.mxu0 0.0
    %685 = vmatprep.subr.mxu0 0.0
    %686 = vmatpush1.xpose.msra.mxu0 0.0
    %687 = vmatprep.subr.mxu0 0.0
    %688 = vmatpush1.xpose.msra.mxu0 0.0
    %689 = vmatprep.subr.mxu0 0.0
    %690 = vmatpush1.xpose.msra.mxu0 0.0
    %691 = vmatprep.subr.mxu0 0.0
    %692 = vmatpush1.xpose.msra.mxu0 0.0
    %693 = vmatprep.subr.mxu0 0.0
    %694 = vmatpush1.xpose.msra.mxu0 0.0
    %695 = vmatprep.subr.mxu0 0.0
    %696 = vmatpush1.xpose.msra.mxu0 0.0
    %697 = vmatprep.subr.mxu0 0.0
    %698 = vmatpush1.xpose.msra.mxu0 0.0
    %699 = vmatprep.subr.mxu0 0.0
    %700 = vmatpush1.xpose.msra.mxu0 0.0
    %701 = vmatprep.subr.mxu0 0.0
    %702 = vmatpush1.xpose.msra.mxu0 0.0
    %703 = vmatprep.subr.mxu0 0.0
    %704 = vmatpush1.xpose.msra.mxu0 0.0
    %705 = vmatprep.subr.mxu0 0.0
    %706 = vmatpush1.xpose.msra.mxu0 0.0
    %707 = vmatprep.subr.mxu0 0.0
    %708 = vmatpush1.xpose.msra.mxu0 %v675
    %709 = vmatprep.subr.mxu0 0.0
    %710 = vmatpush2.xpose.msra.mxu0 0.0
    %711 = vmatprep.subr.mxu0 0.0
    %712 = vmatpush2.xpose.msra.mxu0 0.0
    %713 = vmatprep.subr.mxu0 0.0
    %714 = vmatpush2.xpose.msra.mxu0 0.0
    %715 = vmatprep.subr.mxu0 0.0
    %716 = vmatpush2.xpose.msra.mxu0 0.0
    %717 = vmatprep.subr.mxu0 0.0
    %718 = vmatpush2.xpose.msra.mxu0 0.0
    %719 = vmatprep.subr.mxu0 0.0
    %720 = vmatpush2.xpose.msra.mxu0 0.0
    %721 = vmatprep.subr.mxu0 0.0
    %722 = vmatpush2.xpose.msra.mxu0 0.0
    %723 = vmatprep.subr.mxu0 0.0
    %724 = vmatpush2.xpose.msra.mxu0 0.0
    %725 = vmatprep.subr.mxu0 0.0
    %726 = vmatpush2.xpose.msra.mxu0 0.0
    %727 = vmatprep.subr.mxu0 0.0
    %728 = vmatpush2.xpose.msra.mxu0 0.0
    %729 = vmatprep.subr.mxu0 0.0
    %730 = vmatpush2.xpose.msra.mxu0 0.0
    %731 = vmatprep.subr.mxu0 0.0
    %732 = vmatpush2.xpose.msra.mxu0 0.0
    %733 = vmatprep.subr.mxu0 0.0
    %734 = vmatpush2.xpose.msra.mxu0 0.0
    %735 = vmatprep.subr.mxu0 0.0
    %736 = vmatpush2.xpose.msra.mxu0 0.0
    %737 = vmatprep.subr.mxu0 0.0
    %738 = vmatpush2.xpose.msra.mxu0 0.0
    %739 = vmatprep.subr.mxu0 0.0
    %740 = vmatpush2.xpose.msra.mxu0 0.0
    %741 = vmatprep.mubr.f32.mxu0 0.0
    %742 = vmatmul.mubr.f32.gmra.mxu0 %v673
    %v743 = vpop.f32.mrf.mxu0
    %v744 = vadd.f32 0.0, %v743
    %v745 = vpop.f32.mrf.mxu0
    %746 = vdwg.mxu0
    %748 = vrot.lane.b32.xlu0 %v493, 120
    %v749 = vpop.permute.xlu0 %748
    %v750 = vsel %vm386, %v493, 0
    %v752 = vsel %vm386, %v749, 0
    %754 = vmatprep.subr.mxu0 0.0
    %755 = vmatpush1.xpose.msra.mxu0 0.0
    %756 = vmatprep.subr.mxu0 0.0
    %757 = vmatpush1.xpose.msra.mxu0 0.0
    %758 = vmatprep.subr.mxu0 0.0
    %759 = vmatpush1.xpose.msra.mxu0 0.0
    %760 = vmatprep.subr.mxu0 0.0
    %761 = vmatpush1.xpose.msra.mxu0 0.0
    %762 = vmatprep.subr.mxu0 0.0
    %763 = vmatpush1.xpose.msra.mxu0 0.0
    %764 = vmatprep.subr.mxu0 0.0
    %765 = vmatpush1.xpose.msra.mxu0 0.0
    %766 = vmatprep.subr.mxu0 0.0
    %767 = vmatpush1.xpose.msra.mxu0 0.0
    %768 = vmatprep.subr.mxu0 0.0
    %769 = vmatpush1.xpose.msra.mxu0 0.0
    %770 = vmatprep.subr.mxu0 0.0
    %771 = vmatpush1.xpose.msra.mxu0 0.0
    %772 = vmatprep.subr.mxu0 0.0
    %773 = vmatpush1.xpose.msra.mxu0 0.0
    %774 = vmatprep.subr.mxu0 0.0
    %775 = vmatpush1.xpose.msra.mxu0 0.0
    %776 = vmatprep.subr.mxu0 0.0
    %777 = vmatpush1.xpose.msra.mxu0 0.0
    %778 = vmatprep.subr.mxu0 0.0
    %779 = vmatpush1.xpose.msra.mxu0 0.0
    %780 = vmatprep.subr.mxu0 0.0
    %781 = vmatpush1.xpose.msra.mxu0 0.0
    %782 = vmatprep.subr.mxu0 0.0
    %783 = vmatpush1.xpose.msra.mxu0 0.0
    %784 = vmatprep.subr.mxu0 0.0
    %785 = vmatpush1.xpose.msra.mxu0 %v752
    %786 = vmatprep.subr.mxu0 0.0
    %787 = vmatpush2.xpose.msra.mxu0 0.0
    %788 = vmatprep.subr.mxu0 0.0
    %789 = vmatpush2.xpose.msra.mxu0 0.0
    %790 = vmatprep.subr.mxu0 0.0
    %791 = vmatpush2.xpose.msra.mxu0 0.0
    %792 = vmatprep.subr.mxu0 0.0
    %793 = vmatpush2.xpose.msra.mxu0 0.0
    %794 = vmatprep.subr.mxu0 0.0
    %795 = vmatpush2.xpose.msra.mxu0 0.0
    %796 = vmatprep.subr.mxu0 0.0
    %797 = vmatpush2.xpose.msra.mxu0 0.0
    %798 = vmatprep.subr.mxu0 0.0
    %799 = vmatpush2.xpose.msra.mxu0 0.0
    %800 = vmatprep.subr.mxu0 0.0
    %801 = vmatpush2.xpose.msra.mxu0 0.0
    %802 = vmatprep.subr.mxu0 0.0
    %803 = vmatpush2.xpose.msra.mxu0 0.0
    %804 = vmatprep.subr.mxu0 0.0
    %805 = vmatpush2.xpose.msra.mxu0 0.0
    %806 = vmatprep.subr.mxu0 0.0
    %807 = vmatpush2.xpose.msra.mxu0 0.0
    %808 = vmatprep.subr.mxu0 0.0
    %809 = vmatpush2.xpose.msra.mxu0 0.0
    %810 = vmatprep.subr.mxu0 0.0
    %811 = vmatpush2.xpose.msra.mxu0 0.0
    %812 = vmatprep.subr.mxu0 0.0
    %813 = vmatpush2.xpose.msra.mxu0 0.0
    %814 = vmatprep.subr.mxu0 0.0
    %815 = vmatpush2.xpose.msra.mxu0 0.0
    %816 = vmatprep.subr.mxu0 0.0
    %817 = vmatpush2.xpose.msra.mxu0 0.0
    %818 = vmatprep.mubr.f32.mxu0 0.0
    %819 = vmatmul.mubr.f32.gmra.mxu0 %v750
    %v820 = vpop.f32.mrf.mxu0
    %v821 = vadd.f32 0.0, %v820
    %v822 = vpop.f32.mrf.mxu0
    %823 = vdwg.mxu0
    %825 = vrot.lane.b32.xlu0 %v498, 120
    %v826 = vpop.permute.xlu0 %825
    %v827 = vsel %vm386, %v498, 0
    %v829 = vsel %vm386, %v826, 0
    %831 = vmatprep.subr.mxu0 0.0
    %832 = vmatpush1.xpose.msra.mxu0 0.0
    %833 = vmatprep.subr.mxu0 0.0
    %834 = vmatpush1.xpose.msra.mxu0 0.0
    %835 = vmatprep.subr.mxu0 0.0
    %836 = vmatpush1.xpose.msra.mxu0 0.0
    %837 = vmatprep.subr.mxu0 0.0
    %838 = vmatpush1.xpose.msra.mxu0 0.0
    %839 = vmatprep.subr.mxu0 0.0
    %840 = vmatpush1.xpose.msra.mxu0 0.0
    %841 = vmatprep.subr.mxu0 0.0
    %842 = vmatpush1.xpose.msra.mxu0 0.0
    %843 = vmatprep.subr.mxu0 0.0
    %844 = vmatpush1.xpose.msra.mxu0 0.0
    %845 = vmatprep.subr.mxu0 0.0
    %846 = vmatpush1.xpose.msra.mxu0 0.0
    %847 = vmatprep.subr.mxu0 0.0
    %848 = vmatpush1.xpose.msra.mxu0 0.0
    %849 = vmatprep.subr.mxu0 0.0
    %850 = vmatpush1.xpose.msra.mxu0 0.0
    %851 = vmatprep.subr.mxu0 0.0
    %852 = vmatpush1.xpose.msra.mxu0 0.0
    %853 = vmatprep.subr.mxu0 0.0
    %854 = vmatpush1.xpose.msra.mxu0 0.0
    %855 = vmatprep.subr.mxu0 0.0
    %856 = vmatpush1.xpose.msra.mxu0 0.0
    %857 = vmatprep.subr.mxu0 0.0
    %858 = vmatpush1.xpose.msra.mxu0 0.0
    %859 = vmatprep.subr.mxu0 0.0
    %860 = vmatpush1.xpose.msra.mxu0 0.0
    %861 = vmatprep.subr.mxu0 0.0
    %862 = vmatpush1.xpose.msra.mxu0 %v829
    %863 = vmatprep.subr.mxu0 0.0
    %864 = vmatpush2.xpose.msra.mxu0 0.0
    %865 = vmatprep.subr.mxu0 0.0
    %866 = vmatpush2.xpose.msra.mxu0 0.0
    %867 = vmatprep.subr.mxu0 0.0
    %868 = vmatpush2.xpose.msra.mxu0 0.0
    %869 = vmatprep.subr.mxu0 0.0
    %870 = vmatpush2.xpose.msra.mxu0 0.0
    %871 = vmatprep.subr.mxu0 0.0
    %872 = vmatpush2.xpose.msra.mxu0 0.0
    %873 = vmatprep.subr.mxu0 0.0
    %874 = vmatpush2.xpose.msra.mxu0 0.0
    %875 = vmatprep.subr.mxu0 0.0
    %876 = vmatpush2.xpose.msra.mxu0 0.0
    %877 = vmatprep.subr.mxu0 0.0
    %878 = vmatpush2.xpose.msra.mxu0 0.0
    %879 = vmatprep.subr.mxu0 0.0
    %880 = vmatpush2.xpose.msra.mxu0 0.0
    %881 = vmatprep.subr.mxu0 0.0
    %882 = vmatpush2.xpose.msra.mxu0 0.0
    %883 = vmatprep.subr.mxu0 0.0
    %884 = vmatpush2.xpose.msra.mxu0 0.0
    %885 = vmatprep.subr.mxu0 0.0
    %886 = vmatpush2.xpose.msra.mxu0 0.0
    %887 = vmatprep.subr.mxu0 0.0
    %888 = vmatpush2.xpose.msra.mxu0 0.0
    %889 = vmatprep.subr.mxu0 0.0
    %890 = vmatpush2.xpose.msra.mxu0 0.0
    %891 = vmatprep.subr.mxu0 0.0
    %892 = vmatpush2.xpose.msra.mxu0 0.0
    %893 = vmatprep.subr.mxu0 0.0
    %894 = vmatpush2.xpose.msra.mxu0 0.0
    %895 = vmatprep.mubr.f32.mxu0 0.0
    %896 = vmatmul.mubr.f32.gmra.mxu0 %v827
    %v897 = vpop.f32.mrf.mxu0
    %v898 = vadd.f32 0.0, %v897
    %v899 = vpop.f32.mrf.mxu0
    %900 = vdwg.mxu0
    %902 = vrot.lane.b32.xlu0 %v503, 120
    %v903 = vpop.permute.xlu0 %902
    %v904 = vsel %vm386, %v503, 0
    %v906 = vsel %vm386, %v903, 0
    %908 = vmatprep.subr.mxu0 0.0
    %909 = vmatpush1.xpose.msra.mxu0 0.0
    %910 = vmatprep.subr.mxu0 0.0
    %911 = vmatpush1.xpose.msra.mxu0 0.0
    %912 = vmatprep.subr.mxu0 0.0
    %913 = vmatpush1.xpose.msra.mxu0 0.0
    %914 = vmatprep.subr.mxu0 0.0
    %915 = vmatpush1.xpose.msra.mxu0 0.0
    %916 = vmatprep.subr.mxu0 0.0
    %917 = vmatpush1.xpose.msra.mxu0 0.0
    %918 = vmatprep.subr.mxu0 0.0
    %919 = vmatpush1.xpose.msra.mxu0 0.0
    %920 = vmatprep.subr.mxu0 0.0
    %921 = vmatpush1.xpose.msra.mxu0 0.0
    %922 = vmatprep.subr.mxu0 0.0
    %923 = vmatpush1.xpose.msra.mxu0 0.0
    %924 = vmatprep.subr.mxu0 0.0
    %925 = vmatpush1.xpose.msra.mxu0 0.0
    %926 = vmatprep.subr.mxu0 0.0
    %927 = vmatpush1.xpose.msra.mxu0 0.0
    %928 = vmatprep.subr.mxu0 0.0
    %929 = vmatpush1.xpose.msra.mxu0 0.0
    %930 = vmatprep.subr.mxu0 0.0
    %931 = vmatpush1.xpose.msra.mxu0 0.0
    %932 = vmatprep.subr.mxu0 0.0
    %933 = vmatpush1.xpose.msra.mxu0 0.0
    %934 = vmatprep.subr.mxu0 0.0
    %935 = vmatpush1.xpose.msra.mxu0 0.0
    %936 = vmatprep.subr.mxu0 0.0
    %937 = vmatpush1.xpose.msra.mxu0 0.0
    %938 = vmatprep.subr.mxu0 0.0
    %939 = vmatpush1.xpose.msra.mxu0 %v906
    %940 = vmatprep.subr.mxu0 0.0
    %941 = vmatpush2.xpose.msra.mxu0 0.0
    %942 = vmatprep.subr.mxu0 0.0
    %943 = vmatpush2.xpose.msra.mxu0 0.0
    %944 = vmatprep.subr.mxu0 0.0
    %945 = vmatpush2.xpose.msra.mxu0 0.0
    %946 = vmatprep.subr.mxu0 0.0
    %947 = vmatpush2.xpose.msra.mxu0 0.0
    %948 = vmatprep.subr.mxu0 0.0
    %949 = vmatpush2.xpose.msra.mxu0 0.0
    %950 = vmatprep.subr.mxu0 0.0
    %951 = vmatpush2.xpose.msra.mxu0 0.0
    %952 = vmatprep.subr.mxu0 0.0
    %953 = vmatpush2.xpose.msra.mxu0 0.0
    %954 = vmatprep.subr.mxu0 0.0
    %955 = vmatpush2.xpose.msra.mxu0 0.0
    %956 = vmatprep.subr.mxu0 0.0
    %957 = vmatpush2.xpose.msra.mxu0 0.0
    %958 = vmatprep.subr.mxu0 0.0
    %959 = vmatpush2.xpose.msra.mxu0 0.0
    %960 = vmatprep.subr.mxu0 0.0
    %961 = vmatpush2.xpose.msra.mxu0 0.0
    %962 = vmatprep.subr.mxu0 0.0
    %963 = vmatpush2.xpose.msra.mxu0 0.0
    %964 = vmatprep.subr.mxu0 0.0
    %965 = vmatpush2.xpose.msra.mxu0 0.0
    %966 = vmatprep.subr.mxu0 0.0
    %967 = vmatpush2.xpose.msra.mxu0 0.0
    %968 = vmatprep.subr.mxu0 0.0
    %969 = vmatpush2.xpose.msra.mxu0 0.0
    %970 = vmatprep.subr.mxu0 0.0
    %971 = vmatpush2.xpose.msra.mxu0 0.0
    %972 = vmatprep.mubr.f32.mxu0 0.0
    %973 = vmatmul.mubr.f32.gmra.mxu0 %v904
    %v974 = vpop.f32.mrf.mxu0
    %v975 = vadd.f32 0.0, %v974
    %v976 = vpop.f32.mrf.mxu0
    %977 = vdwg.mxu0
    %979 = vrot.lane.b32.xlu0 %v508, 120
    %v980 = vpop.permute.xlu0 %979
    %v981 = vsel %vm386, %v508, 0
    %v983 = vsel %vm386, %v980, 0
    %985 = vmatprep.subr.mxu0 0.0
    %986 = vmatpush1.xpose.msra.mxu0 0.0
    %987 = vmatprep.subr.mxu0 0.0
    %988 = vmatpush1.xpose.msra.mxu0 0.0
    %989 = vmatprep.subr.mxu0 0.0
    %990 = vmatpush1.xpose.msra.mxu0 0.0
    %991 = vmatprep.subr.mxu0 0.0
    %992 = vmatpush1.xpose.msra.mxu0 0.0
    %993 = vmatprep.subr.mxu0 0.0
    %994 = vmatpush1.xpose.msra.mxu0 0.0
    %995 = vmatprep.subr.mxu0 0.0
    %996 = vmatpush1.xpose.msra.mxu0 0.0
    %997 = vmatprep.subr.mxu0 0.0
    %998 = vmatpush1.xpose.msra.mxu0 0.0
    %999 = vmatprep.subr.mxu0 0.0
    %1000 = vmatpush1.xpose.msra.mxu0 0.0
    %1001 = vmatprep.subr.mxu0 0.0
    %1002 = vmatpush1.xpose.msra.mxu0 0.0
    %1003 = vmatprep.subr.mxu0 0.0
    %1004 = vmatpush1.xpose.msra.mxu0 0.0
    %1005 = vmatprep.subr.mxu0 0.0
    %1006 = vmatpush1.xpose.msra.mxu0 0.0
    %1007 = vmatprep.subr.mxu0 0.0
    %1008 = vmatpush1.xpose.msra.mxu0 0.0
    %1009 = vmatprep.subr.mxu0 0.0
    %1010 = vmatpush1.xpose.msra.mxu0 0.0
    %1011 = vmatprep.subr.mxu0 0.0
    %1012 = vmatpush1.xpose.msra.mxu0 0.0
    %1013 = vmatprep.subr.mxu0 0.0
    %1014 = vmatpush1.xpose.msra.mxu0 0.0
    %1015 = vmatprep.subr.mxu0 0.0
    %1016 = vmatpush1.xpose.msra.mxu0 %v983
    %1017 = vmatprep.subr.mxu0 0.0
    %1018 = vmatpush2.xpose.msra.mxu0 0.0
    %1019 = vmatprep.subr.mxu0 0.0
    %1020 = vmatpush2.xpose.msra.mxu0 0.0
    %1021 = vmatprep.subr.mxu0 0.0
    %1022 = vmatpush2.xpose.msra.mxu0 0.0
    %1023 = vmatprep.subr.mxu0 0.0
    %1024 = vmatpush2.xpose.msra.mxu0 0.0
    %1025 = vmatprep.subr.mxu0 0.0
    %1026 = vmatpush2.xpose.msra.mxu0 0.0
    %1027 = vmatprep.subr.mxu0 0.0
    %1028 = vmatpush2.xpose.msra.mxu0 0.0
    %1029 = vmatprep.subr.mxu0 0.0
    %1030 = vmatpush2.xpose.msra.mxu0 0.0
    %1031 = vmatprep.subr.mxu0 0.0
    %1032 = vmatpush2.xpose.msra.mxu0 0.0
    %1033 = vmatprep.subr.mxu0 0.0
    %1034 = vmatpush2.xpose.msra.mxu0 0.0
    %1035 = vmatprep.subr.mxu0 0.0
    %1036 = vmatpush2.xpose.msra.mxu0 0.0
    %1037 = vmatprep.subr.mxu0 0.0
    %1038 = vmatpush2.xpose.msra.mxu0 0.0
    %1039 = vmatprep.subr.mxu0 0.0
    %1040 = vmatpush2.xpose.msra.mxu0 0.0
    %1041 = vmatprep.subr.mxu0 0.0
    %1042 = vmatpush2.xpose.msra.mxu0 0.0
    %1043 = vmatprep.subr.mxu0 0.0
    %1044 = vmatpush2.xpose.msra.mxu0 0.0
    %1045 = vmatprep.subr.mxu0 0.0
    %1046 = vmatpush2.xpose.msra.mxu0 0.0
    %1047 = vmatprep.subr.mxu0 0.0
    %1048 = vmatpush2.xpose.msra.mxu0 0.0
    %1049 = vmatprep.mubr.f32.mxu0 0.0
    %1050 = vmatmul.mubr.f32.gmra.mxu0 %v981
    %v1051 = vpop.f32.mrf.mxu0
    %v1052 = vadd.f32 0.0, %v1051
    %v1053 = vpop.f32.mrf.mxu0
    %1054 = vdwg.mxu0
    %1056 = vrot.lane.b32.xlu0 %v513, 120
    %v1057 = vpop.permute.xlu0 %1056
    %v1058 = vsel %vm386, %v513, 0
    %v1060 = vsel %vm386, %v1057, 0
    %1062 = vmatprep.subr.mxu0 0.0
    %1063 = vmatpush1.xpose.msra.mxu0 0.0
    %1064 = vmatprep.subr.mxu0 0.0
    %1065 = vmatpush1.xpose.msra.mxu0 0.0
    %1066 = vmatprep.subr.mxu0 0.0
    %1067 = vmatpush1.xpose.msra.mxu0 0.0
    %1068 = vmatprep.subr.mxu0 0.0
    %1069 = vmatpush1.xpose.msra.mxu0 0.0
    %1070 = vmatprep.subr.mxu0 0.0
    %1071 = vmatpush1.xpose.msra.mxu0 0.0
    %1072 = vmatprep.subr.mxu0 0.0
    %1073 = vmatpush1.xpose.msra.mxu0 0.0
    %1074 = vmatprep.subr.mxu0 0.0
    %1075 = vmatpush1.xpose.msra.mxu0 0.0
    %1076 = vmatprep.subr.mxu0 0.0
    %1077 = vmatpush1.xpose.msra.mxu0 0.0
    %1078 = vmatprep.subr.mxu0 0.0
    %1079 = vmatpush1.xpose.msra.mxu0 0.0
    %1080 = vmatprep.subr.mxu0 0.0
    %1081 = vmatpush1.xpose.msra.mxu0 0.0
    %1082 = vmatprep.subr.mxu0 0.0
    %1083 = vmatpush1.xpose.msra.mxu0 0.0
    %1084 = vmatprep.subr.mxu0 0.0
    %1085 = vmatpush1.xpose.msra.mxu0 0.0
    %1086 = vmatprep.subr.mxu0 0.0
    %1087 = vmatpush1.xpose.msra.mxu0 0.0
    %1088 = vmatprep.subr.mxu0 0.0
    %1089 = vmatpush1.xpose.msra.mxu0 0.0
    %1090 = vmatprep.subr.mxu0 0.0
    %1091 = vmatpush1.xpose.msra.mxu0 0.0
    %1092 = vmatprep.subr.mxu0 0.0
    %1093 = vmatpush1.xpose.msra.mxu0 %v1060
    %1094 = vmatprep.subr.mxu0 0.0
    %1095 = vmatpush2.xpose.msra.mxu0 0.0
    %1096 = vmatprep.subr.mxu0 0.0
    %1097 = vmatpush2.xpose.msra.mxu0 0.0
    %1098 = vmatprep.subr.mxu0 0.0
    %1099 = vmatpush2.xpose.msra.mxu0 0.0
    %1100 = vmatprep.subr.mxu0 0.0
    %1101 = vmatpush2.xpose.msra.mxu0 0.0
    %1102 = vmatprep.subr.mxu0 0.0
    %1103 = vmatpush2.xpose.msra.mxu0 0.0
    %1104 = vmatprep.subr.mxu0 0.0
    %1105 = vmatpush2.xpose.msra.mxu0 0.0
    %1106 = vmatprep.subr.mxu0 0.0
    %1107 = vmatpush2.xpose.msra.mxu0 0.0
    %1108 = vmatprep.subr.mxu0 0.0
    %1109 = vmatpush2.xpose.msra.mxu0 0.0
    %1110 = vmatprep.subr.mxu0 0.0
    %1111 = vmatpush2.xpose.msra.mxu0 0.0
    %1112 = vmatprep.subr.mxu0 0.0
    %1113 = vmatpush2.xpose.msra.mxu0 0.0
    %1114 = vmatprep.subr.mxu0 0.0
    %1115 = vmatpush2.xpose.msra.mxu0 0.0
    %1116 = vmatprep.subr.mxu0 0.0
    %1117 = vmatpush2.xpose.msra.mxu0 0.0
    %1118 = vmatprep.subr.mxu0 0.0
    %1119 = vmatpush2.xpose.msra.mxu0 0.0
    %1120 = vmatprep.subr.mxu0 0.0
    %1121 = vmatpush2.xpose.msra.mxu0 0.0
    %1122 = vmatprep.subr.mxu0 0.0
    %1123 = vmatpush2.xpose.msra.mxu0 0.0
    %1124 = vmatprep.subr.mxu0 0.0
    %1125 = vmatpush2.xpose.msra.mxu0 0.0
    %1126 = vmatprep.mubr.f32.mxu0 0.0
    %1127 = vmatmul.mubr.f32.gmra.mxu0 %v1058
    %v1128 = vpop.f32.mrf.mxu0
    %v1129 = vadd.f32 0.0, %v1128
    %v1130 = vpop.f32.mrf.mxu0
    %1131 = vdwg.mxu0
    %v1132 = vmul.f32 %v590, 0.35355338
    %v1133 = vmul.f32 %v667, 0.35355338
    %v1134 = vmul.f32 %v744, 0.35355338
    %v1135 = vmul.f32 %v821, 0.35355338
    %v1136 = vmul.f32 %v898, 0.35355338
    %v1137 = vmul.f32 %v975, 0.35355338
    %v1138 = vmul.f32 %v1052, 0.35355338
    %v1139 = vmul.f32 %v1129, 0.35355338
    %v1140 = vsel %vm386, %v1132, -inf
    %1141 = vmax.xlane.f32.xlu0 %v1140
    %v1142 = vpop.xlane.xlu0 %1141
    %v1143 = vsel %vm386, %v1133, -inf
    %1144 = vmax.xlane.f32.xlu0 %v1143
    %v1145 = vpop.xlane.xlu0 %1144
    %v1146 = vsel %vm386, %v1134, -inf
    %1147 = vmax.xlane.f32.xlu0 %v1146
    %v1148 = vpop.xlane.xlu0 %1147
    %v1149 = vsel %vm386, %v1135, -inf
    %1150 = vmax.xlane.f32.xlu0 %v1149
    %v1151 = vpop.xlane.xlu0 %1150
    %v1152 = vsel %vm386, %v1136, -inf
    %1153 = vmax.xlane.f32.xlu0 %v1152
    %v1154 = vpop.xlane.xlu0 %1153
    %v1155 = vsel %vm386, %v1137, -inf
    %1156 = vmax.xlane.f32.xlu0 %v1155
    %v1157 = vpop.xlane.xlu0 %1156
    %v1158 = vsel %vm386, %v1138, -inf
    %1159 = vmax.xlane.f32.xlu0 %v1158
    %v1160 = vpop.xlane.xlu0 %1159
    %v1161 = vsel %vm386, %v1139, -inf
    %1162 = vmax.xlane.f32.xlu0 %v1161
    %v1163 = vpop.xlane.xlu0 %1162
    %v1164 = vsub.f32 %v1132, %v1142
    %v1165 = vsub.f32 %v1133, %v1145
    %v1166 = vsub.f32 %v1134, %v1148
    %v1167 = vsub.f32 %v1135, %v1151
    %v1168 = vsub.f32 %v1136, %v1154
    %v1169 = vsub.f32 %v1137, %v1157
    %v1170 = vsub.f32 %v1138, %v1160
    %v1171 = vsub.f32 %v1139, %v1163
    %v1172 = vmul.f32 %v1164, 1.442695
    %v1173 = vpow.pop %v1172
    %v1174 = vmul.f32 %v1165, 1.442695
    %v1175 = vpow.pop %v1174
    %v1176 = vmul.f32 %v1166, 1.442695
    %v1177 = vpow.pop %v1176
    %v1178 = vmul.f32 %v1167, 1.442695
    %v1179 = vpow.pop %v1178
    %v1180 = vmul.f32 %v1168, 1.442695
    %v1181 = vpow.pop %v1180
    %v1182 = vmul.f32 %v1169, 1.442695
    %v1183 = vpow.pop %v1182
    %v1184 = vmul.f32 %v1170, 1.442695
    %v1185 = vpow.pop %v1184
    %v1186 = vmul.f32 %v1171, 1.442695
    %v1187 = vpow.pop %v1186
    %v1188 = vsel %vm386, %v1173, 0.0
    %1189 = vadd.xlane.f32.xlu0 %v1188
    %v1190 = vpop.xlane.xlu0 %1189
    %v1191 = vsel %vm386, %v1175, 0.0
    %1192 = vadd.xlane.f32.xlu0 %v1191
    %v1193 = vpop.xlane.xlu0 %1192
    %v1194 = vsel %vm386, %v1177, 0.0
    %1195 = vadd.xlane.f32.xlu0 %v1194
    %v1196 = vpop.xlane.xlu0 %1195
    %v1197 = vsel %vm386, %v1179, 0.0
    %1198 = vadd.xlane.f32.xlu0 %v1197
    %v1199 = vpop.xlane.xlu0 %1198
    %v1200 = vsel %vm386, %v1181, 0.0
    %1201 = vadd.xlane.f32.xlu0 %v1200
    %v1202 = vpop.xlane.xlu0 %1201
    %v1203 = vsel %vm386, %v1183, 0.0
    %1204 = vadd.xlane.f32.xlu0 %v1203
    %v1205 = vpop.xlane.xlu0 %1204
    %v1206 = vsel %vm386, %v1185, 0.0
    %1207 = vadd.xlane.f32.xlu0 %v1206
    %v1208 = vpop.xlane.xlu0 %1207
    %v1209 = vsel %vm386, %v1187, 0.0
    %1210 = vadd.xlane.f32.xlu0 %v1209
    %v1211 = vpop.xlane.xlu0 %1210
    %v1212 = vrcp.pop %v1190
    %v1213 = vrcp.pop %v1193
    %v1214 = vrcp.pop %v1196
    %v1215 = vrcp.pop %v1199
    %v1216 = vrcp.pop %v1202
    %v1217 = vrcp.pop %v1205
    %v1218 = vrcp.pop %v1208
    %v1219 = vrcp.pop %v1211
    %v1220 = vmul.f32 %v1173, %v1212
    %v1221 = vmul.f32 %v1175, %v1213
    %v1222 = vmul.f32 %v1177, %v1214
    %v1223 = vmul.f32 %v1179, %v1215
    %v1224 = vmul.f32 %v1181, %v1216
    %v1225 = vmul.f32 %v1183, %v1217
    %v1226 = vmul.f32 %v1185, %v1218
    %v1227 = vmul.f32 %v1187, %v1219
    %1228 = vrot.lane.b32.xlu0 %v478, 112
    %v1229 = vpop.permute.xlu0 %1228
    %v1232 = vsel %vm386, %v1220, 0
    %1234 = vmatprep.subr.mxu0 0.0
    %1235 = vmatpush1.msra.mxu0 0.0
    %1236 = vmatprep.subr.mxu0 0.0
    %1237 = vmatpush1.msra.mxu0 0.0
    %1238 = vmatprep.subr.mxu0 0.0
    %1239 = vmatpush1.msra.mxu0 0.0
    %1240 = vmatprep.subr.mxu0 0.0
    %1241 = vmatpush1.msra.mxu0 0.0
    %1242 = vmatprep.subr.mxu0 0.0
    %1243 = vmatpush1.msra.mxu0 0.0
    %1244 = vmatprep.subr.mxu0 0.0
    %1245 = vmatpush1.msra.mxu0 0.0
    %1246 = vmatprep.subr.mxu0 0.0
    %1247 = vmatpush1.msra.mxu0 0.0
    %1248 = vmatprep.subr.mxu0 0.0
    %1249 = vmatpush1.msra.mxu0 0.0
    %1250 = vmatprep.subr.mxu0 0.0
    %1251 = vmatpush1.msra.mxu0 0.0
    %1252 = vmatprep.subr.mxu0 0.0
    %1253 = vmatpush1.msra.mxu0 0.0
    %1254 = vmatprep.subr.mxu0 0.0
    %1255 = vmatpush1.msra.mxu0 0.0
    %1256 = vmatprep.subr.mxu0 0.0
    %1257 = vmatpush1.msra.mxu0 0.0
    %1258 = vmatprep.subr.mxu0 0.0
    %1259 = vmatpush1.msra.mxu0 0.0
    %1260 = vmatprep.subr.mxu0 0.0
    %1261 = vmatpush1.msra.mxu0 0.0
    %1262 = vmatprep.subr.mxu0 0.0
    %1263 = vmatpush1.msra.mxu0 0.0
    %1264 = vmatprep.subr.mxu0 0.0
    %1265 = vmatpush1.msra.mxu0 %v1229
    %1266 = vmatprep.subr.mxu0 0.0
    %1267 = vmatpush2.msra.mxu0 0.0
    %1268 = vmatprep.subr.mxu0 0.0
    %1269 = vmatpush2.msra.mxu0 0.0
    %1270 = vmatprep.subr.mxu0 0.0
    %1271 = vmatpush2.msra.mxu0 0.0
    %1272 = vmatprep.subr.mxu0 0.0
    %1273 = vmatpush2.msra.mxu0 0.0
    %1274 = vmatprep.subr.mxu0 0.0
    %1275 = vmatpush2.msra.mxu0 0.0
    %1276 = vmatprep.subr.mxu0 0.0
    %1277 = vmatpush2.msra.mxu0 0.0
    %1278 = vmatprep.subr.mxu0 0.0
    %1279 = vmatpush2.msra.mxu0 0.0
    %1280 = vmatprep.subr.mxu0 0.0
    %1281 = vmatpush2.msra.mxu0 0.0
    %1282 = vmatprep.subr.mxu0 0.0
    %1283 = vmatpush2.msra.mxu0 0.0
    %1284 = vmatprep.subr.mxu0 0.0
    %1285 = vmatpush2.msra.mxu0 0.0
    %1286 = vmatprep.subr.mxu0 0.0
    %1287 = vmatpush2.msra.mxu0 0.0
    %1288 = vmatprep.subr.mxu0 0.0
    %1289 = vmatpush2.msra.mxu0 0.0
    %1290 = vmatprep.subr.mxu0 0.0
    %1291 = vmatpush2.msra.mxu0 0.0
    %1292 = vmatprep.subr.mxu0 0.0
    %1293 = vmatpush2.msra.mxu0 0.0
    %1294 = vmatprep.subr.mxu0 0.0
    %1295 = vmatpush2.msra.mxu0 0.0
    %1296 = vmatprep.subr.mxu0 0.0
    %1297 = vmatpush2.msra.mxu0 0.0
    %1298 = vmatprep.mubr.f32.mxu0 0.0
    %1299 = vmatmul.mubr.f32.gmra.mxu0 %v1232
    %v1300 = vpop.f32.mrf.mxu0
    %v1301 = vadd.f32 0.0, %v1300
    %v1302 = vpop.f32.mrf.mxu0
    %1303 = vdwg.mxu0
    %1304 = vrot.lane.b32.xlu0 %v483, 112
    %v1305 = vpop.permute.xlu0 %1304
    %v1308 = vsel %vm386, %v1221, 0
    %1310 = vmatprep.subr.mxu0 0.0
    %1311 = vmatpush1.msra.mxu0 0.0
    %1312 = vmatprep.subr.mxu0 0.0
    %1313 = vmatpush1.msra.mxu0 0.0
    %1314 = vmatprep.subr.mxu0 0.0
    %1315 = vmatpush1.msra.mxu0 0.0
    %1316 = vmatprep.subr.mxu0 0.0
    %1317 = vmatpush1.msra.mxu0 0.0
    %1318 = vmatprep.subr.mxu0 0.0
    %1319 = vmatpush1.msra.mxu0 0.0
    %1320 = vmatprep.subr.mxu0 0.0
    %1321 = vmatpush1.msra.mxu0 0.0
    %1322 = vmatprep.subr.mxu0 0.0
    %1323 = vmatpush1.msra.mxu0 0.0
    %1324 = vmatprep.subr.mxu0 0.0
    %1325 = vmatpush1.msra.mxu0 0.0
    %1326 = vmatprep.subr.mxu0 0.0
    %1327 = vmatpush1.msra.mxu0 0.0
    %1328 = vmatprep.subr.mxu0 0.0
    %1329 = vmatpush1.msra.mxu0 0.0
    %1330 = vmatprep.subr.mxu0 0.0
    %1331 = vmatpush1.msra.mxu0 0.0
    %1332 = vmatprep.subr.mxu0 0.0
    %1333 = vmatpush1.msra.mxu0 0.0
    %1334 = vmatprep.subr.mxu0 0.0
    %1335 = vmatpush1.msra.mxu0 0.0
    %1336 = vmatprep.subr.mxu0 0.0
    %1337 = vmatpush1.msra.mxu0 0.0
    %1338 = vmatprep.subr.mxu0 0.0
    %1339 = vmatpush1.msra.mxu0 0.0
    %1340 = vmatprep.subr.mxu0 0.0
    %1341 = vmatpush1.msra.mxu0 %v1305
    %1342 = vmatprep.subr.mxu0 0.0
    %1343 = vmatpush2.msra.mxu0 0.0
    %1344 = vmatprep.subr.mxu0 0.0
    %1345 = vmatpush2.msra.mxu0 0.0
    %1346 = vmatprep.subr.mxu0 0.0
    %1347 = vmatpush2.msra.mxu0 0.0
    %1348 = vmatprep.subr.mxu0 0.0
    %1349 = vmatpush2.msra.mxu0 0.0
    %1350 = vmatprep.subr.mxu0 0.0
    %1351 = vmatpush2.msra.mxu0 0.0
    %1352 = vmatprep.subr.mxu0 0.0
    %1353 = vmatpush2.msra.mxu0 0.0
    %1354 = vmatprep.subr.mxu0 0.0
    %1355 = vmatpush2.msra.mxu0 0.0
    %1356 = vmatprep.subr.mxu0 0.0
    %1357 = vmatpush2.msra.mxu0 0.0
    %1358 = vmatprep.subr.mxu0 0.0
    %1359 = vmatpush2.msra.mxu0 0.0
    %1360 = vmatprep.subr.mxu0 0.0
    %1361 = vmatpush2.msra.mxu0 0.0
    %1362 = vmatprep.subr.mxu0 0.0
    %1363 = vmatpush2.msra.mxu0 0.0
    %1364 = vmatprep.subr.mxu0 0.0
    %1365 = vmatpush2.msra.mxu0 0.0
    %1366 = vmatprep.subr.mxu0 0.0
    %1367 = vmatpush2.msra.mxu0 0.0
    %1368 = vmatprep.subr.mxu0 0.0
    %1369 = vmatpush2.msra.mxu0 0.0
    %1370 = vmatprep.subr.mxu0 0.0
    %1371 = vmatpush2.msra.mxu0 0.0
    %1372 = vmatprep.subr.mxu0 0.0
    %1373 = vmatpush2.msra.mxu0 0.0
    %1374 = vmatprep.mubr.f32.mxu0 0.0
    %1375 = vmatmul.mubr.f32.gmra.mxu0 %v1308
    %v1376 = vpop.f32.mrf.mxu0
    %v1377 = vadd.f32 0.0, %v1376
    %v1378 = vpop.f32.mrf.mxu0
    %1379 = vdwg.mxu0
    %1380 = vrot.lane.b32.xlu0 %v488, 112
    %v1381 = vpop.permute.xlu0 %1380
    %v1384 = vsel %vm386, %v1222, 0
    %1386 = vmatprep.subr.mxu0 0.0
    %1387 = vmatpush1.msra.mxu0 0.0
    %1388 = vmatprep.subr.mxu0 0.0
    %1389 = vmatpush1.msra.mxu0 0.0
    %1390 = vmatprep.subr.mxu0 0.0
    %1391 = vmatpush1.msra.mxu0 0.0
    %1392 = vmatprep.subr.mxu0 0.0
    %1393 = vmatpush1.msra.mxu0 0.0
    %1394 = vmatprep.subr.mxu0 0.0
    %1395 = vmatpush1.msra.mxu0 0.0
    %1396 = vmatprep.subr.mxu0 0.0
    %1397 = vmatpush1.msra.mxu0 0.0
    %1398 = vmatprep.subr.mxu0 0.0
    %1399 = vmatpush1.msra.mxu0 0.0
    %1400 = vmatprep.subr.mxu0 0.0
    %1401 = vmatpush1.msra.mxu0 0.0
    %1402 = vmatprep.subr.mxu0 0.0
    %1403 = vmatpush1.msra.mxu0 0.0
    %1404 = vmatprep.subr.mxu0 0.0
    %1405 = vmatpush1.msra.mxu0 0.0
    %1406 = vmatprep.subr.mxu0 0.0
    %1407 = vmatpush1.msra.mxu0 0.0
    %1408 = vmatprep.subr.mxu0 0.0
    %1409 = vmatpush1.msra.mxu0 0.0
    %1410 = vmatprep.subr.mxu0 0.0
    %1411 = vmatpush1.msra.mxu0 0.0
    %1412 = vmatprep.subr.mxu0 0.0
    %1413 = vmatpush1.msra.mxu0 0.0
    %1414 = vmatprep.subr.mxu0 0.0
    %1415 = vmatpush1.msra.mxu0 0.0
    %1416 = vmatprep.subr.mxu0 0.0
    %1417 = vmatpush1.msra.mxu0 %v1381
    %1418 = vmatprep.subr.mxu0 0.0
    %1419 = vmatpush2.msra.mxu0 0.0
    %1420 = vmatprep.subr.mxu0 0.0
    %1421 = vmatpush2.msra.mxu0 0.0
    %1422 = vmatprep.subr.mxu0 0.0
    %1423 = vmatpush2.msra.mxu0 0.0
    %1424 = vmatprep.subr.mxu0 0.0
    %1425 = vmatpush2.msra.mxu0 0.0
    %1426 = vmatprep.subr.mxu0 0.0
    %1427 = vmatpush2.msra.mxu0 0.0
    %1428 = vmatprep.subr.mxu0 0.0
    %1429 = vmatpush2.msra.mxu0 0.0
    %1430 = vmatprep.subr.mxu0 0.0
    %1431 = vmatpush2.msra.mxu0 0.0
    %1432 = vmatprep.subr.mxu0 0.0
    %1433 = vmatpush2.msra.mxu0 0.0
    %1434 = vmatprep.subr.mxu0 0.0
    %1435 = vmatpush2.msra.mxu0 0.0
    %1436 = vmatprep.subr.mxu0 0.0
    %1437 = vmatpush2.msra.mxu0 0.0
    %1438 = vmatprep.subr.mxu0 0.0
    %1439 = vmatpush2.msra.mxu0 0.0
    %1440 = vmatprep.subr.mxu0 0.0
    %1441 = vmatpush2.msra.mxu0 0.0
    %1442 = vmatprep.subr.mxu0 0.0
    %1443 = vmatpush2.msra.mxu0 0.0
    %1444 = vmatprep.subr.mxu0 0.0
    %1445 = vmatpush2.msra.mxu0 0.0
    %1446 = vmatprep.subr.mxu0 0.0
    %1447 = vmatpush2.msra.mxu0 0.0
    %1448 = vmatprep.subr.mxu0 0.0
    %1449 = vmatpush2.msra.mxu0 0.0
    %1450 = vmatprep.mubr.f32.mxu0 0.0
    %1451 = vmatmul.mubr.f32.gmra.mxu0 %v1384
    %v1452 = vpop.f32.mrf.mxu0
    %v1453 = vadd.f32 0.0, %v1452
    %v1454 = vpop.f32.mrf.mxu0
    %1455 = vdwg.mxu0
    %1456 = vrot.lane.b32.xlu0 %v493, 112
    %v1457 = vpop.permute.xlu0 %1456
    %v1460 = vsel %vm386, %v1223, 0
    %1462 = vmatprep.subr.mxu0 0.0
    %1463 = vmatpush1.msra.mxu0 0.0
    %1464 = vmatprep.subr.mxu0 0.0
    %1465 = vmatpush1.msra.mxu0 0.0
    %1466 = vmatprep.subr.mxu0 0.0
    %1467 = vmatpush1.msra.mxu0 0.0
    %1468 = vmatprep.subr.mxu0 0.0
    %1469 = vmatpush1.msra.mxu0 0.0
    %1470 = vmatprep.subr.mxu0 0.0
    %1471 = vmatpush1.msra.mxu0 0.0
    %1472 = vmatprep.subr.mxu0 0.0
    %1473 = vmatpush1.msra.mxu0 0.0
    %1474 = vmatprep.subr.mxu0 0.0
    %1475 = vmatpush1.msra.mxu0 0.0
    %1476 = vmatprep.subr.mxu0 0.0
    %1477 = vmatpush1.msra.mxu0 0.0
    %1478 = vmatprep.subr.mxu0 0.0
    %1479 = vmatpush1.msra.mxu0 0.0
    %1480 = vmatprep.subr.mxu0 0.0
    %1481 = vmatpush1.msra.mxu0 0.0
    %1482 = vmatprep.subr.mxu0 0.0
    %1483 = vmatpush1.msra.mxu0 0.0
    %1484 = vmatprep.subr.mxu0 0.0
    %1485 = vmatpush1.msra.mxu0 0.0
    %1486 = vmatprep.subr.mxu0 0.0
    %1487 = vmatpush1.msra.mxu0 0.0
    %1488 = vmatprep.subr.mxu0 0.0
    %1489 = vmatpush1.msra.mxu0 0.0
    %1490 = vmatprep.subr.mxu0 0.0
    %1491 = vmatpush1.msra.mxu0 0.0
    %1492 = vmatprep.subr.mxu0 0.0
    %1493 = vmatpush1.msra.mxu0 %v1457
    %1494 = vmatprep.subr.mxu0 0.0
    %1495 = vmatpush2.msra.mxu0 0.0
    %1496 = vmatprep.subr.mxu0 0.0
    %1497 = vmatpush2.msra.mxu0 0.0
    %1498 = vmatprep.subr.mxu0 0.0
    %1499 = vmatpush2.msra.mxu0 0.0
    %1500 = vmatprep.subr.mxu0 0.0
    %1501 = vmatpush2.msra.mxu0 0.0
    %1502 = vmatprep.subr.mxu0 0.0
    %1503 = vmatpush2.msra.mxu0 0.0
    %1504 = vmatprep.subr.mxu0 0.0
    %1505 = vmatpush2.msra.mxu0 0.0
    %1506 = vmatprep.subr.mxu0 0.0
    %1507 = vmatpush2.msra.mxu0 0.0
    %1508 = vmatprep.subr.mxu0 0.0
    %1509 = vmatpush2.msra.mxu0 0.0
    %1510 = vmatprep.subr.mxu0 0.0
    %1511 = vmatpush2.msra.mxu0 0.0
    %1512 = vmatprep.subr.mxu0 0.0
    %1513 = vmatpush2.msra.mxu0 0.0
    %1514 = vmatprep.subr.mxu0 0.0
    %1515 = vmatpush2.msra.mxu0 0.0
    %1516 = vmatprep.subr.mxu0 0.0
    %1517 = vmatpush2.msra.mxu0 0.0
    %1518 = vmatprep.subr.mxu0 0.0
    %1519 = vmatpush2.msra.mxu0 0.0
    %1520 = vmatprep.subr.mxu0 0.0
    %1521 = vmatpush2.msra.mxu0 0.0
    %1522 = vmatprep.subr.mxu0 0.0
    %1523 = vmatpush2.msra.mxu0 0.0
    %1524 = vmatprep.subr.mxu0 0.0
    %1525 = vmatpush2.msra.mxu0 0.0
    %1526 = vmatprep.mubr.f32.mxu0 0.0
    %1527 = vmatmul.mubr.f32.gmra.mxu0 %v1460
    %v1528 = vpop.f32.mrf.mxu0
    %v1529 = vadd.f32 0.0, %v1528
    %v1530 = vpop.f32.mrf.mxu0
    %1531 = vdwg.mxu0
    %1532 = vrot.lane.b32.xlu0 %v498, 112
    %v1533 = vpop.permute.xlu0 %1532
    %v1536 = vsel %vm386, %v1224, 0
    %1538 = vmatprep.subr.mxu0 0.0
    %1539 = vmatpush1.msra.mxu0 0.0
    %1540 = vmatprep.subr.mxu0 0.0
    %1541 = vmatpush1.msra.mxu0 0.0
    %1542 = vmatprep.subr.mxu0 0.0
    %1543 = vmatpush1.msra.mxu0 0.0
    %1544 = vmatprep.subr.mxu0 0.0
    %1545 = vmatpush1.msra.mxu0 0.0
    %1546 = vmatprep.subr.mxu0 0.0
    %1547 = vmatpush1.msra.mxu0 0.0
    %1548 = vmatprep.subr.mxu0 0.0
    %1549 = vmatpush1.msra.mxu0 0.0
    %1550 = vmatprep.subr.mxu0 0.0
    %1551 = vmatpush1.msra.mxu0 0.0
    %1552 = vmatprep.subr.mxu0 0.0
    %1553 = vmatpush1.msra.mxu0 0.0
    %1554 = vmatprep.subr.mxu0 0.0
    %1555 = vmatpush1.msra.mxu0 0.0
    %1556 = vmatprep.subr.mxu0 0.0
    %1557 = vmatpush1.msra.mxu0 0.0
    %1558 = vmatprep.subr.mxu0 0.0
    %1559 = vmatpush1.msra.mxu0 0.0
    %1560 = vmatprep.subr.mxu0 0.0
    %1561 = vmatpush1.msra.mxu0 0.0
    %1562 = vmatprep.subr.mxu0 0.0
    %1563 = vmatpush1.msra.mxu0 0.0
    %1564 = vmatprep.subr.mxu0 0.0
    %1565 = vmatpush1.msra.mxu0 0.0
    %1566 = vmatprep.subr.mxu0 0.0
    %1567 = vmatpush1.msra.mxu0 0.0
    %1568 = vmatprep.subr.mxu0 0.0
    %1569 = vmatpush1.msra.mxu0 %v1533
    %1570 = vmatprep.subr.mxu0 0.0
    %1571 = vmatpush2.msra.mxu0 0.0
    %1572 = vmatprep.subr.mxu0 0.0
    %1573 = vmatpush2.msra.mxu0 0.0
    %1574 = vmatprep.subr.mxu0 0.0
    %1575 = vmatpush2.msra.mxu0 0.0
    %1576 = vmatprep.subr.mxu0 0.0
    %1577 = vmatpush2.msra.mxu0 0.0
    %1578 = vmatprep.subr.mxu0 0.0
    %1579 = vmatpush2.msra.mxu0 0.0
    %1580 = vmatprep.subr.mxu0 0.0
    %1581 = vmatpush2.msra.mxu0 0.0
    %1582 = vmatprep.subr.mxu0 0.0
    %1583 = vmatpush2.msra.mxu0 0.0
    %1584 = vmatprep.subr.mxu0 0.0
    %1585 = vmatpush2.msra.mxu0 0.0
    %1586 = vmatprep.subr.mxu0 0.0
    %1587 = vmatpush2.msra.mxu0 0.0
    %1588 = vmatprep.subr.mxu0 0.0
    %1589 = vmatpush2.msra.mxu0 0.0
    %1590 = vmatprep.subr.mxu0 0.0
    %1591 = vmatpush2.msra.mxu0 0.0
    %1592 = vmatprep.subr.mxu0 0.0
    %1593 = vmatpush2.msra.mxu0 0.0
    %1594 = vmatprep.subr.mxu0 0.0
    %1595 = vmatpush2.msra.mxu0 0.0
    %1596 = vmatprep.subr.mxu0 0.0
    %1597 = vmatpush2.msra.mxu0 0.0
    %1598 = vmatprep.subr.mxu0 0.0
    %1599 = vmatpush2.msra.mxu0 0.0
    %1600 = vmatprep.subr.mxu0 0.0
    %1601 = vmatpush2.msra.mxu0 0.0
    %1602 = vmatprep.mubr.f32.mxu0 0.0
    %1603 = vmatmul.mubr.f32.gmra.mxu0 %v1536
    %v1604 = vpop.f32.mrf.mxu0
    %v1605 = vadd.f32 0.0, %v1604
    %v1606 = vpop.f32.mrf.mxu0
    %1607 = vdwg.mxu0
    %1608 = vrot.lane.b32.xlu0 %v503, 112
    %v1609 = vpop.permute.xlu0 %1608
    %v1612 = vsel %vm386, %v1225, 0
    %1614 = vmatprep.subr.mxu0 0.0
    %1615 = vmatpush1.msra.mxu0 0.0
    %1616 = vmatprep.subr.mxu0 0.0
    %1617 = vmatpush1.msra.mxu0 0.0
    %1618 = vmatprep.subr.mxu0 0.0
    %1619 = vmatpush1.msra.mxu0 0.0
    %1620 = vmatprep.subr.mxu0 0.0
    %1621 = vmatpush1.msra.mxu0 0.0
    %1622 = vmatprep.subr.mxu0 0.0
    %1623 = vmatpush1.msra.mxu0 0.0
    %1624 = vmatprep.subr.mxu0 0.0
    %1625 = vmatpush1.msra.mxu0 0.0
    %1626 = vmatprep.subr.mxu0 0.0
    %1627 = vmatpush1.msra.mxu0 0.0
    %1628 = vmatprep.subr.mxu0 0.0
    %1629 = vmatpush1.msra.mxu0 0.0
    %1630 = vmatprep.subr.mxu0 0.0
    %1631 = vmatpush1.msra.mxu0 0.0
    %1632 = vmatprep.subr.mxu0 0.0
    %1633 = vmatpush1.msra.mxu0 0.0
    %1634 = vmatprep.subr.mxu0 0.0
    %1635 = vmatpush1.msra.mxu0 0.0
    %1636 = vmatprep.subr.mxu0 0.0
    %1637 = vmatpush1.msra.mxu0 0.0
    %1638 = vmatprep.subr.mxu0 0.0
    %1639 = vmatpush1.msra.mxu0 0.0
    %1640 = vmatprep.subr.mxu0 0.0
    %1641 = vmatpush1.msra.mxu0 0.0
    %1642 = vmatprep.subr.mxu0 0.0
    %1643 = vmatpush1.msra.mxu0 0.0
    %1644 = vmatprep.subr.mxu0 0.0
    %1645 = vmatpush1.msra.mxu0 %v1609
    %1646 = vmatprep.subr.mxu0 0.0
    %1647 = vmatpush2.msra.mxu0 0.0
    %1648 = vmatprep.subr.mxu0 0.0
    %1649 = vmatpush2.msra.mxu0 0.0
    %1650 = vmatprep.subr.mxu0 0.0
    %1651 = vmatpush2.msra.mxu0 0.0
    %1652 = vmatprep.subr.mxu0 0.0
    %1653 = vmatpush2.msra.mxu0 0.0
    %1654 = vmatprep.subr.mxu0 0.0
    %1655 = vmatpush2.msra.mxu0 0.0
    %1656 = vmatprep.subr.mxu0 0.0
    %1657 = vmatpush2.msra.mxu0 0.0
    %1658 = vmatprep.subr.mxu0 0.0
    %1659 = vmatpush2.msra.mxu0 0.0
    %1660 = vmatprep.subr.mxu0 0.0
    %1661 = vmatpush2.msra.mxu0 0.0
    %1662 = vmatprep.subr.mxu0 0.0
    %1663 = vmatpush2.msra.mxu0 0.0
    %1664 = vmatprep.subr.mxu0 0.0
    %1665 = vmatpush2.msra.mxu0 0.0
    %1666 = vmatprep.subr.mxu0 0.0
    %1667 = vmatpush2.msra.mxu0 0.0
    %1668 = vmatprep.subr.mxu0 0.0
    %1669 = vmatpush2.msra.mxu0 0.0
    %1670 = vmatprep.subr.mxu0 0.0
    %1671 = vmatpush2.msra.mxu0 0.0
    %1672 = vmatprep.subr.mxu0 0.0
    %1673 = vmatpush2.msra.mxu0 0.0
    %1674 = vmatprep.subr.mxu0 0.0
    %1675 = vmatpush2.msra.mxu0 0.0
    %1676 = vmatprep.subr.mxu0 0.0
    %1677 = vmatpush2.msra.mxu0 0.0
    %1678 = vmatprep.mubr.f32.mxu0 0.0
    %1679 = vmatmul.mubr.f32.gmra.mxu0 %v1612
    %v1680 = vpop.f32.mrf.mxu0
    %v1681 = vadd.f32 0.0, %v1680
    %v1682 = vpop.f32.mrf.mxu0
    %1683 = vdwg.mxu0
    %1684 = vrot.lane.b32.xlu0 %v508, 112
    %v1685 = vpop.permute.xlu0 %1684
    %v1688 = vsel %vm386, %v1226, 0
    %1690 = vmatprep.subr.mxu0 0.0
    %1691 = vmatpush1.msra.mxu0 0.0
    %1692 = vmatprep.subr.mxu0 0.0
    %1693 = vmatpush1.msra.mxu0 0.0
    %1694 = vmatprep.subr.mxu0 0.0
    %1695 = vmatpush1.msra.mxu0 0.0
    %1696 = vmatprep.subr.mxu0 0.0
    %1697 = vmatpush1.msra.mxu0 0.0
    %1698 = vmatprep.subr.mxu0 0.0
    %1699 = vmatpush1.msra.mxu0 0.0
    %1700 = vmatprep.subr.mxu0 0.0
    %1701 = vmatpush1.msra.mxu0 0.0
    %1702 = vmatprep.subr.mxu0 0.0
    %1703 = vmatpush1.msra.mxu0 0.0
    %1704 = vmatprep.subr.mxu0 0.0
    %1705 = vmatpush1.msra.mxu0 0.0
    %1706 = vmatprep.subr.mxu0 0.0
    %1707 = vmatpush1.msra.mxu0 0.0
    %1708 = vmatprep.subr.mxu0 0.0
    %1709 = vmatpush1.msra.mxu0 0.0
    %1710 = vmatprep.subr.mxu0 0.0
    %1711 = vmatpush1.msra.mxu0 0.0
    %1712 = vmatprep.subr.mxu0 0.0
    %1713 = vmatpush1.msra.mxu0 0.0
    %1714 = vmatprep.subr.mxu0 0.0
    %1715 = vmatpush1.msra.mxu0 0.0
    %1716 = vmatprep.subr.mxu0 0.0
    %1717 = vmatpush1.msra.mxu0 0.0
    %1718 = vmatprep.subr.mxu0 0.0
    %1719 = vmatpush1.msra.mxu0 0.0
    %1720 = vmatprep.subr.mxu0 0.0
    %1721 = vmatpush1.msra.mxu0 %v1685
    %1722 = vmatprep.subr.mxu0 0.0
    %1723 = vmatpush2.msra.mxu0 0.0
    %1724 = vmatprep.subr.mxu0 0.0
    %1725 = vmatpush2.msra.mxu0 0.0
    %1726 = vmatprep.subr.mxu0 0.0
    %1727 = vmatpush2.msra.mxu0 0.0
    %1728 = vmatprep.subr.mxu0 0.0
    %1729 = vmatpush2.msra.mxu0 0.0
    %1730 = vmatprep.subr.mxu0 0.0
    %1731 = vmatpush2.msra.mxu0 0.0
    %1732 = vmatprep.subr.mxu0 0.0
    %1733 = vmatpush2.msra.mxu0 0.0
    %1734 = vmatprep.subr.mxu0 0.0
    %1735 = vmatpush2.msra.mxu0 0.0
    %1736 = vmatprep.subr.mxu0 0.0
    %1737 = vmatpush2.msra.mxu0 0.0
    %1738 = vmatprep.subr.mxu0 0.0
    %1739 = vmatpush2.msra.mxu0 0.0
    %1740 = vmatprep.subr.mxu0 0.0
    %1741 = vmatpush2.msra.mxu0 0.0
    %1742 = vmatprep.subr.mxu0 0.0
    %1743 = vmatpush2.msra.mxu0 0.0
    %1744 = vmatprep.subr.mxu0 0.0
    %1745 = vmatpush2.msra.mxu0 0.0
    %1746 = vmatprep.subr.mxu0 0.0
    %1747 = vmatpush2.msra.mxu0 0.0
    %1748 = vmatprep.subr.mxu0 0.0
    %1749 = vmatpush2.msra.mxu0 0.0
    %1750 = vmatprep.subr.mxu0 0.0
    %1751 = vmatpush2.msra.mxu0 0.0
    %1752 = vmatprep.subr.mxu0 0.0
    %1753 = vmatpush2.msra.mxu0 0.0
    %1754 = vmatprep.mubr.f32.mxu0 0.0
    %1755 = vmatmul.mubr.f32.gmra.mxu0 %v1688
    %v1756 = vpop.f32.mrf.mxu0
    %v1757 = vadd.f32 0.0, %v1756
    %v1758 = vpop.f32.mrf.mxu0
    %1759 = vdwg.mxu0
    %1760 = vrot.lane.b32.xlu0 %v513, 112
    %v1761 = vpop.permute.xlu0 %1760
    %v1764 = vsel %vm386, %v1227, 0
    %1766 = vmatprep.subr.mxu0 0.0
    %1767 = vmatpush1.msra.mxu0 0.0
    %1768 = vmatprep.subr.mxu0 0.0
    %1769 = vmatpush1.msra.mxu0 0.0
    %1770 = vmatprep.subr.mxu0 0.0
    %1771 = vmatpush1.msra.mxu0 0.0
    %1772 = vmatprep.subr.mxu0 0.0
    %1773 = vmatpush1.msra.mxu0 0.0
    %1774 = vmatprep.subr.mxu0 0.0
    %1775 = vmatpush1.msra.mxu0 0.0
    %1776 = vmatprep.subr.mxu0 0.0
    %1777 = vmatpush1.msra.mxu0 0.0
    %1778 = vmatprep.subr.mxu0 0.0
    %1779 = vmatpush1.msra.mxu0 0.0
    %1780 = vmatprep.subr.mxu0 0.0
    %1781 = vmatpush1.msra.mxu0 0.0
    %1782 = vmatprep.subr.mxu0 0.0
    %1783 = vmatpush1.msra.mxu0 0.0
    %1784 = vmatprep.subr.mxu0 0.0
    %1785 = vmatpush1.msra.mxu0 0.0
    %1786 = vmatprep.subr.mxu0 0.0
    %1787 = vmatpush1.msra.mxu0 0.0
    %1788 = vmatprep.subr.mxu0 0.0
    %1789 = vmatpush1.msra.mxu0 0.0
    %1790 = vmatprep.subr.mxu0 0.0
    %1791 = vmatpush1.msra.mxu0 0.0
    %1792 = vmatprep.subr.mxu0 0.0
    %1793 = vmatpush1.msra.mxu0 0.0
    %1794 = vmatprep.subr.mxu0 0.0
    %1795 = vmatpush1.msra.mxu0 0.0
    %1796 = vmatprep.subr.mxu0 0.0
    %1797 = vmatpush1.msra.mxu0 %v1761
    %1798 = vmatprep.subr.mxu0 0.0
    %1799 = vmatpush2.msra.mxu0 0.0
    %1800 = vmatprep.subr.mxu0 0.0
    %1801 = vmatpush2.msra.mxu0 0.0
    %1802 = vmatprep.subr.mxu0 0.0
    %1803 = vmatpush2.msra.mxu0 0.0
    %1804 = vmatprep.subr.mxu0 0.0
    %1805 = vmatpush2.msra.mxu0 0.0
    %1806 = vmatprep.subr.mxu0 0.0
    %1807 = vmatpush2.msra.mxu0 0.0
    %1808 = vmatprep.subr.mxu0 0.0
    %1809 = vmatpush2.msra.mxu0 0.0
    %1810 = vmatprep.subr.mxu0 0.0
    %1811 = vmatpush2.msra.mxu0 0.0
    %1812 = vmatprep.subr.mxu0 0.0
    %1813 = vmatpush2.msra.mxu0 0.0
    %1814 = vmatprep.subr.mxu0 0.0
    %1815 = vmatpush2.msra.mxu0 0.0
    %1816 = vmatprep.subr.mxu0 0.0
    %1817 = vmatpush2.msra.mxu0 0.0
    %1818 = vmatprep.subr.mxu0 0.0
    %1819 = vmatpush2.msra.mxu0 0.0
    %1820 = vmatprep.subr.mxu0 0.0
    %1821 = vmatpush2.msra.mxu0 0.0
    %1822 = vmatprep.subr.mxu0 0.0
    %1823 = vmatpush2.msra.mxu0 0.0
    %1824 = vmatprep.subr.mxu0 0.0
    %1825 = vmatpush2.msra.mxu0 0.0
    %1826 = vmatprep.subr.mxu0 0.0
    %1827 = vmatpush2.msra.mxu0 0.0
    %1828 = vmatprep.subr.mxu0 0.0
    %1829 = vmatpush2.msra.mxu0 0.0
    %1830 = vmatprep.mubr.f32.mxu0 0.0
    %1831 = vmatmul.mubr.f32.gmra.mxu0 %v1764
    %v1832 = vpop.f32.mrf.mxu0
    %v1833 = vadd.f32 0.0, %v1832
    %v1834 = vpop.f32.mrf.mxu0
    %1835 = vdwg.mxu0
    %v1836 = vld [vmem:[%s7] sm:$0xff]
    %v1837 = vlaneseq
    %v1838 = vshrl.u32 %v1837, 7
    %v1839 = vsub.s32 1, %v1838
    %v1840 = vrot.slane %v42, %v1839
    %v1842 = vsel %vm386, %v1301, 0
    %v1845 = vsel %vm386, %v1377, 0
    %v1848 = vsel %vm386, %v1453, 0
    %v1851 = vsel %vm386, %v1529, 0
    %v1854 = vsel %vm386, %v1605, 0
    %v1857 = vsel %vm386, %v1681, 0
    %v1860 = vsel %vm386, %v1757, 0
    %v1863 = vsel %vm386, %v1833, 0
    %1865 = vmatprep.subr.mxu0 0.0
    %1866 = vmatpush1.msra.mxu0 0.0
    %1867 = vmatprep.subr.mxu0 0.0
    %1868 = vmatpush1.msra.mxu0 0.0
    %1869 = vmatprep.subr.mxu0 0.0
    %1870 = vmatpush1.msra.mxu0 0.0
    %1871 = vmatprep.subr.mxu0 0.0
    %1872 = vmatpush1.msra.mxu0 0.0
    %1873 = vmatprep.subr.mxu0 0.0
    %1874 = vmatpush1.msra.mxu0 0.0
    %1875 = vmatprep.subr.mxu0 0.0
    %1876 = vmatpush1.msra.mxu0 0.0
    %1877 = vmatprep.subr.mxu0 0.0
    %1878 = vmatpush1.msra.mxu0 0.0
    %1879 = vmatprep.subr.mxu0 0.0
    %1880 = vmatpush1.msra.mxu0 0.0
    %1881 = vmatprep.subr.mxu0 0.0
    %1882 = vmatpush1.msra.mxu0 0.0
    %1883 = vmatprep.subr.mxu0 0.0
    %1884 = vmatpush1.msra.mxu0 0.0
    %1885 = vmatprep.subr.mxu0 0.0
    %1886 = vmatpush1.msra.mxu0 0.0
    %1887 = vmatprep.subr.mxu0 0.0
    %1888 = vmatpush1.msra.mxu0 0.0
    %1889 = vmatprep.subr.mxu0 0.0
    %1890 = vmatpush1.msra.mxu0 0.0
    %1891 = vmatprep.subr.mxu0 0.0
    %1892 = vmatpush1.msra.mxu0 0.0
    %1893 = vmatprep.subr.mxu0 0.0
    %1894 = vmatpush1.msra.mxu0 0.0
    %1895 = vmatprep.subr.mxu0 0.0
    %1896 = vmatpush1.msra.mxu0 %v1836
    %1897 = vmatprep.subr.mxu0 0.0
    %1898 = vmatpush2.msra.mxu0 0.0
    %1899 = vmatprep.subr.mxu0 0.0
    %1900 = vmatpush2.msra.mxu0 0.0
    %1901 = vmatprep.subr.mxu0 0.0
    %1902 = vmatpush2.msra.mxu0 0.0
    %1903 = vmatprep.subr.mxu0 0.0
    %1904 = vmatpush2.msra.mxu0 0.0
    %1905 = vmatprep.subr.mxu0 0.0
    %1906 = vmatpush2.msra.mxu0 0.0
    %1907 = vmatprep.subr.mxu0 0.0
    %1908 = vmatpush2.msra.mxu0 0.0
    %1909 = vmatprep.subr.mxu0 0.0
    %1910 = vmatpush2.msra.mxu0 0.0
    %1911 = vmatprep.subr.mxu0 0.0
    %1912 = vmatpush2.msra.mxu0 0.0
    %1913 = vmatprep.subr.mxu0 0.0
    %1914 = vmatpush2.msra.mxu0 0.0
    %1915 = vmatprep.subr.mxu0 0.0
    %1916 = vmatpush2.msra.mxu0 0.0
    %1917 = vmatprep.subr.mxu0 0.0
    %1918 = vmatpush2.msra.mxu0 0.0
    %1919 = vmatprep.subr.mxu0 0.0
    %1920 = vmatpush2.msra.mxu0 0.0
    %1921 = vmatprep.subr.mxu0 0.0
    %1922 = vmatpush2.msra.mxu0 0.0
    %1923 = vmatprep.subr.mxu0 0.0
    %1924 = vmatpush2.msra.mxu0 0.0
    %1925 = vmatprep.subr.mxu0 0.0
    %1926 = vmatpush2.msra.mxu0 0.0
    %1927 = vmatprep.subr.mxu0 0.0
    %1928 = vmatpush2.msra.mxu0 0.0
    %1929 = vmatprep.mubr.f32.mxu0 0.0
    %1930 = vmatmul.mubr.f32.gmra.mxu0 %v1842
    %v1931 = vpop.f32.mrf.mxu0
    %v1932 = vadd.f32 %v1840, %v1931
    %v1933 = vpop.f32.mrf.mxu0
    %1934 = vmatprep.mubr.f32.mxu0 0.0
    %1935 = vmatmul.mubr.f32.gmra.mxu0 %v1845
    %v1936 = vpop.f32.mrf.mxu0
    %v1937 = vadd.f32 %v1840, %v1936
    %v1938 = vpop.f32.mrf.mxu0
    %1939 = vmatprep.mubr.f32.mxu0 0.0
    %1940 = vmatmul.mubr.f32.gmra.mxu0 %v1848
    %v1941 = vpop.f32.mrf.mxu0
    %v1942 = vadd.f32 %v1840, %v1941
    %v1943 = vpop.f32.mrf.mxu0
    %1944 = vmatprep.mubr.f32.mxu0 0.0
    %1945 = vmatmul.mubr.f32.gmra.mxu0 %v1851
    %v1946 = vpop.f32.mrf.mxu0
    %v1947 = vadd.f32 %v1840, %v1946
    %v1948 = vpop.f32.mrf.mxu0
    %1949 = vmatprep.mubr.f32.mxu0 0.0
    %1950 = vmatmul.mubr.f32.gmra.mxu0 %v1854
    %v1951 = vpop.f32.mrf.mxu0
    %v1952 = vadd.f32 %v1840, %v1951
    %v1953 = vpop.f32.mrf.mxu0
    %1954 = vmatprep.mubr.f32.mxu0 0.0
    %1955 = vmatmul.mubr.f32.gmra.mxu0 %v1857
    %v1956 = vpop.f32.mrf.mxu0
    %v1957 = vadd.f32 %v1840, %v1956
    %v1958 = vpop.f32.mrf.mxu0
    %1959 = vmatprep.mubr.f32.mxu0 0.0
    %1960 = vmatmul.mubr.f32.gmra.mxu0 %v1860
    %v1961 = vpop.f32.mrf.mxu0
    %v1962 = vadd.f32 %v1840, %v1961
    %v1963 = vpop.f32.mrf.mxu0
    %1964 = vmatprep.mubr.f32.mxu0 0.0
    %1965 = vmatmul.mubr.f32.gmra.mxu0 %v1863
    %v1966 = vpop.f32.mrf.mxu0
    %v1967 = vadd.f32 %v1840, %v1966
    %v1968 = vpop.f32.mrf.mxu0
    %1969 = vdwg.mxu0
    %v1970 = vadd.f32 %v370, %v1932
    %v1971 = vadd.f32 %v371, %v1937
    %v1972 = vadd.f32 %v372, %v1942
    %v1973 = vadd.f32 %v373, %v1947
    %v1974 = vadd.f32 %v374, %v1952
    %v1975 = vadd.f32 %v375, %v1957
    %v1976 = vadd.f32 %v376, %v1962
    %v1977 = vadd.f32 %v377, %v1967
    %v1978 = vsel %vm386, %v1970, 0.0
    %1979 = vadd.xlane.f32.xlu0 %v1978
    %v1980 = vpop.xlane.xlu0 %1979
    %v1981 = vsel %vm386, %v1971, 0.0
    %1982 = vadd.xlane.f32.xlu0 %v1981
    %v1983 = vpop.xlane.xlu0 %1982
    %v1984 = vsel %vm386, %v1972, 0.0
    %1985 = vadd.xlane.f32.xlu0 %v1984
    %v1986 = vpop.xlane.xlu0 %1985
    %v1987 = vsel %vm386, %v1973, 0.0
    %1988 = vadd.xlane.f32.xlu0 %v1987
    %v1989 = vpop.xlane.xlu0 %1988
    %v1990 = vsel %vm386, %v1974, 0.0
    %1991 = vadd.xlane.f32.xlu0 %v1990
    %v1992 = vpop.xlane.xlu0 %1991
    %v1993 = vsel %vm386, %v1975, 0.0
    %1994 = vadd.xlane.f32.xlu0 %v1993
    %v1995 = vpop.xlane.xlu0 %1994
    %v1996 = vsel %vm386, %v1976, 0.0
    %1997 = vadd.xlane.f32.xlu0 %v1996
    %v1998 = vpop.xlane.xlu0 %1997
    %v1999 = vsel %vm386, %v1977, 0.0
    %2000 = vadd.xlane.f32.xlu0 %v1999
    %v2001 = vpop.xlane.xlu0 %2000
    %v2002 = vrcp.pop 8.0
    %v2003 = vmul.f32 %v1980, %v2002
    %v2004 = vmul.f32 %v1983, %v2002
    %v2005 = vmul.f32 %v1986, %v2002
    %v2006 = vmul.f32 %v1989, %v2002
    %v2007 = vmul.f32 %v1992, %v2002
    %v2008 = vmul.f32 %v1995, %v2002
    %v2009 = vmul.f32 %v1998, %v2002
    %v2010 = vmul.f32 %v2001, %v2002
    %v2011 = vsub.f32 %v1970, %v2003
    %v2012 = vsub.f32 %v1971, %v2004
    %v2013 = vsub.f32 %v1972, %v2005
    %v2014 = vsub.f32 %v1973, %v2006
    %v2015 = vsub.f32 %v1974, %v2007
    %v2016 = vsub.f32 %v1975, %v2008
    %v2017 = vsub.f32 %v1976, %v2009
    %v2018 = vsub.f32 %v1977, %v2010
    %v2019 = vmul.f32 %v2011, %v2011
    %v2020 = vmul.f32 %v2012, %v2012
    %v2021 = vmul.f32 %v2013, %v2013
    %v2022 = vmul.f32 %v2014, %v2014
    %v2023 = vmul.f32 %v2015, %v2015
    %v2024 = vmul.f32 %v2016, %v2016
    %v2025 = vmul.f32 %v2017, %v2017
    %v2026 = vmul.f32 %v2018, %v2018
    %v2027 = vsel %vm386, %v2019, 0.0
    %2028 = vadd.xlane.f32.xlu0 %v2027
    %v2029 = vpop.xlane.xlu0 %2028
    %v2030 = vsel %vm386, %v2020, 0.0
    %2031 = vadd.xlane.f32.xlu0 %v2030
    %v2032 = vpop.xlane.xlu0 %2031
    %v2033 = vsel %vm386, %v2021, 0.0
    %2034 = vadd.xlane.f32.xlu0 %v2033
    %v2035 = vpop.xlane.xlu0 %2034
    %v2036 = vsel %vm386, %v2022, 0.0
    %2037 = vadd.xlane.f32.xlu0 %v2036
    %v2038 = vpop.xlane.xlu0 %2037
    %v2039 = vsel %vm386, %v2023, 0.0
    %2040 = vadd.xlane.f32.xlu0 %v2039
    %v2041 = vpop.xlane.xlu0 %2040
    %v2042 = vsel %vm386, %v2024, 0.0
    %2043 = vadd.xlane.f32.xlu0 %v2042
    %v2044 = vpop.xlane.xlu0 %2043
    %v2045 = vsel %vm386, %v2025, 0.0
    %2046 = vadd.xlane.f32.xlu0 %v2045
    %v2047 = vpop.xlane.xlu0 %2046
    %v2048 = vsel %vm386, %v2026, 0.0
    %2049 = vadd.xlane.f32.xlu0 %v2048
    %v2050 = vpop.xlane.xlu0 %2049
    %v2051 = vmul.f32 %v2029, %v2002
    %v2052 = vmul.f32 %v2032, %v2002
    %v2053 = vmul.f32 %v2035, %v2002
    %v2054 = vmul.f32 %v2038, %v2002
    %v2055 = vmul.f32 %v2041, %v2002
    %v2056 = vmul.f32 %v2044, %v2002
    %v2057 = vmul.f32 %v2047, %v2002
    %v2058 = vmul.f32 %v2050, %v2002
    %v2059 = vadd.f32 %v2051, 1e-05
    %v2060 = vadd.f32 %v2052, 1e-05
    %v2061 = vadd.f32 %v2053, 1e-05
    %v2062 = vadd.f32 %v2054, 1e-05
    %v2063 = vadd.f32 %v2055, 1e-05
    %v2064 = vadd.f32 %v2056, 1e-05
    %v2065 = vadd.f32 %v2057, 1e-05
    %v2066 = vadd.f32 %v2058, 1e-05
    %v2067 = vrsqrt.pop %v2059
    %v2068 = vrsqrt.pop %v2060
    %v2069 = vrsqrt.pop %v2061
    %v2070 = vrsqrt.pop %v2062
    %v2071 = vrsqrt.pop %v2063
    %v2072 = vrsqrt.pop %v2064
    %v2073 = vrsqrt.pop %v2065
    %v2074 = vrsqrt.pop %v2066
    %v2075 = vmul.f32 %v2011, %v2067
    %v2076 = vmul.f32 %v2012, %v2068
    %v2077 = vmul.f32 %v2013, %v2069
    %v2078 = vmul.f32 %v2014, %v2070
    %v2079 = vmul.f32 %v2015, %v2071
    %v2080 = vmul.f32 %v2016, %v2072
    %v2081 = vmul.f32 %v2017, %v2073
    %v2082 = vmul.f32 %v2018, %v2074
    %v2083 = vlaneseq
    %v2084 = vshrl.u32 %v2083, 7
    %v2085 = vsub.s32 3, %v2084
    %v2086 = vrot.slane %v42, %v2085
    %v2087 = vmul.f32 %v2075, %v2086
    %v2088 = vmul.f32 %v2076, %v2086
    %v2089 = vmul.f32 %v2077, %v2086
    %v2090 = vmul.f32 %v2078, %v2086
    %v2091 = vmul.f32 %v2079, %v2086
    %v2092 = vmul.f32 %v2080, %v2086
    %v2093 = vmul.f32 %v2081, %v2086
    %v2094 = vmul.f32 %v2082, %v2086
    %v2095 = vlaneseq
    %v2096 = vshrl.u32 %v2095, 7
    %v2097 = vsub.s32 4, %v2096
    %v2098 = vrot.slane %v42, %v2097
    %v2099 = vadd.f32 %v2087, %v2098
    %v2100 = vadd.f32 %v2088, %v2098
    %v2101 = vadd.f32 %v2089, %v2098
    %v2102 = vadd.f32 %v2090, %v2098
    %v2103 = vadd.f32 %v2091, %v2098
    %v2104 = vadd.f32 %v2092, %v2098
    %v2105 = vadd.f32 %v2093, %v2098
    %v2106 = vadd.f32 %v2094, %v2098
    %v2107 = vld [vmem:[%s8] sm:$0xff]
    %v2108 = vld [vmem:[%s9] sm:$0x1]
    %v2110 = vlaneseq
    %v2111 = vshrl.u32 %v2110, 7
    %v2112 = vsub.s32 0, %v2111
    %v2113 = vrot.slane %v2108, %v2112
    %v2116 = vsel %vm386, %v2099, 0
    %v2119 = vsel %vm386, %v2100, 0
    %v2122 = vsel %vm386, %v2101, 0
    %v2125 = vsel %vm386, %v2102, 0
    %v2128 = vsel %vm386, %v2103, 0
    %v2131 = vsel %vm386, %v2104, 0
    %v2134 = vsel %vm386, %v2105, 0
    %v2137 = vsel %vm386, %v2106, 0
    %2139 = vmatprep.subr.mxu0 0.0
    %2140 = vmatpush1.msra.mxu0 0.0
    %2141 = vmatprep.subr.mxu0 0.0
    %2142 = vmatpush1.msra.mxu0 0.0
    %2143 = vmatprep.subr.mxu0 0.0
    %2144 = vmatpush1.msra.mxu0 0.0
    %2145 = vmatprep.subr.mxu0 0.0
    %2146 = vmatpush1.msra.mxu0 0.0
    %2147 = vmatprep.subr.mxu0 0.0
    %2148 = vmatpush1.msra.mxu0 0.0
    %2149 = vmatprep.subr.mxu0 0.0
    %2150 = vmatpush1.msra.mxu0 0.0
    %2151 = vmatprep.subr.mxu0 0.0
    %2152 = vmatpush1.msra.mxu0 0.0
    %2153 = vmatprep.subr.mxu0 0.0
    %2154 = vmatpush1.msra.mxu0 0.0
    %2155 = vmatprep.subr.mxu0 0.0
    %2156 = vmatpush1.msra.mxu0 0.0
    %2157 = vmatprep.subr.mxu0 0.0
    %2158 = vmatpush1.msra.mxu0 0.0
    %2159 = vmatprep.subr.mxu0 0.0
    %2160 = vmatpush1.msra.mxu0 0.0
    %2161 = vmatprep.subr.mxu0 0.0
    %2162 = vmatpush1.msra.mxu0 0.0
    %2163 = vmatprep.subr.mxu0 0.0
    %2164 = vmatpush1.msra.mxu0 0.0
    %2165 = vmatprep.subr.mxu0 0.0
    %2166 = vmatpush1.msra.mxu0 0.0
    %2167 = vmatprep.subr.mxu0 0.0
    %2168 = vmatpush1.msra.mxu0 0.0
    %2169 = vmatprep.subr.mxu0 0.0
    %2170 = vmatpush1.msra.mxu0 %v2107
    %2171 = vmatprep.subr.mxu0 0.0
    %2172 = vmatpush2.msra.mxu0 0.0
    %2173 = vmatprep.subr.mxu0 0.0
    %2174 = vmatpush2.msra.mxu0 0.0
    %2175 = vmatprep.subr.mxu0 0.0
    %2176 = vmatpush2.msra.mxu0 0.0
    %2177 = vmatprep.subr.mxu0 0.0
    %2178 = vmatpush2.msra.mxu0 0.0
    %2179 = vmatprep.subr.mxu0 0.0
    %2180 = vmatpush2.msra.mxu0 0.0
    %2181 = vmatprep.subr.mxu0 0.0
    %2182 = vmatpush2.msra.mxu0 0.0
    %2183 = vmatprep.subr.mxu0 0.0
    %2184 = vmatpush2.msra.mxu0 0.0
    %2185 = vmatprep.subr.mxu0 0.0
    %2186 = vmatpush2.msra.mxu0 0.0
    %2187 = vmatprep.subr.mxu0 0.0
    %2188 = vmatpush2.msra.mxu0 0.0
    %2189 = vmatprep.subr.mxu0 0.0
    %2190 = vmatpush2.msra.mxu0 0.0
    %2191 = vmatprep.subr.mxu0 0.0
    %2192 = vmatpush2.msra.mxu0 0.0
    %2193 = vmatprep.subr.mxu0 0.0
    %2194 = vmatpush2.msra.mxu0 0.0
    %2195 = vmatprep.subr.mxu0 0.0
    %2196 = vmatpush2.msra.mxu0 0.0
    %2197 = vmatprep.subr.mxu0 0.0
    %2198 = vmatpush2.msra.mxu0 0.0
    %2199 = vmatprep.subr.mxu0 0.0
    %2200 = vmatpush2.msra.mxu0 0.0
    %2201 = vmatprep.subr.mxu0 0.0
    %2202 = vmatpush2.msra.mxu0 0.0
    %2203 = vmatprep.mubr.f32.mxu0 0.0
    %2204 = vmatmul.mubr.f32.gmra.mxu0 %v2116
    %v2205 = vpop.f32.mrf.mxu0
    %v2206 = vadd.f32 %v2113, %v2205
    %v2207 = vpop.f32.mrf.mxu0
    %2208 = vmatprep.mubr.f32.mxu0 0.0
    %2209 = vmatmul.mubr.f32.gmra.mxu0 %v2119
    %v2210 = vpop.f32.mrf.mxu0
    %v2211 = vadd.f32 %v2113, %v2210
    %v2212 = vpop.f32.mrf.mxu0
    %2213 = vmatprep.mubr.f32.mxu0 0.0
    %2214 = vmatmul.mubr.f32.gmra.mxu0 %v2122
    %v2215 = vpop.f32.mrf.mxu0
    %v2216 = vadd.f32 %v2113, %v2215
    %v2217 = vpop.f32.mrf.mxu0
    %2218 = vmatprep.mubr.f32.mxu0 0.0
    %2219 = vmatmul.mubr.f32.gmra.mxu0 %v2125
    %v2220 = vpop.f32.mrf.mxu0
    %v2221 = vadd.f32 %v2113, %v2220
    %v2222 = vpop.f32.mrf.mxu0
    %2223 = vmatprep.mubr.f32.mxu0 0.0
    %2224 = vmatmul.mubr.f32.gmra.mxu0 %v2128
    %v2225 = vpop.f32.mrf.mxu0
    %v2226 = vadd.f32 %v2113, %v2225
    %v2227 = vpop.f32.mrf.mxu0
    %2228 = vmatprep.mubr.f32.mxu0 0.0
    %2229 = vmatmul.mubr.f32.gmra.mxu0 %v2131
    %v2230 = vpop.f32.mrf.mxu0
    %v2231 = vadd.f32 %v2113, %v2230
    %v2232 = vpop.f32.mrf.mxu0
    %2233 = vmatprep.mubr.f32.mxu0 0.0
    %2234 = vmatmul.mubr.f32.gmra.mxu0 %v2134
    %v2235 = vpop.f32.mrf.mxu0
    %v2236 = vadd.f32 %v2113, %v2235
    %v2237 = vpop.f32.mrf.mxu0
    %2238 = vmatprep.mubr.f32.mxu0 0.0
    %2239 = vmatmul.mubr.f32.gmra.mxu0 %v2137
    %v2240 = vpop.f32.mrf.mxu0
    %v2241 = vadd.f32 %v2113, %v2240
    %v2242 = vpop.f32.mrf.mxu0
    %2243 = vdwg.mxu0
    %v2244 = vmax.f32 %v2206, 0.0
    %v2245 = vmax.f32 %v2211, 0.0
    %v2246 = vmax.f32 %v2216, 0.0
    %v2247 = vmax.f32 %v2221, 0.0
    %v2248 = vmax.f32 %v2226, 0.0
    %v2249 = vmax.f32 %v2231, 0.0
    %v2250 = vmax.f32 %v2236, 0.0
    %v2251 = vmax.f32 %v2241, 0.0
    %v2252 = vld [vmem:[%s10] sm:$0xff]
    %v2253 = vlaneseq
    %v2254 = vshrl.u32 %v2253, 7
    %v2255 = vsub.s32 2, %v2254
    %v2256 = vrot.slane %v42, %v2255
    %v2258 = vsel %vm386, %v2244, 0
    %v2261 = vsel %vm386, %v2245, 0
    %v2264 = vsel %vm386, %v2246, 0
    %v2267 = vsel %vm386, %v2247, 0
    %v2270 = vsel %vm386, %v2248, 0
    %v2273 = vsel %vm386, %v2249, 0
    %v2276 = vsel %vm386, %v2250, 0
    %v2279 = vsel %vm386, %v2251, 0
    %2281 = vmatprep.subr.mxu0 0.0
    %2282 = vmatpush1.msra.mxu0 0.0
    %2283 = vmatprep.subr.mxu0 0.0
    %2284 = vmatpush1.msra.mxu0 0.0
    %2285 = vmatprep.subr.mxu0 0.0
    %2286 = vmatpush1.msra.mxu0 0.0
    %2287 = vmatprep.subr.mxu0 0.0
    %2288 = vmatpush1.msra.mxu0 0.0
    %2289 = vmatprep.subr.mxu0 0.0
    %2290 = vmatpush1.msra.mxu0 0.0
    %2291 = vmatprep.subr.mxu0 0.0
    %2292 = vmatpush1.msra.mxu0 0.0
    %2293 = vmatprep.subr.mxu0 0.0
    %2294 = vmatpush1.msra.mxu0 0.0
    %2295 = vmatprep.subr.mxu0 0.0
    %2296 = vmatpush1.msra.mxu0 0.0
    %2297 = vmatprep.subr.mxu0 0.0
    %2298 = vmatpush1.msra.mxu0 0.0
    %2299 = vmatprep.subr.mxu0 0.0
    %2300 = vmatpush1.msra.mxu0 0.0
    %2301 = vmatprep.subr.mxu0 0.0
    %2302 = vmatpush1.msra.mxu0 0.0
    %2303 = vmatprep.subr.mxu0 0.0
    %2304 = vmatpush1.msra.mxu0 0.0
    %2305 = vmatprep.subr.mxu0 0.0
    %2306 = vmatpush1.msra.mxu0 0.0
    %2307 = vmatprep.subr.mxu0 0.0
    %2308 = vmatpush1.msra.mxu0 0.0
    %2309 = vmatprep.subr.mxu0 0.0
    %2310 = vmatpush1.msra.mxu0 0.0
    %2311 = vmatprep.subr.mxu0 0.0
    %2312 = vmatpush1.msra.mxu0 %v2252
    %2313 = vmatprep.subr.mxu0 0.0
    %2314 = vmatpush2.msra.mxu0 0.0
    %2315 = vmatprep.subr.mxu0 0.0
    %2316 = vmatpush2.msra.mxu0 0.0
    %2317 = vmatprep.subr.mxu0 0.0
    %2318 = vmatpush2.msra.mxu0 0.0
    %2319 = vmatprep.subr.mxu0 0.0
    %2320 = vmatpush2.msra.mxu0 0.0
    %2321 = vmatprep.subr.mxu0 0.0
    %2322 = vmatpush2.msra.mxu0 0.0
    %2323 = vmatprep.subr.mxu0 0.0
    %2324 = vmatpush2.msra.mxu0 0.0
    %2325 = vmatprep.subr.mxu0 0.0
    %2326 = vmatpush2.msra.mxu0 0.0
    %2327 = vmatprep.subr.mxu0 0.0
    %2328 = vmatpush2.msra.mxu0 0.0
    %2329 = vmatprep.subr.mxu0 0.0
    %2330 = vmatpush2.msra.mxu0 0.0
    %2331 = vmatprep.subr.mxu0 0.0
    %2332 = vmatpush2.msra.mxu0 0.0
    %2333 = vmatprep.subr.mxu0 0.0
    %2334 = vmatpush2.msra.mxu0 0.0
    %2335 = vmatprep.subr.mxu0 0.0
    %2336 = vmatpush2.msra.mxu0 0.0
    %2337 = vmatprep.subr.mxu0 0.0
    %2338 = vmatpush2.msra.mxu0 0.0
    %2339 = vmatprep.subr.mxu0 0.0
    %2340 = vmatpush2.msra.mxu0 0.0
    %2341 = vmatprep.subr.mxu0 0.0
    %2342 = vmatpush2.msra.mxu0 0.0
    %2343 = vmatprep.subr.mxu0 0.0
    %2344 = vmatpush2.msra.mxu0 0.0
    %2345 = vmatprep.mubr.f32.mxu0 0.0
    %2346 = vmatmul.mubr.f32.gmra.mxu0 %v2258
    %v2347 = vpop.f32.mrf.mxu0
    %v2348 = vadd.f32 %v2256, %v2347
    %v2349 = vpop.f32.mrf.mxu0
    %2350 = vmatprep.mubr.f32.mxu0 0.0
    %2351 = vmatmul.mubr.f32.gmra.mxu0 %v2261
    %v2352 = vpop.f32.mrf.mxu0
    %v2353 = vadd.f32 %v2256, %v2352
    %v2354 = vpop.f32.mrf.mxu0
    %2355 = vmatprep.mubr.f32.mxu0 0.0
    %2356 = vmatmul.mubr.f32.gmra.mxu0 %v2264
    %v2357 = vpop.f32.mrf.mxu0
    %v2358 = vadd.f32 %v2256, %v2357
    %v2359 = vpop.f32.mrf.mxu0
    %2360 = vmatprep.mubr.f32.mxu0 0.0
    %2361 = vmatmul.mubr.f32.gmra.mxu0 %v2267
    %v2362 = vpop.f32.mrf.mxu0
    %v2363 = vadd.f32 %v2256, %v2362
    %v2364 = vpop.f32.mrf.mxu0
    %2365 = vmatprep.mubr.f32.mxu0 0.0
    %2366 = vmatmul.mubr.f32.gmra.mxu0 %v2270
    %v2367 = vpop.f32.mrf.mxu0
    %v2368 = vadd.f32 %v2256, %v2367
    %v2369 = vpop.f32.mrf.mxu0
    %2370 = vmatprep.mubr.f32.mxu0 0.0
    %2371 = vmatmul.mubr.f32.gmra.mxu0 %v2273
    %v2372 = vpop.f32.mrf.mxu0
    %v2373 = vadd.f32 %v2256, %v2372
    %v2374 = vpop.f32.mrf.mxu0
    %2375 = vmatprep.mubr.f32.mxu0 0.0
    %2376 = vmatmul.mubr.f32.gmra.mxu0 %v2276
    %v2377 = vpop.f32.mrf.mxu0
    %v2378 = vadd.f32 %v2256, %v2377
    %v2379 = vpop.f32.mrf.mxu0
    %2380 = vmatprep.mubr.f32.mxu0 0.0
    %2381 = vmatmul.mubr.f32.gmra.mxu0 %v2279
    %v2382 = vpop.f32.mrf.mxu0
    %v2383 = vadd.f32 %v2256, %v2382
    %v2384 = vpop.f32.mrf.mxu0
    %2385 = vdwg.mxu0
    %v2386 = vadd.f32 %v2099, %v2348
    %v2387 = vadd.f32 %v2100, %v2353
    %v2388 = vadd.f32 %v2101, %v2358
    %v2389 = vadd.f32 %v2102, %v2363
    %v2390 = vadd.f32 %v2103, %v2368
    %v2391 = vadd.f32 %v2104, %v2373
    %v2392 = vadd.f32 %v2105, %v2378
    %v2393 = vadd.f32 %v2106, %v2383
    %v2394 = vsel %vm386, %v2386, 0.0
    %2395 = vadd.xlane.f32.xlu0 %v2394
    %v2396 = vpop.xlane.xlu0 %2395
    %v2397 = vsel %vm386, %v2387, 0.0
    %2398 = vadd.xlane.f32.xlu0 %v2397
    %v2399 = vpop.xlane.xlu0 %2398
    %v2400 = vsel %vm386, %v2388, 0.0
    %2401 = vadd.xlane.f32.xlu0 %v2400
    %v2402 = vpop.xlane.xlu0 %2401
    %v2403 = vsel %vm386, %v2389, 0.0
    %2404 = vadd.xlane.f32.xlu0 %v2403
    %v2405 = vpop.xlane.xlu0 %2404
    %v2406 = vsel %vm386, %v2390, 0.0
    %2407 = vadd.xlane.f32.xlu0 %v2406
    %v2408 = vpop.xlane.xlu0 %2407
    %v2409 = vsel %vm386, %v2391, 0.0
    %2410 = vadd.xlane.f32.xlu0 %v2409
    %v2411 = vpop.xlane.xlu0 %2410
    %v2412 = vsel %vm386, %v2392, 0.0
    %2413 = vadd.xlane.f32.xlu0 %v2412
    %v2414 = vpop.xlane.xlu0 %2413
    %v2415 = vsel %vm386, %v2393, 0.0
    %2416 = vadd.xlane.f32.xlu0 %v2415
    %v2417 = vpop.xlane.xlu0 %2416
    %v2418 = vmul.f32 %v2396, %v2002
    %v2419 = vmul.f32 %v2399, %v2002
    %v2420 = vmul.f32 %v2402, %v2002
    %v2421 = vmul.f32 %v2405, %v2002
    %v2422 = vmul.f32 %v2408, %v2002
    %v2423 = vmul.f32 %v2411, %v2002
    %v2424 = vmul.f32 %v2414, %v2002
    %v2425 = vmul.f32 %v2417, %v2002
    %v2426 = vsub.f32 %v2386, %v2418
    %v2427 = vsub.f32 %v2387, %v2419
    %v2428 = vsub.f32 %v2388, %v2420
    %v2429 = vsub.f32 %v2389, %v2421
    %v2430 = vsub.f32 %v2390, %v2422
    %v2431 = vsub.f32 %v2391, %v2423
    %v2432 = vsub.f32 %v2392, %v2424
    %v2433 = vsub.f32 %v2393, %v2425
    %v2434 = vmul.f32 %v2426, %v2426
    %v2435 = vmul.f32 %v2427, %v2427
    %v2436 = vmul.f32 %v2428, %v2428
    %v2437 = vmul.f32 %v2429, %v2429
    %v2438 = vmul.f32 %v2430, %v2430
    %v2439 = vmul.f32 %v2431, %v2431
    %v2440 = vmul.f32 %v2432, %v2432
    %v2441 = vmul.f32 %v2433, %v2433
    %v2442 = vsel %vm386, %v2434, 0.0
    %2443 = vadd.xlane.f32.xlu0 %v2442
    %v2444 = vpop.xlane.xlu0 %2443
    %v2445 = vsel %vm386, %v2435, 0.0
    %2446 = vadd.xlane.f32.xlu0 %v2445
    %v2447 = vpop.xlane.xlu0 %2446
    %v2448 = vsel %vm386, %v2436, 0.0
    %2449 = vadd.xlane.f32.xlu0 %v2448
    %v2450 = vpop.xlane.xlu0 %2449
    %v2451 = vsel %vm386, %v2437, 0.0
    %2452 = vadd.xlane.f32.xlu0 %v2451
    %v2453 = vpop.xlane.xlu0 %2452
    %v2454 = vsel %vm386, %v2438, 0.0
    %2455 = vadd.xlane.f32.xlu0 %v2454
    %v2456 = vpop.xlane.xlu0 %2455
    %v2457 = vsel %vm386, %v2439, 0.0
    %2458 = vadd.xlane.f32.xlu0 %v2457
    %v2459 = vpop.xlane.xlu0 %2458
    %v2460 = vsel %vm386, %v2440, 0.0
    %2461 = vadd.xlane.f32.xlu0 %v2460
    %v2462 = vpop.xlane.xlu0 %2461
    %v2463 = vsel %vm386, %v2441, 0.0
    %2464 = vadd.xlane.f32.xlu0 %v2463
    %v2465 = vpop.xlane.xlu0 %2464
    %v2466 = vmul.f32 %v2444, %v2002
    %v2467 = vmul.f32 %v2447, %v2002
    %v2468 = vmul.f32 %v2450, %v2002
    %v2469 = vmul.f32 %v2453, %v2002
    %v2470 = vmul.f32 %v2456, %v2002
    %v2471 = vmul.f32 %v2459, %v2002
    %v2472 = vmul.f32 %v2462, %v2002
    %v2473 = vmul.f32 %v2465, %v2002
    %v2474 = vadd.f32 %v2466, 1e-05
    %v2475 = vadd.f32 %v2467, 1e-05
    %v2476 = vadd.f32 %v2468, 1e-05
    %v2477 = vadd.f32 %v2469, 1e-05
    %v2478 = vadd.f32 %v2470, 1e-05
    %v2479 = vadd.f32 %v2471, 1e-05
    %v2480 = vadd.f32 %v2472, 1e-05
    %v2481 = vadd.f32 %v2473, 1e-05
    %v2482 = vrsqrt.pop %v2474
    %v2483 = vrsqrt.pop %v2475
    %v2484 = vrsqrt.pop %v2476
    %v2485 = vrsqrt.pop %v2477
    %v2486 = vrsqrt.pop %v2478
    %v2487 = vrsqrt.pop %v2479
    %v2488 = vrsqrt.pop %v2480
    %v2489 = vrsqrt.pop %v2481
    %v2490 = vmul.f32 %v2426, %v2482
    %v2491 = vmul.f32 %v2427, %v2483
    %v2492 = vmul.f32 %v2428, %v2484
    %v2493 = vmul.f32 %v2429, %v2485
    %v2494 = vmul.f32 %v2430, %v2486
    %v2495 = vmul.f32 %v2431, %v2487
    %v2496 = vmul.f32 %v2432, %v2488
    %v2497 = vmul.f32 %v2433, %v2489
    %v2498 = vlaneseq
    %v2499 = vshrl.u32 %v2498, 7
    %v2500 = vsub.s32 5, %v2499
    %v2501 = vrot.slane %v42, %v2500
    %v2502 = vmul.f32 %v2490, %v2501
    %v2503 = vmul.f32 %v2491, %v2501
    %v2504 = vmul.f32 %v2492, %v2501
    %v2505 = vmul.f32 %v2493, %v2501
    %v2506 = vmul.f32 %v2494, %v2501
    %v2507 = vmul.f32 %v2495, %v2501
    %v2508 = vmul.f32 %v2496, %v2501
    %v2509 = vmul.f32 %v2497, %v2501
    %v2510 = vlaneseq
    %v2511 = vshrl.u32 %v2510, 7
    %v2512 = vsub.s32 6, %v2511
    %v2513 = vrot.slane %v42, %v2512
    %v2514 = vadd.f32 %v2502, %v2513
    %v2515 = vadd.f32 %v2503, %v2513
    %v2516 = vadd.f32 %v2504, %v2513
    %v2517 = vadd.f32 %v2505, %v2513
    %v2518 = vadd.f32 %v2506, %v2513
    %v2519 = vadd.f32 %v2507, %v2513
    %v2520 = vadd.f32 %v2508, %v2513
    %v2521 = vadd.f32 %v2509, %v2513
    %v2522 = vlaneseq
    %v2523 = vshrl.u32 %v2522, 7
    %v2524 = vsub.s32 7, %v2523
    %v2525 = vrot.slane %v42, %v2524
    %v2526 = vmul.f32 %v2514, %v2525
    %v2527 = vmul.f32 %v2515, %v2525
    %v2528 = vmul.f32 %v2516, %v2525
    %v2529 = vmul.f32 %v2517, %v2525
    %v2530 = vmul.f32 %v2518, %v2525
    %v2531 = vmul.f32 %v2519, %v2525
    %v2532 = vmul.f32 %v2520, %v2525
    %v2533 = vmul.f32 %v2521, %v2525
    %v2534 = vsel %vm386, %v2526, 0.0
    %2535 = vadd.xlane.f32.xlu0 %v2534
    %v2536 = vpop.xlane.xlu0 %2535
    %v2537 = vsel %vm386, %v2527, 0.0
    %2538 = vadd.xlane.f32.xlu0 %v2537
    %v2539 = vpop.xlane.xlu0 %2538
    %v2540 = vsel %vm386, %v2528, 0.0
    %2541 = vadd.xlane.f32.xlu0 %v2540
    %v2542 = vpop.xlane.xlu0 %2541
    %v2543 = vsel %vm386, %v2529, 0.0
    %2544 = vadd.xlane.f32.xlu0 %v2543
    %v2545 = vpop.xlane.xlu0 %2544
    %v2546 = vsel %vm386, %v2530, 0.0
    %2547 = vadd.xlane.f32.xlu0 %v2546
    %v2548 = vpop.xlane.xlu0 %2547
    %v2549 = vsel %vm386, %v2531, 0.0
    %2550 = vadd.xlane.f32.xlu0 %v2549
    %v2551 = vpop.xlane.xlu0 %2550
    %v2552 = vsel %vm386, %v2532, 0.0
    %2553 = vadd.xlane.f32.xlu0 %v2552
    %v2554 = vpop.xlane.xlu0 %2553
    %v2555 = vsel %vm386, %v2533, 0.0
    %2556 = vadd.xlane.f32.xlu0 %v2555
    %v2557 = vpop.xlane.xlu0 %2556
    %2559 = vset.pattern.permute.xlu0 0
    %2560 = vperm.xlu0 %2559, %v43
    %v2561 = vpop.permute.xlu0 %2560
    %v2562 = vlaneseq
    %v2563 = vshrl.u32 %v2562, 7
    %v2564 = vsub.s32 0, %v2563
    %v2565 = vrot.slane %v2561, %v2564
    %v2567 = vadd.f32 %v2536, %v2565
    %v2568 = vadd.f32 %v2539, %v2565
    %v2569 = vadd.f32 %v2542, %v2565
    %v2570 = vadd.f32 %v2545, %v2565
    %v2571 = vadd.f32 %v2548, %v2565
    %v2572 = vadd.f32 %v2551, %v2565
    %v2573 = vadd.f32 %v2554, %v2565
    %v2574 = vadd.f32 %v2557, %v2565
    %2583 = vset.pattern.permute.xlu0 0
    %2584 = vperm.xlu0 %2583, %v2567
    %v2585 = vpop.permute.xlu0 %2584
    %2586 = vset.pattern.permute.xlu0 0
    %2587 = vperm.xlu0 %2586, %v2568
    %v2588 = vpop.permute.xlu0 %2587
    %2589 = vset.pattern.permute.xlu0 0
    %2590 = vperm.xlu0 %2589, %v2569
    %v2591 = vpop.permute.xlu0 %2590
    %2592 = vset.pattern.permute.xlu0 0
    %2593 = vperm.xlu0 %2592, %v2570
    %v2594 = vpop.permute.xlu0 %2593
    %2595 = vset.pattern.permute.xlu0 0
    %2596 = vperm.xlu0 %2595, %v2571
    %v2597 = vpop.permute.xlu0 %2596
    %2598 = vset.pattern.permute.xlu0 0
    %2599 = vperm.xlu0 %2598, %v2572
    %v2600 = vpop.permute.xlu0 %2599
    %2601 = vset.pattern.permute.xlu0 0
    %2602 = vperm.xlu0 %2601, %v2573
    %v2603 = vpop.permute.xlu0 %2602
    %2604 = vset.pattern.permute.xlu0 0
    %2605 = vperm.xlu0 %2604, %v2574
    %v2606 = vpop.permute.xlu0 %2605
    %v2607 = vlaneseq
    %v2608 = vand.u32 %v2607, 127
    %v2609 = vlaneseq
    %v2610 = vshrl.u32 %v2609, 7
    %v2611 = vsub.s32 %v2608, %v2610
    %v2612 = vrot.slane %v2585, %v2611
    %v2613 = vadd.s32 %v2608, 4294967288
    %v2614 = vlaneseq
    %v2615 = vshrl.u32 %v2614, 7
    %v2616 = vsub.s32 %v2613, %v2615
    %v2617 = vrot.slane %v2588, %v2616
    %vm2618 = vcmask 130112
    %v2619 = vsel %vm2618, %v2617, %v2612
    %v2620 = vadd.s32 %v2608, 4294967280
    %v2621 = vlaneseq
    %v2622 = vshrl.u32 %v2621, 7
    %v2623 = vsub.s32 %v2620, %v2622
    %v2624 = vrot.slane %v2591, %v2623
    %vm2625 = vcmask 195712
    %v2626 = vsel %vm2625, %v2624, %v2619
    %v2627 = vadd.s32 %v2608, 4294967272
    %v2628 = vlaneseq
    %v2629 = vshrl.u32 %v2628, 7
    %v2630 = vsub.s32 %v2627, %v2629
    %v2631 = vrot.slane %v2594, %v2630
    %vm2632 = vcmask 261312
    %v2633 = vsel %vm2632, %v2631, %v2626
    %v2634 = vadd.s32 %v2608, 4294967264
    %v2635 = vlaneseq
    %v2636 = vshrl.u32 %v2635, 7
    %v2637 = vsub.s32 %v2634, %v2636
    %v2638 = vrot.slane %v2597, %v2637
    %vm2639 = vcmask 326912
    %v2640 = vsel %vm2639, %v2638, %v2633
    %v2641 = vadd.s32 %v2608, 4294967256
    %v2642 = vlaneseq
    %v2643 = vshrl.u32 %v2642, 7
    %v2644 = vsub.s32 %v2641, %v2643
    %v2645 = vrot.slane %v2600, %v2644
    %vm2646 = vcmask 392512
    %v2647 = vsel %vm2646, %v2645, %v2640
    %v2648 = vadd.s32 %v2608, 4294967248
    %v2649 = vlaneseq
    %v2650 = vshrl.u32 %v2649, 7
    %v2651 = vsub.s32 %v2648, %v2650
    %v2652 = vrot.slane %v2603, %v2651
    %vm2653 = vcmask 458112
    %v2654 = vsel %vm2653, %v2652, %v2647
    %v2655 = vadd.s32 %v2608, 4294967240
    %v2656 = vlaneseq
    %v2657 = vshrl.u32 %v2656, 7
    %v2658 = vsub.s32 %v2655, %v2657
    %v2659 = vrot.slane %v2606, %v2658
    %vm2660 = vcmask 523712
    %v2661 = vsel %vm2660, %v2659, %v2654
    %vm2663 = vcmask 516096
    %2664 = vst.msk [vmem:[#allocation2] sm:$0x1] %vm2663, %v2661
    // Predicated region
    $region50: #{tpu_custom_call.1} parent=1 // pred_check
      _
    $region51: #{tpu_custom_call.1} parent=1 // pred_check_branch
      %2666 = sbr.rel (0) target = $region53
    $region52: #{tpu_custom_call.1} parent=1 // pred_region
      %s2668 = ssub.s32 16, 16
      %2669 = vsyncadd [#allocation3], %s2668
      %s2671 = sshll.u32 [#allocation2], 4
      %s2672 = int_to_ptr.vmem [resolvable:$true] %s2671
      %2674 = dma.vmem_to_hbm [thread:$0]  %s2672, 16, %s12, [#allocation3]
    $region53: #{tpu_custom_call.1} parent=1 // pred_fallthru
      _
    // Predicated region
    $region54: #{tpu_custom_call.1} parent=1 // pred_check
      _
    $region55: #{tpu_custom_call.1} parent=1 // pred_check_branch
      %2676 = sbr.rel (0) target = $region57
    $region56: #{tpu_custom_call.1} parent=1 // pred_region
      %2677 = dma.done [#allocation3], 16
    $region57: #{tpu_custom_call.1} parent=1 // pred_fallthru
      _
    %2678 = vsyncpa [#allocation3], 1

</llo_original>
